<compile_context>
chip_gen: v5e
topology: v5e:2x2
jax: 0.10.0
libtpu: 0.0.40
codegen_flags: <defaults>
</compile_context>

<pallas_src>
from types import SimpleNamespace

import jax
import jax.numpy as jnp
from jax import lax
from jax.experimental import pallas as pl
from jax.experimental.pallas import tpu as pltpu

EPS = 1.1920929e-07  # nn.RMSNorm default eps (f32 finfo eps)
NEG_INF = -1e30


def _rms(x, eps):
    return x * lax.rsqrt(jnp.mean(x * x, axis=-1, keepdims=True) + eps)


# ----------------------------- fused decoder kernel -----------------------------

def make_decoder_kernel(layer_kinds, cfg):
    """One kernel = whole decoder forward for one batch element (grid step)."""
    H = cfg.n_heads
    nope, rope, vdim = cfg.qk_nope_head_dim, cfg.qk_rope_head_dim, cfg.v_head_dim
    R = cfg.kv_lora_rank
    E, K, I = cfg.n_routed_experts, cfg.n_activated_experts, cfg.moe_inter_dim
    route_scale = float(cfg.route_scale)
    eps = EPS

    def kernel(*refs):
        (x_ref, cosq_ref, sinq_ref, cosk_ref, sink_ref,
         pq_ref, pk_ref, bias_ref) = refs[:8]
        o_ref = refs[-1]
        w_it = iter(refs[8:-1])
        nxt = lambda: next(w_it)[...]

        x = x_ref[...]                                      # (S, D) f32, residual stream
        S = x.shape[0]
        cosq, sinq = cosq_ref[...], sinq_ref[...]
        cosk, sink = cosk_ref[...], sink_ref[...]
        pq, pk = pq_ref[...], pk_ref[...]
        bias = bias_ref[...]                                # (H*S, H*S) additive mask

        for kind in layer_kinds:
            # ---------- attention sublayer: x = x + MLA(RMSNorm(x)) ----------
            n1w = nxt(); wq = nxt(); wkva = nxt(); kvnw = nxt(); wkvb = nxt(); wo = nxt()
            hb = (_rms(x, eps) * n1w).astype(jnp.bfloat16)

            # q projection (columns pre-reordered [all nope | all rope], scale folded in)
            q_all = jnp.dot(hb, wq, preferred_element_type=jnp.float32)
            q_nope = q_all[:, :H * nope]                    # (S, H*nope)
            q_pe = q_all[:, H * nope:]                      # (S, H*rope)
            # interleaved RoPE: out = x*cos + (x @ P)*sin  (P = pairwise rotation matrix)
            q_pe = q_pe * cosq + jnp.dot(q_pe, pq, preferred_element_type=jnp.float32) * sinq

            kv_a = jnp.dot(hb, wkva, preferred_element_type=jnp.float32)  # (S, R+rope)
            kv_lat = kv_a[:, :R]
            k_pe = kv_a[:, R:]
            k_pe = k_pe * cosk + jnp.dot(k_pe, pk, preferred_element_type=jnp.float32) * sink

            kv_n = (_rms(kv_lat, eps) * kvnw).astype(jnp.bfloat16)
            kv_b = jnp.dot(kv_n, wkvb, preferred_element_type=jnp.float32)  # (S, H*(nope+vdim))
            k_nope = kv_b[:, :H * nope]
            v_all = kv_b[:, H * nope:]

            # head-stacked (H*S, d) layout -> one softmax / one PV matmul for all heads
            qn_stk = jnp.concatenate(
                [q_nope[:, h * nope:(h + 1) * nope] for h in range(H)], axis=0)
            qp_stk = jnp.concatenate(
                [q_pe[:, h * rope:(h + 1) * rope] for h in range(H)], axis=0)
            kn_stk = jnp.concatenate(
                [k_nope[:, h * nope:(h + 1) * nope] for h in range(H)], axis=0)
            kp_stk = jnp.concatenate([k_pe] * H, axis=0)    # rope keys shared across heads
            v_stk = jnp.concatenate(
                [v_all[:, h * vdim:(h + 1) * vdim] for h in range(H)], axis=0)

            dn = (((1,), (1,)), ((), ()))                   # contract last dims (q @ k^T)
            s = lax.dot_general(qn_stk.astype(jnp.bfloat16), kn_stk.astype(jnp.bfloat16),
                                dn, preferred_element_type=jnp.float32)
            s = s + lax.dot_general(qp_stk.astype(jnp.bfloat16), kp_stk.astype(jnp.bfloat16),
                                    dn, preferred_element_type=jnp.float32)
            s = s + bias                                    # causal + same-head block mask

            m = jnp.max(s, axis=-1, keepdims=True)
            p = jnp.exp(s - m)
            p = p * pl.reciprocal(jnp.sum(p, axis=-1, keepdims=True), approx=True)

            o_stk = jnp.dot(p.astype(jnp.bfloat16), v_stk.astype(jnp.bfloat16),
                            preferred_element_type=jnp.float32)          # (H*S, vdim)
            o_cat = jnp.concatenate(
                [o_stk[h * S:(h + 1) * S, :] for h in range(H)], axis=1)  # (S, H*vdim)
            x = x + jnp.dot(o_cat.astype(jnp.bfloat16), wo,
                            preferred_element_type=jnp.float32)

            # ---------- FFN / MoE sublayer: x = x + FFN(RMSNorm(x)) ----------
            n2w = nxt()
            h2 = (_rms(x, eps) * n2w).astype(jnp.bfloat16)
            if kind == "dense":
                w1 = nxt(); w3 = nxt(); w2 = nxt()
                a1 = jnp.dot(h2, w1, preferred_element_type=jnp.float32)
                a3 = jnp.dot(h2, w3, preferred_element_type=jnp.float32)
                a = (a1 * lax.logistic(a1)) * a3            # SwiGLU in f32
                x = x + jnp.dot(a.astype(jnp.bfloat16), w2,
                                preferred_element_type=jnp.float32)
            else:
                gw = nxt(); w1c = nxt(); w3c = nxt(); w2c = nxt()
                total_i = w1c.shape[1]                      # E*I (routed) + shared inter dim

                # in-kernel gating: softmax + top-K + dense per-expert gates
                logits = jnp.dot(h2, gw, preferred_element_type=jnp.float32)   # (S, E)
                lm = jnp.max(logits, axis=-1, keepdims=True)
                le = jnp.exp(logits - lm)
                scores = le * pl.reciprocal(jnp.sum(le, axis=-1, keepdims=True))
                work = scores
                kth = None
                for _ in range(K):                          # K-th largest score per token
                    kth = jnp.max(work, axis=-1, keepdims=True)
                    work = jnp.where(work >= kth, -jnp.inf, work)
                gates = jnp.where(scores >= kth, scores, 0.0) * route_scale     # (S, E)

                # broadcast each expert's gate across its I-wide intermediate slab;
                # the shared-expert slab (last columns) keeps gate 1.0
                col = lax.broadcasted_iota(jnp.int32, (S, total_i), 1)
                g_exp = jnp.ones((S, total_i), jnp.float32)
                for e in range(E):
                    g_exp = jnp.where((col >= e * I) & (col < (e + 1) * I),
                                      gates[:, e:e + 1], g_exp)

                a1 = jnp.dot(h2, w1c, preferred_element_type=jnp.float32)       # (S, E*I+shared)
                a3 = jnp.dot(h2, w3c, preferred_element_type=jnp.float32)
                a = (a1 * lax.logistic(a1)) * a3 * g_exp
                x = x + jnp.dot(a.astype(jnp.bfloat16), w2c,
                                preferred_element_type=jnp.float32)

        fnw = nxt()                                         # final RMSNorm weight
        o_ref[...] = _rms(x, eps) * fnw

    return kernel


# ----------------------------- wrapper -----------------------------

def decoder_forward(x, prep, tables, cfg):
    B, S, D = x.shape

    layer_kinds = []
    flat = []
    for lp in prep["layers"]:
        a = lp["attn"]
        flat += [a["norm1_w"], a["wq"], a["wkv_a"], a["kv_norm_w"], a["wkv_b"], a["wo"],
                 lp["norm2_w"]]
        if "ffn" in lp:
            layer_kinds.append("dense")
            f = lp["ffn"]
            flat += [f["w1"], f["w3"], f["w2"]]
        else:
            layer_kinds.append("moe")
            m = lp["moe"]
            flat += [m["gate_w"], m["w1cat"], m["w3cat"], m["w2cat"]]
    flat.append(prep["norm_w"])

    const_ops = [tables["cosq"], tables["sinq"], tables["cosk"], tables["sink"],
                 tables["pq"], tables["pk"], tables["bias"]]

    kernel = make_decoder_kernel(tuple(layer_kinds), cfg)

    def resident(arr):
        nd = arr.ndim
        return pl.BlockSpec(arr.shape, lambda b, _nd=nd: (0,) * _nd)

    in_specs = ([pl.BlockSpec((None, S, D), lambda b: (b, 0, 0))]
                + [resident(a) for a in const_ops]
                + [resident(a) for a in flat])

    return pl.pallas_call(
        kernel,
        out_shape=jax.ShapeDtypeStruct((B, S, D), jnp.float32),
        grid=(B,),
        in_specs=in_specs,
        out_specs=pl.BlockSpec((None, S, D), lambda b: (b, 0, 0)),
        compiler_params=pltpu.CompilerParams(dimension_semantics=("parallel",)),
    )(x, *const_ops, *flat)


# ----------------------------- params / setup -----------------------------

def make_config():
    return SimpleNamespace(
        dim=32, n_layers=2, n_dense_layers=1, n_heads=4,
        inter_dim=64,
        q_lora_rank=0, kv_lora_rank=32,
        qk_nope_head_dim=16, qk_rope_head_dim=8, v_head_dim=16,
        n_routed_experts=4, n_activated_experts=2, n_shared_experts=1,
        moe_inter_dim=32, route_scale=1.0,
    )


def init_params(cfg, key):
    keys = iter(jax.random.split(key, 256))

    def w(*shape, scale=0.02):
        return scale * jax.random.normal(next(keys), shape, dtype=jnp.float32)

    H = cfg.n_heads
    qk_dim = cfg.qk_nope_head_dim + cfg.qk_rope_head_dim
    layers = []
    for li in range(cfg.n_layers):
        attn = dict(
            wq=w(cfg.dim, H * qk_dim),
            wkv_a=w(cfg.dim, cfg.kv_lora_rank + cfg.qk_rope_head_dim),
            kv_norm_w=jnp.ones((cfg.kv_lora_rank,), jnp.float32),
            wkv_b=w(cfg.kv_lora_rank, H * (cfg.qk_nope_head_dim + cfg.v_head_dim)),
            wo=w(H * cfg.v_head_dim, cfg.dim),
        )
        layer = dict(attn=attn,
                     norm1_w=jnp.ones((cfg.dim,), jnp.float32),
                     norm2_w=jnp.ones((cfg.dim,), jnp.float32))
        if li < cfg.n_dense_layers:
            layer["ffn"] = dict(w1=w(cfg.dim, cfg.inter_dim),
                                w3=w(cfg.dim, cfg.inter_dim),
                                w2=w(cfg.inter_dim, cfg.dim))
        else:
            E = cfg.n_routed_experts
            shared_dim = cfg.moe_inter_dim * cfg.n_shared_experts
            layer["moe"] = dict(
                gate_w=w(cfg.dim, E),
                ew1=w(E, cfg.dim, cfg.moe_inter_dim),
                ew3=w(E, cfg.dim, cfg.moe_inter_dim),
                ew2=w(E, cfg.moe_inter_dim, cfg.dim),
                sw1=w(cfg.dim, shared_dim),
                sw3=w(cfg.dim, shared_dim),
                sw2=w(shared_dim, cfg.dim),
            )
        layers.append(layer)
    return dict(layers=layers, norm_w=jnp.ones((cfg.dim,), jnp.float32))


def prepare_params(params, cfg):
    """Reorder wq / wkv_b columns head-major, fold the softmax scale into wq,
    concatenate routed+shared expert weights into lane-dense slabs, cast matmul
    weights to bf16, reshape norm weights to (1, D) for lane broadcast."""
    H = cfg.n_heads
    nope, rope, vdim = cfg.qk_nope_head_dim, cfg.qk_rope_head_dim, cfg.v_head_dim
    D, R = cfg.dim, cfg.kv_lora_rank
    E, I = cfg.n_routed_experts, cfg.moe_inter_dim
    scale = float(nope + rope) ** -0.5

    out_layers = []
    for lp in params["layers"]:
        a = lp["attn"]
        wq = (a["wq"] * scale).reshape(D, H, nope + rope)    # fold 1/sqrt(d) into wq
        wq_r = jnp.concatenate([wq[:, :, :nope].reshape(D, H * nope),
                                wq[:, :, nope:].reshape(D, H * rope)],
                               axis=1).astype(jnp.bfloat16)
        wkvb = a["wkv_b"].reshape(R, H, nope + vdim)
        wkvb_r = jnp.concatenate([wkvb[:, :, :nope].reshape(R, H * nope),
                                  wkvb[:, :, nope:].reshape(R, H * vdim)],
                                 axis=1).astype(jnp.bfloat16)
        attn = dict(
            norm1_w=lp["norm1_w"].reshape(1, D),
            wq=wq_r,
            wkv_a=a["wkv_a"].astype(jnp.bfloat16),
            kv_norm_w=a["kv_norm_w"].reshape(1, R),
            wkv_b=wkvb_r,
            wo=a["wo"].astype(jnp.bfloat16),
        )
        new = dict(attn=attn, norm2_w=lp["norm2_w"].reshape(1, D))
        if "ffn" in lp:
            new["ffn"] = {k: v.astype(jnp.bfloat16) for k, v in lp["ffn"].items()}
        else:
            m = lp["moe"]
            # routed experts concatenated along the intermediate dim (E*I lane-dense),
            # shared expert stacked on top (gated by 1.0 in-kernel)
            w1cat = jnp.concatenate(
                [jnp.transpose(m["ew1"], (1, 0, 2)).reshape(D, E * I), m["sw1"]], axis=1)
            w3cat = jnp.concatenate(
                [jnp.transpose(m["ew3"], (1, 0, 2)).reshape(D, E * I), m["sw3"]], axis=1)
            w2cat = jnp.concatenate([m["ew2"].reshape(E * I, D), m["sw2"]], axis=0)
            new["moe"] = dict(
                gate_w=m["gate_w"].astype(jnp.bfloat16),
                w1cat=w1cat.astype(jnp.bfloat16),
                w3cat=w3cat.astype(jnp.bfloat16),
                w2cat=w2cat.astype(jnp.bfloat16),
            )
        out_layers.append(new)
    return dict(layers=out_layers, norm_w=params["norm_w"].reshape(1, cfg.dim))


def make_attention_tables(seq_len, cfg, start_pos=0, theta=10000.0):
    """RoPE tables (interleaved RoPE as out = x*cos + (x @ P)*sin with pairwise
    rotation matrix P) plus the additive causal + same-head bias for the
    head-stacked (H*S, H*S) score layout."""
    rope_dim, H = cfg.qk_rope_head_dim, cfg.n_heads
    inv = 1.0 / (theta ** (jnp.arange(0, rope_dim, 2, dtype=jnp.float32) / rope_dim))
    t = jnp.arange(start_pos, start_pos + seq_len, dtype=jnp.float32)
    ang = jnp.outer(t, inv)                                  # (S, rope//2)
    cosk = jnp.repeat(jnp.cos(ang), 2, axis=-1)              # (S, rope)
    sink = jnp.repeat(jnp.sin(ang), 2, axis=-1)
    ev = jnp.arange(0, rope_dim, 2)
    pk = jnp.zeros((rope_dim, rope_dim), jnp.float32)
    pk = pk.at[ev, ev + 1].set(1.0).at[ev + 1, ev].set(-1.0)
    pq = jnp.kron(jnp.eye(H, dtype=jnp.float32), pk)         # block-diag over heads

    # additive bias for head-stacked scores: 0 where (same head) & causal, -1e30 else
    q_idx = jnp.arange(seq_len)[:, None]
    k_idx = jnp.arange(seq_len)[None, :]
    causal_blk = jnp.where(k_idx <= q_idx + start_pos, 0.0, NEG_INF).astype(jnp.float32)
    eye = jnp.eye(H, dtype=jnp.float32)
    bias = (jnp.kron(eye, causal_blk)
            + jnp.kron(1.0 - eye, jnp.full((seq_len, seq_len), NEG_INF, jnp.float32)))

    return dict(cosq=jnp.tile(cosk, (1, H)), sinq=jnp.tile(sink, (1, H)),
                cosk=cosk, sink=sink, pq=pq, pk=pk, bias=bias)


# ----------------------------- main -----------------------------

if __name__ == "__main__":
    cfg = make_config()
    B, S = 2, 8
    start_pos = 0

    key = jax.random.PRNGKey(0)
    k_x, k_p = jax.random.split(key)
    x = jax.random.normal(k_x, (B, S, cfg.dim), dtype=jnp.float32)
    params = init_params(cfg, k_p)
    prep = prepare_params(params, cfg)
    tables = make_attention_tables(S, cfg, start_pos)

    fwd = jax.jit(lambda x: decoder_forward(x, prep, tables, cfg))
    out = fwd(x)
    jax.block_until_ready(out)

    assert out.shape == (B, S, cfg.dim)
    assert bool(jnp.all(jnp.isfinite(out)))
    print("KERNEL_OK")
</pallas_src>

<mosaic_0001>
module attributes {stable_mosaic.version = 11 : i64} {
  func.func @kernel(%arg0: i32, %arg1: memref<1x8x32xf32, #tpu.memory_space<vmem>>, %arg2: memref<8x32xf32, #tpu.memory_space<vmem>>, %arg3: memref<8x32xf32, #tpu.memory_space<vmem>>, %arg4: memref<8x8xf32, #tpu.memory_space<vmem>>, %arg5: memref<8x8xf32, #tpu.memory_space<vmem>>, %arg6: memref<32x32xf32, #tpu.memory_space<vmem>>, %arg7: memref<8x8xf32, #tpu.memory_space<vmem>>, %arg8: memref<32x32xf32, #tpu.memory_space<vmem>>, %arg9: memref<1x32xf32, #tpu.memory_space<vmem>>, %arg10: memref<32x96xbf16, #tpu.memory_space<vmem>>, %arg11: memref<32x40xbf16, #tpu.memory_space<vmem>>, %arg12: memref<1x32xf32, #tpu.memory_space<vmem>>, %arg13: memref<32x128xbf16, #tpu.memory_space<vmem>>, %arg14: memref<64x32xbf16, #tpu.memory_space<vmem>>, %arg15: memref<1x32xf32, #tpu.memory_space<vmem>>, %arg16: memref<32x64xbf16, #tpu.memory_space<vmem>>, %arg17: memref<32x64xbf16, #tpu.memory_space<vmem>>, %arg18: memref<64x32xbf16, #tpu.memory_space<vmem>>, %arg19: memref<1x32xf32, #tpu.memory_space<vmem>>, %arg20: memref<32x96xbf16, #tpu.memory_space<vmem>>, %arg21: memref<32x40xbf16, #tpu.memory_space<vmem>>, %arg22: memref<1x32xf32, #tpu.memory_space<vmem>>, %arg23: memref<32x128xbf16, #tpu.memory_space<vmem>>, %arg24: memref<64x32xbf16, #tpu.memory_space<vmem>>, %arg25: memref<1x32xf32, #tpu.memory_space<vmem>>, %arg26: memref<32x4xbf16, #tpu.memory_space<vmem>>, %arg27: memref<32x160xbf16, #tpu.memory_space<vmem>>, %arg28: memref<32x160xbf16, #tpu.memory_space<vmem>>, %arg29: memref<160x32xbf16, #tpu.memory_space<vmem>>, %arg30: memref<1x32xf32, #tpu.memory_space<vmem>>, %arg31: memref<1x8x32xf32, #tpu.memory_space<vmem>>) attributes {dimension_semantics = [#tpu.dimension_semantics<parallel>], iteration_bounds = array<i64: 2>, scalar_prefetch = 0 : i64, scratch_operands = 0 : i64, tpu.core_type = #tpu.core_type<tc>, window_params = [{transform_indices = @transform_0, window_bounds = array<i64: 1, 8, 32>}, {pipeline_mode = #tpu.pipeline_mode<synchronous>, transform_indices = @transform_1, window_bounds = array<i64: 8, 32>}, {pipeline_mode = #tpu.pipeline_mode<synchronous>, transform_indices = @transform_2, window_bounds = array<i64: 8, 32>}, {pipeline_mode = #tpu.pipeline_mode<synchronous>, transform_indices = @transform_3, window_bounds = array<i64: 8, 8>}, {pipeline_mode = #tpu.pipeline_mode<synchronous>, transform_indices = @transform_4, window_bounds = array<i64: 8, 8>}, {pipeline_mode = #tpu.pipeline_mode<synchronous>, transform_indices = @transform_5, window_bounds = array<i64: 32, 32>}, {pipeline_mode = #tpu.pipeline_mode<synchronous>, transform_indices = @transform_6, window_bounds = array<i64: 8, 8>}, {pipeline_mode = #tpu.pipeline_mode<synchronous>, transform_indices = @transform_7, window_bounds = array<i64: 32, 32>}, {pipeline_mode = #tpu.pipeline_mode<synchronous>, transform_indices = @transform_8, window_bounds = array<i64: 1, 32>}, {pipeline_mode = #tpu.pipeline_mode<synchronous>, transform_indices = @transform_9, window_bounds = array<i64: 32, 96>}, {pipeline_mode = #tpu.pipeline_mode<synchronous>, transform_indices = @transform_10, window_bounds = array<i64: 32, 40>}, {pipeline_mode = #tpu.pipeline_mode<synchronous>, transform_indices = @transform_11, window_bounds = array<i64: 1, 32>}, {pipeline_mode = #tpu.pipeline_mode<synchronous>, transform_indices = @transform_12, window_bounds = array<i64: 32, 128>}, {pipeline_mode = #tpu.pipeline_mode<synchronous>, transform_indices = @transform_13, window_bounds = array<i64: 64, 32>}, {pipeline_mode = #tpu.pipeline_mode<synchronous>, transform_indices = @transform_14, window_bounds = array<i64: 1, 32>}, {pipeline_mode = #tpu.pipeline_mode<synchronous>, transform_indices = @transform_15, window_bounds = array<i64: 32, 64>}, {pipeline_mode = #tpu.pipeline_mode<synchronous>, transform_indices = @transform_16, window_bounds = array<i64: 32, 64>}, {pipeline_mode = #tpu.pipeline_mode<synchronous>, transform_indices = @transform_17, window_bounds = array<i64: 64, 32>}, {pipeline_mode = #tpu.pipeline_mode<synchronous>, transform_indices = @transform_18, window_bounds = array<i64: 1, 32>}, {pipeline_mode = #tpu.pipeline_mode<synchronous>, transform_indices = @transform_19, window_bounds = array<i64: 32, 96>}, {pipeline_mode = #tpu.pipeline_mode<synchronous>, transform_indices = @transform_20, window_bounds = array<i64: 32, 40>}, {pipeline_mode = #tpu.pipeline_mode<synchronous>, transform_indices = @transform_21, window_bounds = array<i64: 1, 32>}, {pipeline_mode = #tpu.pipeline_mode<synchronous>, transform_indices = @transform_22, window_bounds = array<i64: 32, 128>}, {pipeline_mode = #tpu.pipeline_mode<synchronous>, transform_indices = @transform_23, window_bounds = array<i64: 64, 32>}, {pipeline_mode = #tpu.pipeline_mode<synchronous>, transform_indices = @transform_24, window_bounds = array<i64: 1, 32>}, {pipeline_mode = #tpu.pipeline_mode<synchronous>, transform_indices = @transform_25, window_bounds = array<i64: 32, 4>}, {pipeline_mode = #tpu.pipeline_mode<synchronous>, transform_indices = @transform_26, window_bounds = array<i64: 32, 160>}, {pipeline_mode = #tpu.pipeline_mode<synchronous>, transform_indices = @transform_27, window_bounds = array<i64: 32, 160>}, {pipeline_mode = #tpu.pipeline_mode<synchronous>, transform_indices = @transform_28, window_bounds = array<i64: 160, 32>}, {pipeline_mode = #tpu.pipeline_mode<synchronous>, transform_indices = @transform_29, window_bounds = array<i64: 1, 32>}, {transform_indices = @transform_30, window_bounds = array<i64: 1, 8, 32>}]} {
    %c0 = arith.constant 0 : index
    %c0_0 = arith.constant 0 : index
    %c0_1 = arith.constant 0 : index
    %0 = vector.load %arg1[%c0, %c0_0, %c0_1] : memref<1x8x32xf32, #tpu.memory_space<vmem>>, vector<1x8x32xf32>
    %1 = vector.shape_cast %0 : vector<1x8x32xf32> to vector<8x32xf32>
    %c0_2 = arith.constant 0 : index
    %c0_3 = arith.constant 0 : index
    %2 = vector.load %arg2[%c0_2, %c0_3] : memref<8x32xf32, #tpu.memory_space<vmem>>, vector<8x32xf32>
    %c0_4 = arith.constant 0 : index
    %c0_5 = arith.constant 0 : index
    %3 = vector.load %arg3[%c0_4, %c0_5] : memref<8x32xf32, #tpu.memory_space<vmem>>, vector<8x32xf32>
    %c0_6 = arith.constant 0 : index
    %c0_7 = arith.constant 0 : index
    %4 = vector.load %arg4[%c0_6, %c0_7] : memref<8x8xf32, #tpu.memory_space<vmem>>, vector<8x8xf32>
    %c0_8 = arith.constant 0 : index
    %c0_9 = arith.constant 0 : index
    %5 = vector.load %arg5[%c0_8, %c0_9] : memref<8x8xf32, #tpu.memory_space<vmem>>, vector<8x8xf32>
    %c0_10 = arith.constant 0 : index
    %c0_11 = arith.constant 0 : index
    %6 = vector.load %arg6[%c0_10, %c0_11] : memref<32x32xf32, #tpu.memory_space<vmem>>, vector<32x32xf32>
    %c0_12 = arith.constant 0 : index
    %c0_13 = arith.constant 0 : index
    %7 = vector.load %arg7[%c0_12, %c0_13] : memref<8x8xf32, #tpu.memory_space<vmem>>, vector<8x8xf32>
    %c0_14 = arith.constant 0 : index
    %c0_15 = arith.constant 0 : index
    %8 = vector.load %arg8[%c0_14, %c0_15] : memref<32x32xf32, #tpu.memory_space<vmem>>, vector<32x32xf32>
    %c0_16 = arith.constant 0 : index
    %c0_17 = arith.constant 0 : index
    %9 = vector.load %arg9[%c0_16, %c0_17] : memref<1x32xf32, #tpu.memory_space<vmem>>, vector<1x32xf32>
    %c0_18 = arith.constant 0 : index
    %c0_19 = arith.constant 0 : index
    %10 = vector.load %arg10[%c0_18, %c0_19] : memref<32x96xbf16, #tpu.memory_space<vmem>>, vector<32x96xbf16>
    %c0_20 = arith.constant 0 : index
    %c0_21 = arith.constant 0 : index
    %11 = vector.load %arg11[%c0_20, %c0_21] : memref<32x40xbf16, #tpu.memory_space<vmem>>, vector<32x40xbf16>
    %c0_22 = arith.constant 0 : index
    %c0_23 = arith.constant 0 : index
    %12 = vector.load %arg12[%c0_22, %c0_23] : memref<1x32xf32, #tpu.memory_space<vmem>>, vector<1x32xf32>
    %c0_24 = arith.constant 0 : index
    %c0_25 = arith.constant 0 : index
    %13 = vector.load %arg13[%c0_24, %c0_25] : memref<32x128xbf16, #tpu.memory_space<vmem>>, vector<32x128xbf16>
    %c0_26 = arith.constant 0 : index
    %c0_27 = arith.constant 0 : index
    %14 = vector.load %arg14[%c0_26, %c0_27] : memref<64x32xbf16, #tpu.memory_space<vmem>>, vector<64x32xbf16>
    %15 = arith.mulf %1, %1 : vector<8x32xf32>
    %cst = arith.constant dense<0.000000e+00> : vector<8xf32>
    %16 = vector.multi_reduction <add>, %15, %cst [1] : vector<8x32xf32> to vector<8xf32>
    %17 = vector.shape_cast %16 : vector<8xf32> to vector<8x1xf32>
    %cst_28 = arith.constant 3.200000e+01 : f32
    %18 = vector.broadcast %cst_28 : f32 to vector<8x1xf32>
    %19 = arith.divf %17, %18 : vector<8x1xf32>
    %cst_29 = arith.constant 1.1920929E-7 : f32
    %20 = vector.broadcast %cst_29 : f32 to vector<8x1xf32>
    %21 = arith.addf %19, %20 : vector<8x1xf32>
    %22 = math.rsqrt %21 : vector<8x1xf32>
    %23 = vector.broadcast %22 : vector<8x1xf32> to vector<8x32xf32>
    %24 = arith.mulf %1, %23 : vector<8x32xf32>
    %25 = vector.broadcast %9 : vector<1x32xf32> to vector<8x32xf32>
    %26 = arith.mulf %24, %25 : vector<8x32xf32>
    %27 = arith.truncf %26 : vector<8x32xf32> to vector<8x32xbf16>
    %cst_30 = arith.constant dense<0.000000e+00> : vector<8x96xf32>
    %28 = tpu.matmul %27, %10, %cst_30 {dimension_numbers = #tpu.dot_dimension_numbers<[1], [0], [0], [1], [0, 0, 1, 1], [], []>} : vector<8x32xbf16>, vector<32x96xbf16>, vector<8x96xf32> -> vector<8x96xf32>
    %29 = vector.extract_strided_slice %28 {offsets = [0, 0], sizes = [8, 64], strides = [1, 1]} : vector<8x96xf32> to vector<8x64xf32>
    %30 = vector.extract_strided_slice %28 {offsets = [0, 64], sizes = [8, 32], strides = [1, 1]} : vector<8x96xf32> to vector<8x32xf32>
    %31 = arith.mulf %30, %2 : vector<8x32xf32>
    %cst_31 = arith.constant dense<0.000000e+00> : vector<8x32xf32>
    %32 = tpu.matmul %30, %6, %cst_31 {dimension_numbers = #tpu.dot_dimension_numbers<[1], [0], [0], [1], [0, 0, 1, 1], [], []>} : vector<8x32xf32>, vector<32x32xf32>, vector<8x32xf32> -> vector<8x32xf32>
    %33 = arith.mulf %32, %3 : vector<8x32xf32>
    %34 = arith.addf %31, %33 : vector<8x32xf32>
    %cst_32 = arith.constant dense<0.000000e+00> : vector<8x40xf32>
    %35 = tpu.matmul %27, %11, %cst_32 {dimension_numbers = #tpu.dot_dimension_numbers<[1], [0], [0], [1], [0, 0, 1, 1], [], []>} : vector<8x32xbf16>, vector<32x40xbf16>, vector<8x40xf32> -> vector<8x40xf32>
    %36 = vector.extract_strided_slice %35 {offsets = [0, 0], sizes = [8, 32], strides = [1, 1]} : vector<8x40xf32> to vector<8x32xf32>
    %37 = vector.extract_strided_slice %35 {offsets = [0, 32], sizes = [8, 8], strides = [1, 1]} : vector<8x40xf32> to vector<8x8xf32>
    %38 = arith.mulf %37, %4 : vector<8x8xf32>
    %cst_33 = arith.constant dense<0.000000e+00> : vector<8x8xf32>
    %39 = tpu.matmul %37, %7, %cst_33 {dimension_numbers = #tpu.dot_dimension_numbers<[1], [0], [0], [1], [0, 0, 1, 1], [], []>} : vector<8x8xf32>, vector<8x8xf32>, vector<8x8xf32> -> vector<8x8xf32>
    %40 = arith.mulf %39, %5 : vector<8x8xf32>
    %41 = arith.addf %38, %40 : vector<8x8xf32>
    %42 = arith.mulf %36, %36 : vector<8x32xf32>
    %cst_34 = arith.constant dense<0.000000e+00> : vector<8xf32>
    %43 = vector.multi_reduction <add>, %42, %cst_34 [1] : vector<8x32xf32> to vector<8xf32>
    %44 = vector.shape_cast %43 : vector<8xf32> to vector<8x1xf32>
    %cst_35 = arith.constant 3.200000e+01 : f32
    %45 = vector.broadcast %cst_35 : f32 to vector<8x1xf32>
    %46 = arith.divf %44, %45 : vector<8x1xf32>
    %cst_36 = arith.constant 1.1920929E-7 : f32
    %47 = vector.broadcast %cst_36 : f32 to vector<8x1xf32>
    %48 = arith.addf %46, %47 : vector<8x1xf32>
    %49 = math.rsqrt %48 : vector<8x1xf32>
    %50 = vector.broadcast %49 : vector<8x1xf32> to vector<8x32xf32>
    %51 = arith.mulf %36, %50 : vector<8x32xf32>
    %52 = vector.broadcast %12 : vector<1x32xf32> to vector<8x32xf32>
    %53 = arith.mulf %51, %52 : vector<8x32xf32>
    %54 = arith.truncf %53 : vector<8x32xf32> to vector<8x32xbf16>
    %cst_37 = arith.constant dense<0.000000e+00> : vector<8x128xf32>
    %55 = tpu.matmul %54, %13, %cst_37 {dimension_numbers = #tpu.dot_dimension_numbers<[1], [0], [0], [1], [0, 0, 1, 1], [], []>} : vector<8x32xbf16>, vector<32x128xbf16>, vector<8x128xf32> -> vector<8x128xf32>
    %56 = vector.extract_strided_slice %55 {offsets = [0, 0], sizes = [8, 64], strides = [1, 1]} : vector<8x128xf32> to vector<8x64xf32>
    %57 = vector.extract_strided_slice %55 {offsets = [0, 64], sizes = [8, 64], strides = [1, 1]} : vector<8x128xf32> to vector<8x64xf32>
    %58 = vector.extract_strided_slice %29 {offsets = [0, 0], sizes = [8, 16], strides = [1, 1]} : vector<8x64xf32> to vector<8x16xf32>
    %59 = vector.extract_strided_slice %29 {offsets = [0, 16], sizes = [8, 16], strides = [1, 1]} : vector<8x64xf32> to vector<8x16xf32>
    %60 = vector.extract_strided_slice %29 {offsets = [0, 32], sizes = [8, 16], strides = [1, 1]} : vector<8x64xf32> to vector<8x16xf32>
    %61 = vector.extract_strided_slice %29 {offsets = [0, 48], sizes = [8, 16], strides = [1, 1]} : vector<8x64xf32> to vector<8x16xf32>
    %62 = tpu.concatenate %58, %59, %60, %61 in 0 : vector<8x16xf32>, vector<8x16xf32>, vector<8x16xf32>, vector<8x16xf32> -> vector<32x16xf32>
    %63 = vector.extract_strided_slice %34 {offsets = [0, 0], sizes = [8, 8], strides = [1, 1]} : vector<8x32xf32> to vector<8x8xf32>
    %64 = vector.extract_strided_slice %34 {offsets = [0, 8], sizes = [8, 8], strides = [1, 1]} : vector<8x32xf32> to vector<8x8xf32>
    %65 = vector.extract_strided_slice %34 {offsets = [0, 16], sizes = [8, 8], strides = [1, 1]} : vector<8x32xf32> to vector<8x8xf32>
    %66 = vector.extract_strided_slice %34 {offsets = [0, 24], sizes = [8, 8], strides = [1, 1]} : vector<8x32xf32> to vector<8x8xf32>
    %67 = tpu.concatenate %63, %64, %65, %66 in 0 : vector<8x8xf32>, vector<8x8xf32>, vector<8x8xf32>, vector<8x8xf32> -> vector<32x8xf32>
    %68 = vector.extract_strided_slice %56 {offsets = [0, 0], sizes = [8, 16], strides = [1, 1]} : vector<8x64xf32> to vector<8x16xf32>
    %69 = vector.extract_strided_slice %56 {offsets = [0, 16], sizes = [8, 16], strides = [1, 1]} : vector<8x64xf32> to vector<8x16xf32>
    %70 = vector.extract_strided_slice %56 {offsets = [0, 32], sizes = [8, 16], strides = [1, 1]} : vector<8x64xf32> to vector<8x16xf32>
    %71 = vector.extract_strided_slice %56 {offsets = [0, 48], sizes = [8, 16], strides = [1, 1]} : vector<8x64xf32> to vector<8x16xf32>
    %72 = tpu.concatenate %68, %69, %70, %71 in 0 : vector<8x16xf32>, vector<8x16xf32>, vector<8x16xf32>, vector<8x16xf32> -> vector<32x16xf32>
    %73 = tpu.concatenate %41, %41, %41, %41 in 0 : vector<8x8xf32>, vector<8x8xf32>, vector<8x8xf32>, vector<8x8xf32> -> vector<32x8xf32>
    %74 = vector.extract_strided_slice %57 {offsets = [0, 0], sizes = [8, 16], strides = [1, 1]} : vector<8x64xf32> to vector<8x16xf32>
    %75 = vector.extract_strided_slice %57 {offsets = [0, 16], sizes = [8, 16], strides = [1, 1]} : vector<8x64xf32> to vector<8x16xf32>
    %76 = vector.extract_strided_slice %57 {offsets = [0, 32], sizes = [8, 16], strides = [1, 1]} : vector<8x64xf32> to vector<8x16xf32>
    %77 = vector.extract_strided_slice %57 {offsets = [0, 48], sizes = [8, 16], strides = [1, 1]} : vector<8x64xf32> to vector<8x16xf32>
    %78 = tpu.concatenate %74, %75, %76, %77 in 0 : vector<8x16xf32>, vector<8x16xf32>, vector<8x16xf32>, vector<8x16xf32> -> vector<32x16xf32>
    %79 = arith.truncf %62 : vector<32x16xf32> to vector<32x16xbf16>
    %80 = arith.truncf %72 : vector<32x16xf32> to vector<32x16xbf16>
    %cst_38 = arith.constant dense<0.000000e+00> : vector<32x32xf32>
    %81 = tpu.matmul %79, %80, %cst_38 {dimension_numbers = #tpu.dot_dimension_numbers<[1], [1], [0], [0], [0, 0, 1, 0], [], []>} : vector<32x16xbf16>, vector<32x16xbf16>, vector<32x32xf32> -> vector<32x32xf32>
    %82 = arith.truncf %67 : vector<32x8xf32> to vector<32x8xbf16>
    %83 = arith.truncf %73 : vector<32x8xf32> to vector<32x8xbf16>
    %cst_39 = arith.constant dense<0.000000e+00> : vector<32x32xf32>
    %84 = tpu.matmul %82, %83, %cst_39 {dimension_numbers = #tpu.dot_dimension_numbers<[1], [1], [0], [0], [0, 0, 1, 0], [], []>} : vector<32x8xbf16>, vector<32x8xbf16>, vector<32x32xf32> -> vector<32x32xf32>
    %85 = arith.addf %81, %84 : vector<32x32xf32>
    %86 = arith.addf %85, %8 : vector<32x32xf32>
    %cst_40 = arith.constant dense<0xFF800000> : vector<32xf32>
    %87 = vector.multi_reduction <maximumf>, %86, %cst_40 [1] : vector<32x32xf32> to vector<32xf32>
    %88 = vector.shape_cast %87 : vector<32xf32> to vector<32x1xf32>
    %89 = vector.broadcast %88 : vector<32x1xf32> to vector<32x32xf32>
    %90 = arith.subf %86, %89 : vector<32x32xf32>
    %91 = math.exp %90 : vector<32x32xf32>
    %cst_41 = arith.constant dense<0.000000e+00> : vector<32xf32>
    %92 = vector.multi_reduction <add>, %91, %cst_41 [1] : vector<32x32xf32> to vector<32xf32>
    %93 = vector.shape_cast %92 : vector<32xf32> to vector<32x1xf32>
    %94 = tpu.reciprocal %93 {approx = true} : vector<32x1xf32> -> vector<32x1xf32>
    %95 = vector.broadcast %94 : vector<32x1xf32> to vector<32x32xf32>
    %96 = arith.mulf %91, %95 : vector<32x32xf32>
    %97 = arith.truncf %96 : vector<32x32xf32> to vector<32x32xbf16>
    %98 = arith.truncf %78 : vector<32x16xf32> to vector<32x16xbf16>
    %cst_42 = arith.constant dense<0.000000e+00> : vector<32x16xf32>
    %99 = tpu.matmul %97, %98, %cst_42 {dimension_numbers = #tpu.dot_dimension_numbers<[1], [0], [0], [1], [0, 0, 1, 1], [], []>} : vector<32x32xbf16>, vector<32x16xbf16>, vector<32x16xf32> -> vector<32x16xf32>
    %100 = vector.extract_strided_slice %99 {offsets = [0, 0], sizes = [8, 16], strides = [1, 1]} : vector<32x16xf32> to vector<8x16xf32>
    %101 = vector.extract_strided_slice %99 {offsets = [8, 0], sizes = [8, 16], strides = [1, 1]} : vector<32x16xf32> to vector<8x16xf32>
    %102 = vector.extract_strided_slice %99 {offsets = [16, 0], sizes = [8, 16], strides = [1, 1]} : vector<32x16xf32> to vector<8x16xf32>
    %103 = vector.extract_strided_slice %99 {offsets = [24, 0], sizes = [8, 16], strides = [1, 1]} : vector<32x16xf32> to vector<8x16xf32>
    %104 = tpu.concatenate %100, %101, %102, %103 in 1 : vector<8x16xf32>, vector<8x16xf32>, vector<8x16xf32>, vector<8x16xf32> -> vector<8x64xf32>
    %105 = arith.truncf %104 : vector<8x64xf32> to vector<8x64xbf16>
    %cst_43 = arith.constant dense<0.000000e+00> : vector<8x32xf32>
    %106 = tpu.matmul %105, %14, %cst_43 {dimension_numbers = #tpu.dot_dimension_numbers<[1], [0], [0], [1], [0, 0, 1, 1], [], []>} : vector<8x64xbf16>, vector<64x32xbf16>, vector<8x32xf32> -> vector<8x32xf32>
    %107 = arith.addf %1, %106 : vector<8x32xf32>
    %c0_44 = arith.constant 0 : index
    %c0_45 = arith.constant 0 : index
    %108 = vector.load %arg15[%c0_44, %c0_45] : memref<1x32xf32, #tpu.memory_space<vmem>>, vector<1x32xf32>
    %109 = arith.mulf %107, %107 : vector<8x32xf32>
    %cst_46 = arith.constant dense<0.000000e+00> : vector<8xf32>
    %110 = vector.multi_reduction <add>, %109, %cst_46 [1] : vector<8x32xf32> to vector<8xf32>
    %111 = vector.shape_cast %110 : vector<8xf32> to vector<8x1xf32>
    %cst_47 = arith.constant 3.200000e+01 : f32
    %112 = vector.broadcast %cst_47 : f32 to vector<8x1xf32>
    %113 = arith.divf %111, %112 : vector<8x1xf32>
    %cst_48 = arith.constant 1.1920929E-7 : f32
    %114 = vector.broadcast %cst_48 : f32 to vector<8x1xf32>
    %115 = arith.addf %113, %114 : vector<8x1xf32>
    %116 = math.rsqrt %115 : vector<8x1xf32>
    %117 = vector.broadcast %116 : vector<8x1xf32> to vector<8x32xf32>
    %118 = arith.mulf %107, %117 : vector<8x32xf32>
    %119 = vector.broadcast %108 : vector<1x32xf32> to vector<8x32xf32>
    %120 = arith.mulf %118, %119 : vector<8x32xf32>
    %121 = arith.truncf %120 : vector<8x32xf32> to vector<8x32xbf16>
    %c0_49 = arith.constant 0 : index
    %c0_50 = arith.constant 0 : index
    %122 = vector.load %arg16[%c0_49, %c0_50] : memref<32x64xbf16, #tpu.memory_space<vmem>>, vector<32x64xbf16>
    %c0_51 = arith.constant 0 : index
    %c0_52 = arith.constant 0 : index
    %123 = vector.load %arg17[%c0_51, %c0_52] : memref<32x64xbf16, #tpu.memory_space<vmem>>, vector<32x64xbf16>
    %c0_53 = arith.constant 0 : index
    %c0_54 = arith.constant 0 : index
    %124 = vector.load %arg18[%c0_53, %c0_54] : memref<64x32xbf16, #tpu.memory_space<vmem>>, vector<64x32xbf16>
    %cst_55 = arith.constant dense<0.000000e+00> : vector<8x64xf32>
    %125 = tpu.matmul %121, %122, %cst_55 {dimension_numbers = #tpu.dot_dimension_numbers<[1], [0], [0], [1], [0, 0, 1, 1], [], []>} : vector<8x32xbf16>, vector<32x64xbf16>, vector<8x64xf32> -> vector<8x64xf32>
    %cst_56 = arith.constant dense<0.000000e+00> : vector<8x64xf32>
    %126 = tpu.matmul %121, %123, %cst_56 {dimension_numbers = #tpu.dot_dimension_numbers<[1], [0], [0], [1], [0, 0, 1, 1], [], []>} : vector<8x32xbf16>, vector<32x64xbf16>, vector<8x64xf32> -> vector<8x64xf32>
    %127 = arith.negf %125 : vector<8x64xf32>
    %128 = math.exp %127 : vector<8x64xf32>
    %cst_57 = arith.constant 1.000000e+00 : f32
    %129 = vector.broadcast %cst_57 : f32 to vector<8x64xf32>
    %130 = arith.addf %129, %128 : vector<8x64xf32>
    %131 = arith.divf %129, %130 : vector<8x64xf32>
    %132 = arith.mulf %125, %131 : vector<8x64xf32>
    %133 = arith.mulf %132, %126 : vector<8x64xf32>
    %134 = arith.truncf %133 : vector<8x64xf32> to vector<8x64xbf16>
    %cst_58 = arith.constant dense<0.000000e+00> : vector<8x32xf32>
    %135 = tpu.matmul %134, %124, %cst_58 {dimension_numbers = #tpu.dot_dimension_numbers<[1], [0], [0], [1], [0, 0, 1, 1], [], []>} : vector<8x64xbf16>, vector<64x32xbf16>, vector<8x32xf32> -> vector<8x32xf32>
    %136 = arith.addf %107, %135 : vector<8x32xf32>
    %c0_59 = arith.constant 0 : index
    %c0_60 = arith.constant 0 : index
    %137 = vector.load %arg19[%c0_59, %c0_60] : memref<1x32xf32, #tpu.memory_space<vmem>>, vector<1x32xf32>
    %c0_61 = arith.constant 0 : index
    %c0_62 = arith.constant 0 : index
    %138 = vector.load %arg20[%c0_61, %c0_62] : memref<32x96xbf16, #tpu.memory_space<vmem>>, vector<32x96xbf16>
    %c0_63 = arith.constant 0 : index
    %c0_64 = arith.constant 0 : index
    %139 = vector.load %arg21[%c0_63, %c0_64] : memref<32x40xbf16, #tpu.memory_space<vmem>>, vector<32x40xbf16>
    %c0_65 = arith.constant 0 : index
    %c0_66 = arith.constant 0 : index
    %140 = vector.load %arg22[%c0_65, %c0_66] : memref<1x32xf32, #tpu.memory_space<vmem>>, vector<1x32xf32>
    %c0_67 = arith.constant 0 : index
    %c0_68 = arith.constant 0 : index
    %141 = vector.load %arg23[%c0_67, %c0_68] : memref<32x128xbf16, #tpu.memory_space<vmem>>, vector<32x128xbf16>
    %c0_69 = arith.constant 0 : index
    %c0_70 = arith.constant 0 : index
    %142 = vector.load %arg24[%c0_69, %c0_70] : memref<64x32xbf16, #tpu.memory_space<vmem>>, vector<64x32xbf16>
    %143 = arith.mulf %136, %136 : vector<8x32xf32>
    %cst_71 = arith.constant dense<0.000000e+00> : vector<8xf32>
    %144 = vector.multi_reduction <add>, %143, %cst_71 [1] : vector<8x32xf32> to vector<8xf32>
    %145 = vector.shape_cast %144 : vector<8xf32> to vector<8x1xf32>
    %cst_72 = arith.constant 3.200000e+01 : f32
    %146 = vector.broadcast %cst_72 : f32 to vector<8x1xf32>
    %147 = arith.divf %145, %146 : vector<8x1xf32>
    %cst_73 = arith.constant 1.1920929E-7 : f32
    %148 = vector.broadcast %cst_73 : f32 to vector<8x1xf32>
    %149 = arith.addf %147, %148 : vector<8x1xf32>
    %150 = math.rsqrt %149 : vector<8x1xf32>
    %151 = vector.broadcast %150 : vector<8x1xf32> to vector<8x32xf32>
    %152 = arith.mulf %136, %151 : vector<8x32xf32>
    %153 = vector.broadcast %137 : vector<1x32xf32> to vector<8x32xf32>
    %154 = arith.mulf %152, %153 : vector<8x32xf32>
    %155 = arith.truncf %154 : vector<8x32xf32> to vector<8x32xbf16>
    %cst_74 = arith.constant dense<0.000000e+00> : vector<8x96xf32>
    %156 = tpu.matmul %155, %138, %cst_74 {dimension_numbers = #tpu.dot_dimension_numbers<[1], [0], [0], [1], [0, 0, 1, 1], [], []>} : vector<8x32xbf16>, vector<32x96xbf16>, vector<8x96xf32> -> vector<8x96xf32>
    %157 = vector.extract_strided_slice %156 {offsets = [0, 0], sizes = [8, 64], strides = [1, 1]} : vector<8x96xf32> to vector<8x64xf32>
    %158 = vector.extract_strided_slice %156 {offsets = [0, 64], sizes = [8, 32], strides = [1, 1]} : vector<8x96xf32> to vector<8x32xf32>
    %159 = arith.mulf %158, %2 : vector<8x32xf32>
    %cst_75 = arith.constant dense<0.000000e+00> : vector<8x32xf32>
    %160 = tpu.matmul %158, %6, %cst_75 {dimension_numbers = #tpu.dot_dimension_numbers<[1], [0], [0], [1], [0, 0, 1, 1], [], []>} : vector<8x32xf32>, vector<32x32xf32>, vector<8x32xf32> -> vector<8x32xf32>
    %161 = arith.mulf %160, %3 : vector<8x32xf32>
    %162 = arith.addf %159, %161 : vector<8x32xf32>
    %cst_76 = arith.constant dense<0.000000e+00> : vector<8x40xf32>
    %163 = tpu.matmul %155, %139, %cst_76 {dimension_numbers = #tpu.dot_dimension_numbers<[1], [0], [0], [1], [0, 0, 1, 1], [], []>} : vector<8x32xbf16>, vector<32x40xbf16>, vector<8x40xf32> -> vector<8x40xf32>
    %164 = vector.extract_strided_slice %163 {offsets = [0, 0], sizes = [8, 32], strides = [1, 1]} : vector<8x40xf32> to vector<8x32xf32>
    %165 = vector.extract_strided_slice %163 {offsets = [0, 32], sizes = [8, 8], strides = [1, 1]} : vector<8x40xf32> to vector<8x8xf32>
    %166 = arith.mulf %165, %4 : vector<8x8xf32>
    %cst_77 = arith.constant dense<0.000000e+00> : vector<8x8xf32>
    %167 = tpu.matmul %165, %7, %cst_77 {dimension_numbers = #tpu.dot_dimension_numbers<[1], [0], [0], [1], [0, 0, 1, 1], [], []>} : vector<8x8xf32>, vector<8x8xf32>, vector<8x8xf32> -> vector<8x8xf32>
    %168 = arith.mulf %167, %5 : vector<8x8xf32>
    %169 = arith.addf %166, %168 : vector<8x8xf32>
    %170 = arith.mulf %164, %164 : vector<8x32xf32>
    %cst_78 = arith.constant dense<0.000000e+00> : vector<8xf32>
    %171 = vector.multi_reduction <add>, %170, %cst_78 [1] : vector<8x32xf32> to vector<8xf32>
    %172 = vector.shape_cast %171 : vector<8xf32> to vector<8x1xf32>
    %cst_79 = arith.constant 3.200000e+01 : f32
    %173 = vector.broadcast %cst_79 : f32 to vector<8x1xf32>
    %174 = arith.divf %172, %173 : vector<8x1xf32>
    %cst_80 = arith.constant 1.1920929E-7 : f32
    %175 = vector.broadcast %cst_80 : f32 to vector<8x1xf32>
    %176 = arith.addf %174, %175 : vector<8x1xf32>
    %177 = math.rsqrt %176 : vector<8x1xf32>
    %178 = vector.broadcast %177 : vector<8x1xf32> to vector<8x32xf32>
    %179 = arith.mulf %164, %178 : vector<8x32xf32>
    %180 = vector.broadcast %140 : vector<1x32xf32> to vector<8x32xf32>
    %181 = arith.mulf %179, %180 : vector<8x32xf32>
    %182 = arith.truncf %181 : vector<8x32xf32> to vector<8x32xbf16>
    %cst_81 = arith.constant dense<0.000000e+00> : vector<8x128xf32>
    %183 = tpu.matmul %182, %141, %cst_81 {dimension_numbers = #tpu.dot_dimension_numbers<[1], [0], [0], [1], [0, 0, 1, 1], [], []>} : vector<8x32xbf16>, vector<32x128xbf16>, vector<8x128xf32> -> vector<8x128xf32>
    %184 = vector.extract_strided_slice %183 {offsets = [0, 0], sizes = [8, 64], strides = [1, 1]} : vector<8x128xf32> to vector<8x64xf32>
    %185 = vector.extract_strided_slice %183 {offsets = [0, 64], sizes = [8, 64], strides = [1, 1]} : vector<8x128xf32> to vector<8x64xf32>
    %186 = vector.extract_strided_slice %157 {offsets = [0, 0], sizes = [8, 16], strides = [1, 1]} : vector<8x64xf32> to vector<8x16xf32>
    %187 = vector.extract_strided_slice %157 {offsets = [0, 16], sizes = [8, 16], strides = [1, 1]} : vector<8x64xf32> to vector<8x16xf32>
    %188 = vector.extract_strided_slice %157 {offsets = [0, 32], sizes = [8, 16], strides = [1, 1]} : vector<8x64xf32> to vector<8x16xf32>
    %189 = vector.extract_strided_slice %157 {offsets = [0, 48], sizes = [8, 16], strides = [1, 1]} : vector<8x64xf32> to vector<8x16xf32>
    %190 = tpu.concatenate %186, %187, %188, %189 in 0 : vector<8x16xf32>, vector<8x16xf32>, vector<8x16xf32>, vector<8x16xf32> -> vector<32x16xf32>
    %191 = vector.extract_strided_slice %162 {offsets = [0, 0], sizes = [8, 8], strides = [1, 1]} : vector<8x32xf32> to vector<8x8xf32>
    %192 = vector.extract_strided_slice %162 {offsets = [0, 8], sizes = [8, 8], strides = [1, 1]} : vector<8x32xf32> to vector<8x8xf32>
    %193 = vector.extract_strided_slice %162 {offsets = [0, 16], sizes = [8, 8], strides = [1, 1]} : vector<8x32xf32> to vector<8x8xf32>
    %194 = vector.extract_strided_slice %162 {offsets = [0, 24], sizes = [8, 8], strides = [1, 1]} : vector<8x32xf32> to vector<8x8xf32>
    %195 = tpu.concatenate %191, %192, %193, %194 in 0 : vector<8x8xf32>, vector<8x8xf32>, vector<8x8xf32>, vector<8x8xf32> -> vector<32x8xf32>
    %196 = vector.extract_strided_slice %184 {offsets = [0, 0], sizes = [8, 16], strides = [1, 1]} : vector<8x64xf32> to vector<8x16xf32>
    %197 = vector.extract_strided_slice %184 {offsets = [0, 16], sizes = [8, 16], strides = [1, 1]} : vector<8x64xf32> to vector<8x16xf32>
    %198 = vector.extract_strided_slice %184 {offsets = [0, 32], sizes = [8, 16], strides = [1, 1]} : vector<8x64xf32> to vector<8x16xf32>
    %199 = vector.extract_strided_slice %184 {offsets = [0, 48], sizes = [8, 16], strides = [1, 1]} : vector<8x64xf32> to vector<8x16xf32>
    %200 = tpu.concatenate %196, %197, %198, %199 in 0 : vector<8x16xf32>, vector<8x16xf32>, vector<8x16xf32>, vector<8x16xf32> -> vector<32x16xf32>
    %201 = tpu.concatenate %169, %169, %169, %169 in 0 : vector<8x8xf32>, vector<8x8xf32>, vector<8x8xf32>, vector<8x8xf32> -> vector<32x8xf32>
    %202 = vector.extract_strided_slice %185 {offsets = [0, 0], sizes = [8, 16], strides = [1, 1]} : vector<8x64xf32> to vector<8x16xf32>
    %203 = vector.extract_strided_slice %185 {offsets = [0, 16], sizes = [8, 16], strides = [1, 1]} : vector<8x64xf32> to vector<8x16xf32>
    %204 = vector.extract_strided_slice %185 {offsets = [0, 32], sizes = [8, 16], strides = [1, 1]} : vector<8x64xf32> to vector<8x16xf32>
    %205 = vector.extract_strided_slice %185 {offsets = [0, 48], sizes = [8, 16], strides = [1, 1]} : vector<8x64xf32> to vector<8x16xf32>
    %206 = tpu.concatenate %202, %203, %204, %205 in 0 : vector<8x16xf32>, vector<8x16xf32>, vector<8x16xf32>, vector<8x16xf32> -> vector<32x16xf32>
    %207 = arith.truncf %190 : vector<32x16xf32> to vector<32x16xbf16>
    %208 = arith.truncf %200 : vector<32x16xf32> to vector<32x16xbf16>
    %cst_82 = arith.constant dense<0.000000e+00> : vector<32x32xf32>
    %209 = tpu.matmul %207, %208, %cst_82 {dimension_numbers = #tpu.dot_dimension_numbers<[1], [1], [0], [0], [0, 0, 1, 0], [], []>} : vector<32x16xbf16>, vector<32x16xbf16>, vector<32x32xf32> -> vector<32x32xf32>
    %210 = arith.truncf %195 : vector<32x8xf32> to vector<32x8xbf16>
    %211 = arith.truncf %201 : vector<32x8xf32> to vector<32x8xbf16>
    %cst_83 = arith.constant dense<0.000000e+00> : vector<32x32xf32>
    %212 = tpu.matmul %210, %211, %cst_83 {dimension_numbers = #tpu.dot_dimension_numbers<[1], [1], [0], [0], [0, 0, 1, 0], [], []>} : vector<32x8xbf16>, vector<32x8xbf16>, vector<32x32xf32> -> vector<32x32xf32>
    %213 = arith.addf %209, %212 : vector<32x32xf32>
    %214 = arith.addf %213, %8 : vector<32x32xf32>
    %cst_84 = arith.constant dense<0xFF800000> : vector<32xf32>
    %215 = vector.multi_reduction <maximumf>, %214, %cst_84 [1] : vector<32x32xf32> to vector<32xf32>
    %216 = vector.shape_cast %215 : vector<32xf32> to vector<32x1xf32>
    %217 = vector.broadcast %216 : vector<32x1xf32> to vector<32x32xf32>
    %218 = arith.subf %214, %217 : vector<32x32xf32>
    %219 = math.exp %218 : vector<32x32xf32>
    %cst_85 = arith.constant dense<0.000000e+00> : vector<32xf32>
    %220 = vector.multi_reduction <add>, %219, %cst_85 [1] : vector<32x32xf32> to vector<32xf32>
    %221 = vector.shape_cast %220 : vector<32xf32> to vector<32x1xf32>
    %222 = tpu.reciprocal %221 {approx = true} : vector<32x1xf32> -> vector<32x1xf32>
    %223 = vector.broadcast %222 : vector<32x1xf32> to vector<32x32xf32>
    %224 = arith.mulf %219, %223 : vector<32x32xf32>
    %225 = arith.truncf %224 : vector<32x32xf32> to vector<32x32xbf16>
    %226 = arith.truncf %206 : vector<32x16xf32> to vector<32x16xbf16>
    %cst_86 = arith.constant dense<0.000000e+00> : vector<32x16xf32>
    %227 = tpu.matmul %225, %226, %cst_86 {dimension_numbers = #tpu.dot_dimension_numbers<[1], [0], [0], [1], [0, 0, 1, 1], [], []>} : vector<32x32xbf16>, vector<32x16xbf16>, vector<32x16xf32> -> vector<32x16xf32>
    %228 = vector.extract_strided_slice %227 {offsets = [0, 0], sizes = [8, 16], strides = [1, 1]} : vector<32x16xf32> to vector<8x16xf32>
    %229 = vector.extract_strided_slice %227 {offsets = [8, 0], sizes = [8, 16], strides = [1, 1]} : vector<32x16xf32> to vector<8x16xf32>
    %230 = vector.extract_strided_slice %227 {offsets = [16, 0], sizes = [8, 16], strides = [1, 1]} : vector<32x16xf32> to vector<8x16xf32>
    %231 = vector.extract_strided_slice %227 {offsets = [24, 0], sizes = [8, 16], strides = [1, 1]} : vector<32x16xf32> to vector<8x16xf32>
    %232 = tpu.concatenate %228, %229, %230, %231 in 1 : vector<8x16xf32>, vector<8x16xf32>, vector<8x16xf32>, vector<8x16xf32> -> vector<8x64xf32>
    %233 = arith.truncf %232 : vector<8x64xf32> to vector<8x64xbf16>
    %cst_87 = arith.constant dense<0.000000e+00> : vector<8x32xf32>
    %234 = tpu.matmul %233, %142, %cst_87 {dimension_numbers = #tpu.dot_dimension_numbers<[1], [0], [0], [1], [0, 0, 1, 1], [], []>} : vector<8x64xbf16>, vector<64x32xbf16>, vector<8x32xf32> -> vector<8x32xf32>
    %235 = arith.addf %136, %234 : vector<8x32xf32>
    %c0_88 = arith.constant 0 : index
    %c0_89 = arith.constant 0 : index
    %236 = vector.load %arg25[%c0_88, %c0_89] : memref<1x32xf32, #tpu.memory_space<vmem>>, vector<1x32xf32>
    %237 = arith.mulf %235, %235 : vector<8x32xf32>
    %cst_90 = arith.constant dense<0.000000e+00> : vector<8xf32>
    %238 = vector.multi_reduction <add>, %237, %cst_90 [1] : vector<8x32xf32> to vector<8xf32>
    %239 = vector.shape_cast %238 : vector<8xf32> to vector<8x1xf32>
    %cst_91 = arith.constant 3.200000e+01 : f32
    %240 = vector.broadcast %cst_91 : f32 to vector<8x1xf32>
    %241 = arith.divf %239, %240 : vector<8x1xf32>
    %cst_92 = arith.constant 1.1920929E-7 : f32
    %242 = vector.broadcast %cst_92 : f32 to vector<8x1xf32>
    %243 = arith.addf %241, %242 : vector<8x1xf32>
    %244 = math.rsqrt %243 : vector<8x1xf32>
    %245 = vector.broadcast %244 : vector<8x1xf32> to vector<8x32xf32>
    %246 = arith.mulf %235, %245 : vector<8x32xf32>
    %247 = vector.broadcast %236 : vector<1x32xf32> to vector<8x32xf32>
    %248 = arith.mulf %246, %247 : vector<8x32xf32>
    %249 = arith.truncf %248 : vector<8x32xf32> to vector<8x32xbf16>
    %c0_93 = arith.constant 0 : index
    %c0_94 = arith.constant 0 : index
    %250 = vector.load %arg26[%c0_93, %c0_94] : memref<32x4xbf16, #tpu.memory_space<vmem>>, vector<32x4xbf16>
    %c0_95 = arith.constant 0 : index
    %c0_96 = arith.constant 0 : index
    %251 = vector.load %arg27[%c0_95, %c0_96] : memref<32x160xbf16, #tpu.memory_space<vmem>>, vector<32x160xbf16>
    %c0_97 = arith.constant 0 : index
    %c0_98 = arith.constant 0 : index
    %252 = vector.load %arg28[%c0_97, %c0_98] : memref<32x160xbf16, #tpu.memory_space<vmem>>, vector<32x160xbf16>
    %c0_99 = arith.constant 0 : index
    %c0_100 = arith.constant 0 : index
    %253 = vector.load %arg29[%c0_99, %c0_100] : memref<160x32xbf16, #tpu.memory_space<vmem>>, vector<160x32xbf16>
    %cst_101 = arith.constant dense<0.000000e+00> : vector<8x4xf32>
    %254 = tpu.matmul %249, %250, %cst_101 {dimension_numbers = #tpu.dot_dimension_numbers<[1], [0], [0], [1], [0, 0, 1, 1], [], []>} : vector<8x32xbf16>, vector<32x4xbf16>, vector<8x4xf32> -> vector<8x4xf32>
    %cst_102 = arith.constant dense<0xFF800000> : vector<8xf32>
    %255 = vector.multi_reduction <maximumf>, %254, %cst_102 [1] : vector<8x4xf32> to vector<8xf32>
    %256 = vector.shape_cast %255 : vector<8xf32> to vector<8x1xf32>
    %257 = vector.broadcast %256 : vector<8x1xf32> to vector<8x4xf32>
    %258 = arith.subf %254, %257 : vector<8x4xf32>
    %259 = math.exp %258 : vector<8x4xf32>
    %cst_103 = arith.constant dense<0.000000e+00> : vector<8xf32>
    %260 = vector.multi_reduction <add>, %259, %cst_103 [1] : vector<8x4xf32> to vector<8xf32>
    %261 = vector.shape_cast %260 : vector<8xf32> to vector<8x1xf32>
    %262 = tpu.reciprocal %261 : vector<8x1xf32> -> vector<8x1xf32>
    %263 = vector.broadcast %262 : vector<8x1xf32> to vector<8x4xf32>
    %264 = arith.mulf %259, %263 : vector<8x4xf32>
    %cst_104 = arith.constant dense<0xFF800000> : vector<8xf32>
    %265 = vector.multi_reduction <maximumf>, %264, %cst_104 [1] : vector<8x4xf32> to vector<8xf32>
    %266 = vector.shape_cast %265 : vector<8xf32> to vector<8x1xf32>
    %267 = vector.broadcast %266 : vector<8x1xf32> to vector<8x4xf32>
    %268 = arith.cmpf oge, %264, %267 : vector<8x4xf32>
    %cst_105 = arith.constant 0xFF800000 : f32
    %269 = vector.broadcast %cst_105 : f32 to vector<8x4xf32>
    %270 = arith.select %268, %269, %264 : vector<8x4xi1>, vector<8x4xf32>
    %cst_106 = arith.constant dense<0xFF800000> : vector<8xf32>
    %271 = vector.multi_reduction <maximumf>, %270, %cst_106 [1] : vector<8x4xf32> to vector<8xf32>
    %272 = vector.shape_cast %271 : vector<8xf32> to vector<8x1xf32>
    %273 = vector.broadcast %272 : vector<8x1xf32> to vector<8x4xf32>
    %274 = arith.cmpf oge, %264, %273 : vector<8x4xf32>
    %cst_107 = arith.constant 0.000000e+00 : f32
    %275 = vector.broadcast %cst_107 : f32 to vector<8x4xf32>
    %276 = arith.select %274, %264, %275 : vector<8x4xi1>, vector<8x4xf32>
    %cst_108 = arith.constant 1.000000e+00 : f32
    %277 = vector.broadcast %cst_108 : f32 to vector<8x4xf32>
    %278 = arith.mulf %276, %277 : vector<8x4xf32>
    %279 = tpu.iota {dimensions = array<i32: 1>} : vector<8x160xi32>
    %cst_109 = arith.constant 1.000000e+00 : f32
    %280 = vector.broadcast %cst_109 : f32 to vector<8x160xf32>
    %c0_i32 = arith.constant 0 : i32
    %281 = vector.broadcast %c0_i32 : i32 to vector<8x160xi32>
    %282 = arith.cmpi sge, %279, %281 : vector<8x160xi32>
    %c32_i32 = arith.constant 32 : i32
    %283 = vector.broadcast %c32_i32 : i32 to vector<8x160xi32>
    %284 = arith.cmpi slt, %279, %283 : vector<8x160xi32>
    %285 = arith.andi %282, %284 : vector<8x160xi1>
    %286 = vector.extract_strided_slice %278 {offsets = [0, 0], sizes = [8, 1], strides = [1, 1]} : vector<8x4xf32> to vector<8x1xf32>
    %287 = vector.shape_cast %286 : vector<8x1xf32> to vector<8x1xf32>
    %288 = vector.broadcast %287 : vector<8x1xf32> to vector<8x160xf32>
    %289 = arith.select %285, %288, %280 : vector<8x160xi1>, vector<8x160xf32>
    %c32_i32_110 = arith.constant 32 : i32
    %290 = vector.broadcast %c32_i32_110 : i32 to vector<8x160xi32>
    %291 = arith.cmpi sge, %279, %290 : vector<8x160xi32>
    %c64_i32 = arith.constant 64 : i32
    %292 = vector.broadcast %c64_i32 : i32 to vector<8x160xi32>
    %293 = arith.cmpi slt, %279, %292 : vector<8x160xi32>
    %294 = arith.andi %291, %293 : vector<8x160xi1>
    %295 = vector.extract_strided_slice %278 {offsets = [0, 1], sizes = [8, 1], strides = [1, 1]} : vector<8x4xf32> to vector<8x1xf32>
    %296 = vector.shape_cast %295 : vector<8x1xf32> to vector<8x1xf32>
    %297 = vector.broadcast %296 : vector<8x1xf32> to vector<8x160xf32>
    %298 = arith.select %294, %297, %289 : vector<8x160xi1>, vector<8x160xf32>
    %c64_i32_111 = arith.constant 64 : i32
    %299 = vector.broadcast %c64_i32_111 : i32 to vector<8x160xi32>
    %300 = arith.cmpi sge, %279, %299 : vector<8x160xi32>
    %c96_i32 = arith.constant 96 : i32
    %301 = vector.broadcast %c96_i32 : i32 to vector<8x160xi32>
    %302 = arith.cmpi slt, %279, %301 : vector<8x160xi32>
    %303 = arith.andi %300, %302 : vector<8x160xi1>
    %304 = vector.extract_strided_slice %278 {offsets = [0, 2], sizes = [8, 1], strides = [1, 1]} : vector<8x4xf32> to vector<8x1xf32>
    %305 = vector.shape_cast %304 : vector<8x1xf32> to vector<8x1xf32>
    %306 = vector.broadcast %305 : vector<8x1xf32> to vector<8x160xf32>
    %307 = arith.select %303, %306, %298 : vector<8x160xi1>, vector<8x160xf32>
    %c96_i32_112 = arith.constant 96 : i32
    %308 = vector.broadcast %c96_i32_112 : i32 to vector<8x160xi32>
    %309 = arith.cmpi sge, %279, %308 : vector<8x160xi32>
    %c128_i32 = arith.constant 128 : i32
    %310 = vector.broadcast %c128_i32 : i32 to vector<8x160xi32>
    %311 = arith.cmpi slt, %279, %310 : vector<8x160xi32>
    %312 = arith.andi %309, %311 : vector<8x160xi1>
    %313 = vector.extract_strided_slice %278 {offsets = [0, 3], sizes = [8, 1], strides = [1, 1]} : vector<8x4xf32> to vector<8x1xf32>
    %314 = vector.shape_cast %313 : vector<8x1xf32> to vector<8x1xf32>
    %315 = vector.broadcast %314 : vector<8x1xf32> to vector<8x160xf32>
    %316 = arith.select %312, %315, %307 : vector<8x160xi1>, vector<8x160xf32>
    %cst_113 = arith.constant dense<0.000000e+00> : vector<8x160xf32>
    %317 = tpu.matmul %249, %251, %cst_113 {dimension_numbers = #tpu.dot_dimension_numbers<[1], [0], [0], [1], [0, 0, 1, 1], [], []>} : vector<8x32xbf16>, vector<32x160xbf16>, vector<8x160xf32> -> vector<8x160xf32>
    %cst_114 = arith.constant dense<0.000000e+00> : vector<8x160xf32>
    %318 = tpu.matmul %249, %252, %cst_114 {dimension_numbers = #tpu.dot_dimension_numbers<[1], [0], [0], [1], [0, 0, 1, 1], [], []>} : vector<8x32xbf16>, vector<32x160xbf16>, vector<8x160xf32> -> vector<8x160xf32>
    %319 = arith.negf %317 : vector<8x160xf32>
    %320 = math.exp %319 : vector<8x160xf32>
    %cst_115 = arith.constant 1.000000e+00 : f32
    %321 = vector.broadcast %cst_115 : f32 to vector<8x160xf32>
    %322 = arith.addf %321, %320 : vector<8x160xf32>
    %323 = arith.divf %321, %322 : vector<8x160xf32>
    %324 = arith.mulf %317, %323 : vector<8x160xf32>
    %325 = arith.mulf %324, %318 : vector<8x160xf32>
    %326 = arith.mulf %325, %316 : vector<8x160xf32>
    %327 = arith.truncf %326 : vector<8x160xf32> to vector<8x160xbf16>
    %cst_116 = arith.constant dense<0.000000e+00> : vector<8x32xf32>
    %328 = tpu.matmul %327, %253, %cst_116 {dimension_numbers = #tpu.dot_dimension_numbers<[1], [0], [0], [1], [0, 0, 1, 1], [], []>} : vector<8x160xbf16>, vector<160x32xbf16>, vector<8x32xf32> -> vector<8x32xf32>
    %329 = arith.addf %235, %328 : vector<8x32xf32>
    %c0_117 = arith.constant 0 : index
    %c0_118 = arith.constant 0 : index
    %330 = vector.load %arg30[%c0_117, %c0_118] : memref<1x32xf32, #tpu.memory_space<vmem>>, vector<1x32xf32>
    %331 = arith.mulf %329, %329 : vector<8x32xf32>
    %cst_119 = arith.constant dense<0.000000e+00> : vector<8xf32>
    %332 = vector.multi_reduction <add>, %331, %cst_119 [1] : vector<8x32xf32> to vector<8xf32>
    %333 = vector.shape_cast %332 : vector<8xf32> to vector<8x1xf32>
    %cst_120 = arith.constant 3.200000e+01 : f32
    %334 = vector.broadcast %cst_120 : f32 to vector<8x1xf32>
    %335 = arith.divf %333, %334 : vector<8x1xf32>
    %cst_121 = arith.constant 1.1920929E-7 : f32
    %336 = vector.broadcast %cst_121 : f32 to vector<8x1xf32>
    %337 = arith.addf %335, %336 : vector<8x1xf32>
    %338 = math.rsqrt %337 : vector<8x1xf32>
    %339 = vector.broadcast %338 : vector<8x1xf32> to vector<8x32xf32>
    %340 = arith.mulf %329, %339 : vector<8x32xf32>
    %341 = vector.broadcast %330 : vector<1x32xf32> to vector<8x32xf32>
    %342 = arith.mulf %340, %341 : vector<8x32xf32>
    %c0_122 = arith.constant 0 : index
    %c0_123 = arith.constant 0 : index
    %c0_124 = arith.constant 0 : index
    %343 = vector.load %arg31[%c0_122, %c0_123, %c0_124] : memref<1x8x32xf32, #tpu.memory_space<vmem>>, vector<1x8x32xf32>
    %344 = vector.shape_cast %343 : vector<1x8x32xf32> to vector<8x32xf32>
    %345 = vector.shape_cast %342 : vector<8x32xf32> to vector<1x8x32xf32>
    tpu.vector_store %arg31[%c0_122, %c0_123, %c0_124], %345 {strides = array<i32>} : memref<1x8x32xf32, #tpu.memory_space<vmem>>, vector<1x8x32xf32>,
    return
  }
  func.func @transform_0(%arg0: i32) -> (i32, i32, i32) {
    %c0_i32 = arith.constant 0 : i32
    %c0_i32_0 = arith.constant 0 : i32
    %c0_i32_1 = arith.constant 0 : i32
    return %arg0, %c0_i32, %c0_i32_0 : i32, i32, i32
  }
  func.func @transform_1(%arg0: i32) -> (i32, i32) {
    %c0_i32 = arith.constant 0 : i32
    %c0_i32_0 = arith.constant 0 : i32
    %c0_i32_1 = arith.constant 0 : i32
    return %c0_i32, %c0_i32_0 : i32, i32
  }
  func.func @transform_2(%arg0: i32) -> (i32, i32) {
    %c0_i32 = arith.constant 0 : i32
    %c0_i32_0 = arith.constant 0 : i32
    %c0_i32_1 = arith.constant 0 : i32
    return %c0_i32, %c0_i32_0 : i32, i32
  }
  func.func @transform_3(%arg0: i32) -> (i32, i32) {
    %c0_i32 = arith.constant 0 : i32
    %c0_i32_0 = arith.constant 0 : i32
    %c0_i32_1 = arith.constant 0 : i32
    return %c0_i32, %c0_i32_0 : i32, i32
  }
  func.func @transform_4(%arg0: i32) -> (i32, i32) {
    %c0_i32 = arith.constant 0 : i32
    %c0_i32_0 = arith.constant 0 : i32
    %c0_i32_1 = arith.constant 0 : i32
    return %c0_i32, %c0_i32_0 : i32, i32
  }
  func.func @transform_5(%arg0: i32) -> (i32, i32) {
    %c0_i32 = arith.constant 0 : i32
    %c0_i32_0 = arith.constant 0 : i32
    %c0_i32_1 = arith.constant 0 : i32
    return %c0_i32, %c0_i32_0 : i32, i32
  }
  func.func @transform_6(%arg0: i32) -> (i32, i32) {
    %c0_i32 = arith.constant 0 : i32
    %c0_i32_0 = arith.constant 0 : i32
    %c0_i32_1 = arith.constant 0 : i32
    return %c0_i32, %c0_i32_0 : i32, i32
  }
  func.func @transform_7(%arg0: i32) -> (i32, i32) {
    %c0_i32 = arith.constant 0 : i32
    %c0_i32_0 = arith.constant 0 : i32
    %c0_i32_1 = arith.constant 0 : i32
    return %c0_i32, %c0_i32_0 : i32, i32
  }
  func.func @transform_8(%arg0: i32) -> (i32, i32) {
    %c0_i32 = arith.constant 0 : i32
    %c0_i32_0 = arith.constant 0 : i32
    %c0_i32_1 = arith.constant 0 : i32
    return %c0_i32, %c0_i32_0 : i32, i32
  }
  func.func @transform_9(%arg0: i32) -> (i32, i32) {
    %c0_i32 = arith.constant 0 : i32
    %c0_i32_0 = arith.constant 0 : i32
    %c0_i32_1 = arith.constant 0 : i32
    return %c0_i32, %c0_i32_0 : i32, i32
  }
  func.func @transform_10(%arg0: i32) -> (i32, i32) {
    %c0_i32 = arith.constant 0 : i32
    %c0_i32_0 = arith.constant 0 : i32
    %c0_i32_1 = arith.constant 0 : i32
    return %c0_i32, %c0_i32_0 : i32, i32
  }
  func.func @transform_11(%arg0: i32) -> (i32, i32) {
    %c0_i32 = arith.constant 0 : i32
    %c0_i32_0 = arith.constant 0 : i32
    %c0_i32_1 = arith.constant 0 : i32
    return %c0_i32, %c0_i32_0 : i32, i32
  }
  func.func @transform_12(%arg0: i32) -> (i32, i32) {
    %c0_i32 = arith.constant 0 : i32
    %c0_i32_0 = arith.constant 0 : i32
    %c0_i32_1 = arith.constant 0 : i32
    return %c0_i32, %c0_i32_0 : i32, i32
  }
  func.func @transform_13(%arg0: i32) -> (i32, i32) {
    %c0_i32 = arith.constant 0 : i32
    %c0_i32_0 = arith.constant 0 : i32
    %c0_i32_1 = arith.constant 0 : i32
    return %c0_i32, %c0_i32_0 : i32, i32
  }
  func.func @transform_14(%arg0: i32) -> (i32, i32) {
    %c0_i32 = arith.constant 0 : i32
    %c0_i32_0 = arith.constant 0 : i32
    %c0_i32_1 = arith.constant 0 : i32
    return %c0_i32, %c0_i32_0 : i32, i32
  }
  func.func @transform_15(%arg0: i32) -> (i32, i32) {
    %c0_i32 = arith.constant 0 : i32
    %c0_i32_0 = arith.constant 0 : i32
    %c0_i32_1 = arith.constant 0 : i32
    return %c0_i32, %c0_i32_0 : i32, i32
  }
  func.func @transform_16(%arg0: i32) -> (i32, i32) {
    %c0_i32 = arith.constant 0 : i32
    %c0_i32_0 = arith.constant 0 : i32
    %c0_i32_1 = arith.constant 0 : i32
    return %c0_i32, %c0_i32_0 : i32, i32
  }
  func.func @transform_17(%arg0: i32) -> (i32, i32) {
    %c0_i32 = arith.constant 0 : i32
    %c0_i32_0 = arith.constant 0 : i32
    %c0_i32_1 = arith.constant 0 : i32
    return %c0_i32, %c0_i32_0 : i32, i32
  }
  func.func @transform_18(%arg0: i32) -> (i32, i32) {
    %c0_i32 = arith.constant 0 : i32
    %c0_i32_0 = arith.constant 0 : i32
    %c0_i32_1 = arith.constant 0 : i32
    return %c0_i32, %c0_i32_0 : i32, i32
  }
  func.func @transform_19(%arg0: i32) -> (i32, i32) {
    %c0_i32 = arith.constant 0 : i32
    %c0_i32_0 = arith.constant 0 : i32
    %c0_i32_1 = arith.constant 0 : i32
    return %c0_i32, %c0_i32_0 : i32, i32
  }
  func.func @transform_20(%arg0: i32) -> (i32, i32) {
    %c0_i32 = arith.constant 0 : i32
    %c0_i32_0 = arith.constant 0 : i32
    %c0_i32_1 = arith.constant 0 : i32
    return %c0_i32, %c0_i32_0 : i32, i32
  }
  func.func @transform_21(%arg0: i32) -> (i32, i32) {
    %c0_i32 = arith.constant 0 : i32
    %c0_i32_0 = arith.constant 0 : i32
    %c0_i32_1 = arith.constant 0 : i32
    return %c0_i32, %c0_i32_0 : i32, i32
  }
  func.func @transform_22(%arg0: i32) -> (i32, i32) {
    %c0_i32 = arith.constant 0 : i32
    %c0_i32_0 = arith.constant 0 : i32
    %c0_i32_1 = arith.constant 0 : i32
    return %c0_i32, %c0_i32_0 : i32, i32
  }
  func.func @transform_23(%arg0: i32) -> (i32, i32) {
    %c0_i32 = arith.constant 0 : i32
    %c0_i32_0 = arith.constant 0 : i32
    %c0_i32_1 = arith.constant 0 : i32
    return %c0_i32, %c0_i32_0 : i32, i32
  }
  func.func @transform_24(%arg0: i32) -> (i32, i32) {
    %c0_i32 = arith.constant 0 : i32
    %c0_i32_0 = arith.constant 0 : i32
    %c0_i32_1 = arith.constant 0 : i32
    return %c0_i32, %c0_i32_0 : i32, i32
  }
  func.func @transform_25(%arg0: i32) -> (i32, i32) {
    %c0_i32 = arith.constant 0 : i32
    %c0_i32_0 = arith.constant 0 : i32
    %c0_i32_1 = arith.constant 0 : i32
    return %c0_i32, %c0_i32_0 : i32, i32
  }
  func.func @transform_26(%arg0: i32) -> (i32, i32) {
    %c0_i32 = arith.constant 0 : i32
    %c0_i32_0 = arith.constant 0 : i32
    %c0_i32_1 = arith.constant 0 : i32
    return %c0_i32, %c0_i32_0 : i32, i32
  }
  func.func @transform_27(%arg0: i32) -> (i32, i32) {
    %c0_i32 = arith.constant 0 : i32
    %c0_i32_0 = arith.constant 0 : i32
    %c0_i32_1 = arith.constant 0 : i32
    return %c0_i32, %c0_i32_0 : i32, i32
  }
  func.func @transform_28(%arg0: i32) -> (i32, i32) {
    %c0_i32 = arith.constant 0 : i32
    %c0_i32_0 = arith.constant 0 : i32
    %c0_i32_1 = arith.constant 0 : i32
    return %c0_i32, %c0_i32_0 : i32, i32
  }
  func.func @transform_29(%arg0: i32) -> (i32, i32) {
    %c0_i32 = arith.constant 0 : i32
    %c0_i32_0 = arith.constant 0 : i32
    %c0_i32_1 = arith.constant 0 : i32
    return %c0_i32, %c0_i32_0 : i32, i32
  }
  func.func @transform_30(%arg0: i32) -> (i32, i32, i32) {
    %c0_i32 = arith.constant 0 : i32
    %c0_i32_0 = arith.constant 0 : i32
    %c0_i32_1 = arith.constant 0 : i32
    return %arg0, %c0_i32, %c0_i32_0 : i32, i32, i32
  }
}

</mosaic_0001>

<llo_original>
// kernel: _lambda_.1
$region0: #{_lambda_.1}
  #allocation0 [shape = 'u32[]', space=smem, size = 0x4, offset = 0x4, fixed_abs, tag = 'smem constant byte address 0x4 - core index']
  #allocation1 [shape = 'u32[72,128]{1,0:T(1,128)}', space=vmem, size = 0x9000, scoped, tag = 'internal scratch']
  %s0 = inlined_call_operand.smem [shape: u32[31], index: -1, kind: input, shape index: {}]
  %s1 = sld [smem:[%s0]]
  %s2 = scalar_lea.smem %s0, 1
  %s3 = sld [smem:[%s2]]
  %s4 = scalar_lea.smem %s0, 2
  %s5 = sld [smem:[%s4]]
  %s6 = scalar_lea.smem %s0, 3
  %s7 = sld [smem:[%s6]]
  %s8 = scalar_lea.smem %s0, 4
  %s9 = sld [smem:[%s8]]
  %s10 = scalar_lea.smem %s0, 5
  %s11 = sld [smem:[%s10]]
  %s12 = scalar_lea.smem %s0, 6
  %s13 = sld [smem:[%s12]]
  %s14 = scalar_lea.smem %s0, 7
  %s15 = sld [smem:[%s14]]
  %s16 = scalar_lea.smem %s0, 8
  %s17 = sld [smem:[%s16]]
  %s18 = scalar_lea.smem %s0, 9
  %s19 = sld [smem:[%s18]]
  %s20 = scalar_lea.smem %s0, 10
  %s21 = sld [smem:[%s20]]
  %s22 = scalar_lea.smem %s0, 11
  %s23 = sld [smem:[%s22]]
  %s24 = scalar_lea.smem %s0, 12
  %s25 = sld [smem:[%s24]]
  %s26 = scalar_lea.smem %s0, 13
  %s27 = sld [smem:[%s26]]
  %s28 = scalar_lea.smem %s0, 14
  %s29 = sld [smem:[%s28]]
  %s30 = scalar_lea.smem %s0, 15
  %s31 = sld [smem:[%s30]]
  %s32 = scalar_lea.smem %s0, 16
  %s33 = sld [smem:[%s32]]
  %s34 = scalar_lea.smem %s0, 17
  %s35 = sld [smem:[%s34]]
  %s36 = scalar_lea.smem %s0, 18
  %s37 = sld [smem:[%s36]]
  %s38 = scalar_lea.smem %s0, 19
  %s39 = sld [smem:[%s38]]
  %s40 = scalar_lea.smem %s0, 20
  %s41 = sld [smem:[%s40]]
  %s42 = scalar_lea.smem %s0, 21
  %s43 = sld [smem:[%s42]]
  %s44 = scalar_lea.smem %s0, 22
  %s45 = sld [smem:[%s44]]
  %s46 = scalar_lea.smem %s0, 23
  %s47 = sld [smem:[%s46]]
  %s48 = scalar_lea.smem %s0, 24
  %s49 = sld [smem:[%s48]]
  %s50 = scalar_lea.smem %s0, 25
  %s51 = sld [smem:[%s50]]
  %s52 = scalar_lea.smem %s0, 26
  %s53 = sld [smem:[%s52]]
  %s54 = scalar_lea.smem %s0, 27
  %s55 = sld [smem:[%s54]]
  %s56 = scalar_lea.smem %s0, 28
  %s57 = sld [smem:[%s56]]
  %s58 = scalar_lea.smem %s0, 29
  %s59 = sld [smem:[%s58]]
  %s60 = scalar_lea.smem %s0, 30
  %s61 = sld [smem:[%s60]]
  %s62 = sld [smem:[#allocation0]]
  $region241: #{_lambda_.1} parent=0
    _
  %s64 = ssub.s32 1, %s62
  %s65 = scalar_select 0, %s64, %s62
  $region1: #{_lambda_.1} parent=0
    #allocation2 [shape = 'u8[8192]{0}', space=vmem, size = 0x2000, scoped, tag = 'input window, operand 0']
    #allocation3 [shape = 's32[2]{0}', space=sflag, size = 0x8, scoped, tag = 'scoped memory for _lambda_.1']
    #allocation4 [shape = 's32[2]{0}', space=sflag, size = 0x8, scoped, tag = 'scoped memory for _lambda_.1']
    #allocation5 [shape = 'u8[4096]{0}', space=vmem, size = 0x1000, scoped, tag = 'input window, operand 1, single buffered']
    #allocation6 [shape = 's32[1]{0}', space=sflag, size = 0x4, scoped, tag = 'scoped memory for _lambda_.1']
    #allocation7 [shape = 'u8[4096]{0}', space=vmem, size = 0x1000, scoped, tag = 'input window, operand 2, single buffered']
    #allocation8 [shape = 'u8[4096]{0}', space=vmem, size = 0x1000, scoped, tag = 'input window, operand 3, single buffered']
    #allocation9 [shape = 's32[1]{0}', space=sflag, size = 0x4, scoped, tag = 'scoped memory for _lambda_.1']
    #allocation10 [shape = 'u8[4096]{0}', space=vmem, size = 0x1000, scoped, tag = 'input window, operand 4, single buffered']
    #allocation11 [shape = 'u8[16384]{0}', space=vmem, size = 0x4000, scoped, tag = 'input window, operand 5, single buffered']
    #allocation12 [shape = 's32[1]{0}', space=sflag, size = 0x4, scoped, tag = 'scoped memory for _lambda_.1']
    #allocation13 [shape = 'u8[4096]{0}', space=vmem, size = 0x1000, scoped, tag = 'input window, operand 6, single buffered']
    #allocation14 [shape = 'u8[16384]{0}', space=vmem, size = 0x4000, scoped, tag = 'input window, operand 7, single buffered']
    #allocation15 [shape = 's32[1]{0}', space=sflag, size = 0x4, scoped, tag = 'scoped memory for _lambda_.1']
    #allocation16 [shape = 'u8[8192]{0}', space=vmem, size = 0x2000, scoped, tag = 'input window, operand 9, single buffered']
    #allocation17 [shape = 'u8[8192]{0}', space=vmem, size = 0x2000, scoped, tag = 'input window, operand 10, single buffered']
    #allocation18 [shape = 's32[1]{0}', space=sflag, size = 0x4, scoped, tag = 'scoped memory for _lambda_.1']
    #allocation19 [shape = 'u8[8192]{0}', space=vmem, size = 0x2000, scoped, tag = 'input window, operand 12, single buffered']
    #allocation20 [shape = 'u8[16384]{0}', space=vmem, size = 0x4000, scoped, tag = 'input window, operand 13, single buffered']
    #allocation21 [shape = 's32[1]{0}', space=sflag, size = 0x4, scoped, tag = 'scoped memory for _lambda_.1']
    #allocation22 [shape = 'u8[8192]{0}', space=vmem, size = 0x2000, scoped, tag = 'input window, operand 15, single buffered']
    #allocation23 [shape = 'u8[8192]{0}', space=vmem, size = 0x2000, scoped, tag = 'input window, operand 16, single buffered']
    #allocation24 [shape = 's32[1]{0}', space=sflag, size = 0x4, scoped, tag = 'scoped memory for _lambda_.1']
    #allocation25 [shape = 'u8[16384]{0}', space=vmem, size = 0x4000, scoped, tag = 'input window, operand 17, single buffered']
    #allocation26 [shape = 'u8[8192]{0}', space=vmem, size = 0x2000, scoped, tag = 'input window, operand 19, single buffered']
    #allocation27 [shape = 's32[1]{0}', space=sflag, size = 0x4, scoped, tag = 'scoped memory for _lambda_.1']
    #allocation28 [shape = 'u8[8192]{0}', space=vmem, size = 0x2000, scoped, tag = 'input window, operand 20, single buffered']
    #allocation29 [shape = 'u8[8192]{0}', space=vmem, size = 0x2000, scoped, tag = 'input window, operand 22, single buffered']
    #allocation30 [shape = 's32[1]{0}', space=sflag, size = 0x4, scoped, tag = 'scoped memory for _lambda_.1']
    #allocation31 [shape = 'u8[16384]{0}', space=vmem, size = 0x4000, scoped, tag = 'input window, operand 23, single buffered']
    #allocation32 [shape = 'u8[16384]{0}', space=vmem, size = 0x4000, scoped, tag = 'input window, operand 26, single buffered']
    #allocation33 [shape = 's32[1]{0}', space=sflag, size = 0x4, scoped, tag = 'scoped memory for _lambda_.1']
    #allocation34 [shape = 'u8[16384]{0}', space=vmem, size = 0x4000, scoped, tag = 'input window, operand 27, single buffered']
    #allocation35 [shape = 'u8[40960]{0}', space=vmem, size = 0xa000, scoped, tag = 'input window, operand 28, single buffered']
    #allocation36 [shape = 's32[1]{0}', space=sflag, size = 0x4, scoped, tag = 'scoped memory for _lambda_.1']
    #allocation37 [shape = 'u8[8192]{0}', space=vmem, size = 0x2000, scoped, tag = 'output window, operand 0']
    %66 = vsyncpa [#allocation3], 0
    %s67 = scalar_lea.sflag [#allocation3], 1
    %68 = vsyncpa %s67, 0
    %69 = vsyncpa [#allocation6], 0
    %70 = vsyncpa [#allocation9], 0
    %71 = vsyncpa [#allocation12], 0
    %72 = vsyncpa [#allocation15], 0
    %73 = vsyncpa [#allocation18], 0
    %74 = vsyncpa [#allocation21], 0
    %75 = vsyncpa [#allocation24], 0
    %76 = vsyncpa [#allocation27], 0
    %77 = vsyncpa [#allocation30], 0
    %78 = vsyncpa [#allocation33], 0
    %79 = vsyncpa [#allocation36], 0
    %80 = vsyncpa [#allocation4], 0
    %s81 = scalar_lea.sflag [#allocation4], 1
    %82 = vsyncpa %s81, 0
    loop: start=0, step=1, limit=4
    $region2: #{_lambda_.1} parent=1 // loop_pre_header
      _
    $region3: #{_lambda_.1} parent=1 // loop_header
      %s84 = sphi 0, %s88
      %p85 = scmp.ge.s32.totalorder %s84, 4
      %s94 = sphi 0, %s96
      %s97 = sphi 0, %s94
      %s98 = sphi 0, %s97
      %s114 = sphi 0, %s98
      %s118 = sphi 0, %s118
      %s120 = sphi 0, %s118
      %s121 = sphi 0, %s120
      %s135 = sphi 0, %s121
      %s139 = sphi 0, %s139
      %s141 = sphi 0, %s139
      %s142 = sphi 0, %s141
      %s156 = sphi 0, %s142
      %s160 = sphi 0, %s160
      %s162 = sphi 0, %s160
      %s163 = sphi 0, %s162
      %s177 = sphi 0, %s163
      %s181 = sphi 0, %s181
      %s183 = sphi 0, %s181
      %s184 = sphi 0, %s183
      %s198 = sphi 0, %s184
      %s202 = sphi 0, %s202
      %s204 = sphi 0, %s202
      %s205 = sphi 0, %s204
      %s219 = sphi 0, %s205
      %s223 = sphi 0, %s223
      %s225 = sphi 0, %s223
      %s226 = sphi 0, %s225
      %s240 = sphi 0, %s226
      %s244 = sphi 0, %s244
      %s246 = sphi 0, %s244
      %s247 = sphi 0, %s246
      %s261 = sphi 0, %s247
      %s265 = sphi 0, %s265
      %s267 = sphi 0, %s265
      %s268 = sphi 0, %s267
      %s282 = sphi 0, %s268
      %s286 = sphi 0, %s286
      %s288 = sphi 0, %s286
      %s289 = sphi 0, %s288
      %s303 = sphi 0, %s289
      %s307 = sphi 0, %s307
      %s309 = sphi 0, %s307
      %s310 = sphi 0, %s309
      %s324 = sphi 0, %s310
      %s328 = sphi 0, %s328
      %s330 = sphi 0, %s328
      %s331 = sphi 0, %s330
      %s345 = sphi 0, %s331
      %s349 = sphi 0, %s349
      %s351 = sphi 0, %s349
      %s352 = sphi 0, %s351
      %s366 = sphi 0, %s352
      %s370 = sphi 0, %s370
      %s372 = sphi 0, %s370
      %s373 = sphi 0, %s372
      %s387 = sphi 0, %s373
      %s391 = sphi 0, %s391
      %s393 = sphi 0, %s391
      %s394 = sphi 0, %s393
      %s408 = sphi 0, %s394
      %s412 = sphi 0, %s412
      %s414 = sphi 0, %s412
      %s415 = sphi 0, %s414
      %s429 = sphi 0, %s415
      %s433 = sphi 0, %s433
      %s435 = sphi 0, %s433
      %s436 = sphi 0, %s435
      %s450 = sphi 0, %s436
      %s454 = sphi 0, %s454
      %s456 = sphi 0, %s454
      %s457 = sphi 0, %s456
      %s471 = sphi 0, %s457
      %s475 = sphi 0, %s475
      %s477 = sphi 0, %s475
      %s478 = sphi 0, %s477
      %s492 = sphi 0, %s478
      %s496 = sphi 0, %s496
      %s498 = sphi 0, %s496
      %s499 = sphi 0, %s498
      %s513 = sphi 0, %s499
      %s517 = sphi 0, %s517
      %s519 = sphi 0, %s517
      %s520 = sphi 0, %s519
      %s534 = sphi 0, %s520
      %s538 = sphi 0, %s538
      %s540 = sphi 0, %s538
      %s541 = sphi 0, %s540
      %s555 = sphi 0, %s541
      %s559 = sphi 0, %s559
      %s561 = sphi 0, %s559
      %s562 = sphi 0, %s561
      %s576 = sphi 0, %s562
      %s580 = sphi 0, %s580
      %s582 = sphi 0, %s580
      %s583 = sphi 0, %s582
      %s597 = sphi 0, %s583
      %s601 = sphi 0, %s601
      %s603 = sphi 0, %s601
      %s604 = sphi 0, %s603
      %s618 = sphi 0, %s604
      %s622 = sphi 0, %s622
      %s624 = sphi 0, %s622
      %s625 = sphi 0, %s624
      %s639 = sphi 0, %s625
      %s643 = sphi 0, %s643
      %s645 = sphi 0, %s643
      %s646 = sphi 0, %s645
      %s660 = sphi 0, %s646
      %s664 = sphi 0, %s664
      %s666 = sphi 0, %s664
      %s667 = sphi 0, %s666
      %s681 = sphi 0, %s667
      %s685 = sphi 0, %s685
      %s687 = sphi 0, %s685
      %s688 = sphi 0, %s687
      %s702 = sphi 0, %s688
      %s706 = sphi 0, %s706
      %s708 = sphi 0, %s706
      %s709 = sphi 0, %s708
      %s723 = sphi 0, %s709
      %s729 = sphi 0, %s731
      %s732 = sphi 0, %s729
      %s733 = sphi 0, %s732
      %s749 = sphi 0, %s733
    $region4: #{_lambda_.1} parent=1 // loop_header_branch
      %87 = sbr.rel (%p85) target = $region8
    $region5: #{_lambda_.1} parent=1 // loop_body
      %s89 = ssub.s32 %s84, 1
      %s90 = ssub.s32 %s84, 2
      %s91 = sadd.s32 %s84, 1
      %s92 = ssub.s32 %s84, %s91
      %p93 = scmp.eq.s32.totalorder %s92, 0
      %s95 = sadd.s32 %s94, 1
      %s96 = scalar_select %p93, %s94, %s95
      %p99 = pneg %p93
      %p100 = scmp.eq.s32.totalorder %s84, 1
      %p101 = por %p99, %p100
      %p102 = scmp.ne.s32.totalorder %s94, %s97
      %p103 = scmp.eq.s32.totalorder %s84, 0
      %p104 = por %p102, %p103
      %p105 = scmp.ne.s32.totalorder %s94, %s97
      %p106 = scmp.eq.s32.totalorder %s89, 1
      %p107 = por %p105, %p106
      %p108 = scmp.ne.s32.totalorder %s97, %s98
      %p109 = scmp.eq.s32.totalorder %s89, 0
      %p110 = por %p108, %p109
      %p111 = scmp.ne.s32.totalorder %s97, %s98
      %p112 = scmp.eq.s32.totalorder %s90, 1
      %p113 = por %p111, %p112
      %p115 = scmp.ne.s32.totalorder %s98, %s114
      %p116 = scmp.eq.s32.totalorder %s90, 0
      %p117 = por %p115, %p116
      %s119 = sadd.s32 %s118, 1
      %p122 = scmp.eq.s32.totalorder %s84, 1
      %p123 = scmp.ne.s32.totalorder %s118, %s120
      %p124 = scmp.eq.s32.totalorder %s84, 0
      %p125 = por %p123, %p124
      %p126 = scmp.ne.s32.totalorder %s118, %s120
      %p127 = scmp.eq.s32.totalorder %s89, 1
      %p128 = por %p126, %p127
      %p129 = scmp.ne.s32.totalorder %s120, %s121
      %p130 = scmp.eq.s32.totalorder %s89, 0
      %p131 = por %p129, %p130
      %p132 = scmp.ne.s32.totalorder %s120, %s121
      %p133 = scmp.eq.s32.totalorder %s90, 1
      %p134 = por %p132, %p133
      %p136 = scmp.ne.s32.totalorder %s121, %s135
      %p137 = scmp.eq.s32.totalorder %s90, 0
      %p138 = por %p136, %p137
      %s140 = sadd.s32 %s139, 1
      %p143 = scmp.eq.s32.totalorder %s84, 1
      %p144 = scmp.ne.s32.totalorder %s139, %s141
      %p145 = scmp.eq.s32.totalorder %s84, 0
      %p146 = por %p144, %p145
      %p147 = scmp.ne.s32.totalorder %s139, %s141
      %p148 = scmp.eq.s32.totalorder %s89, 1
      %p149 = por %p147, %p148
      %p150 = scmp.ne.s32.totalorder %s141, %s142
      %p151 = scmp.eq.s32.totalorder %s89, 0
      %p152 = por %p150, %p151
      %p153 = scmp.ne.s32.totalorder %s141, %s142
      %p154 = scmp.eq.s32.totalorder %s90, 1
      %p155 = por %p153, %p154
      %p157 = scmp.ne.s32.totalorder %s142, %s156
      %p158 = scmp.eq.s32.totalorder %s90, 0
      %p159 = por %p157, %p158
      %s161 = sadd.s32 %s160, 1
      %p164 = scmp.eq.s32.totalorder %s84, 1
      %p165 = scmp.ne.s32.totalorder %s160, %s162
      %p166 = scmp.eq.s32.totalorder %s84, 0
      %p167 = por %p165, %p166
      %p168 = scmp.ne.s32.totalorder %s160, %s162
      %p169 = scmp.eq.s32.totalorder %s89, 1
      %p170 = por %p168, %p169
      %p171 = scmp.ne.s32.totalorder %s162, %s163
      %p172 = scmp.eq.s32.totalorder %s89, 0
      %p173 = por %p171, %p172
      %p174 = scmp.ne.s32.totalorder %s162, %s163
      %p175 = scmp.eq.s32.totalorder %s90, 1
      %p176 = por %p174, %p175
      %p178 = scmp.ne.s32.totalorder %s163, %s177
      %p179 = scmp.eq.s32.totalorder %s90, 0
      %p180 = por %p178, %p179
      %s182 = sadd.s32 %s181, 1
      %p185 = scmp.eq.s32.totalorder %s84, 1
      %p186 = scmp.ne.s32.totalorder %s181, %s183
      %p187 = scmp.eq.s32.totalorder %s84, 0
      %p188 = por %p186, %p187
      %p189 = scmp.ne.s32.totalorder %s181, %s183
      %p190 = scmp.eq.s32.totalorder %s89, 1
      %p191 = por %p189, %p190
      %p192 = scmp.ne.s32.totalorder %s183, %s184
      %p193 = scmp.eq.s32.totalorder %s89, 0
      %p194 = por %p192, %p193
      %p195 = scmp.ne.s32.totalorder %s183, %s184
      %p196 = scmp.eq.s32.totalorder %s90, 1
      %p197 = por %p195, %p196
      %p199 = scmp.ne.s32.totalorder %s184, %s198
      %p200 = scmp.eq.s32.totalorder %s90, 0
      %p201 = por %p199, %p200
      %s203 = sadd.s32 %s202, 1
      %p206 = scmp.eq.s32.totalorder %s84, 1
      %p207 = scmp.ne.s32.totalorder %s202, %s204
      %p208 = scmp.eq.s32.totalorder %s84, 0
      %p209 = por %p207, %p208
      %p210 = scmp.ne.s32.totalorder %s202, %s204
      %p211 = scmp.eq.s32.totalorder %s89, 1
      %p212 = por %p210, %p211
      %p213 = scmp.ne.s32.totalorder %s204, %s205
      %p214 = scmp.eq.s32.totalorder %s89, 0
      %p215 = por %p213, %p214
      %p216 = scmp.ne.s32.totalorder %s204, %s205
      %p217 = scmp.eq.s32.totalorder %s90, 1
      %p218 = por %p216, %p217
      %p220 = scmp.ne.s32.totalorder %s205, %s219
      %p221 = scmp.eq.s32.totalorder %s90, 0
      %p222 = por %p220, %p221
      %s224 = sadd.s32 %s223, 1
      %p227 = scmp.eq.s32.totalorder %s84, 1
      %p228 = scmp.ne.s32.totalorder %s223, %s225
      %p229 = scmp.eq.s32.totalorder %s84, 0
      %p230 = por %p228, %p229
      %p231 = scmp.ne.s32.totalorder %s223, %s225
      %p232 = scmp.eq.s32.totalorder %s89, 1
      %p233 = por %p231, %p232
      %p234 = scmp.ne.s32.totalorder %s225, %s226
      %p235 = scmp.eq.s32.totalorder %s89, 0
      %p236 = por %p234, %p235
      %p237 = scmp.ne.s32.totalorder %s225, %s226
      %p238 = scmp.eq.s32.totalorder %s90, 1
      %p239 = por %p237, %p238
      %p241 = scmp.ne.s32.totalorder %s226, %s240
      %p242 = scmp.eq.s32.totalorder %s90, 0
      %p243 = por %p241, %p242
      %s245 = sadd.s32 %s244, 1
      %p248 = scmp.eq.s32.totalorder %s84, 1
      %p249 = scmp.ne.s32.totalorder %s244, %s246
      %p250 = scmp.eq.s32.totalorder %s84, 0
      %p251 = por %p249, %p250
      %p252 = scmp.ne.s32.totalorder %s244, %s246
      %p253 = scmp.eq.s32.totalorder %s89, 1
      %p254 = por %p252, %p253
      %p255 = scmp.ne.s32.totalorder %s246, %s247
      %p256 = scmp.eq.s32.totalorder %s89, 0
      %p257 = por %p255, %p256
      %p258 = scmp.ne.s32.totalorder %s246, %s247
      %p259 = scmp.eq.s32.totalorder %s90, 1
      %p260 = por %p258, %p259
      %p262 = scmp.ne.s32.totalorder %s247, %s261
      %p263 = scmp.eq.s32.totalorder %s90, 0
      %p264 = por %p262, %p263
      %s266 = sadd.s32 %s265, 1
      %p269 = scmp.eq.s32.totalorder %s84, 1
      %p270 = scmp.ne.s32.totalorder %s265, %s267
      %p271 = scmp.eq.s32.totalorder %s84, 0
      %p272 = por %p270, %p271
      %p273 = scmp.ne.s32.totalorder %s265, %s267
      %p274 = scmp.eq.s32.totalorder %s89, 1
      %p275 = por %p273, %p274
      %p276 = scmp.ne.s32.totalorder %s267, %s268
      %p277 = scmp.eq.s32.totalorder %s89, 0
      %p278 = por %p276, %p277
      %p279 = scmp.ne.s32.totalorder %s267, %s268
      %p280 = scmp.eq.s32.totalorder %s90, 1
      %p281 = por %p279, %p280
      %p283 = scmp.ne.s32.totalorder %s268, %s282
      %p284 = scmp.eq.s32.totalorder %s90, 0
      %p285 = por %p283, %p284
      %s287 = sadd.s32 %s286, 1
      %p290 = scmp.eq.s32.totalorder %s84, 1
      %p291 = scmp.ne.s32.totalorder %s286, %s288
      %p292 = scmp.eq.s32.totalorder %s84, 0
      %p293 = por %p291, %p292
      %p294 = scmp.ne.s32.totalorder %s286, %s288
      %p295 = scmp.eq.s32.totalorder %s89, 1
      %p296 = por %p294, %p295
      %p297 = scmp.ne.s32.totalorder %s288, %s289
      %p298 = scmp.eq.s32.totalorder %s89, 0
      %p299 = por %p297, %p298
      %p300 = scmp.ne.s32.totalorder %s288, %s289
      %p301 = scmp.eq.s32.totalorder %s90, 1
      %p302 = por %p300, %p301
      %p304 = scmp.ne.s32.totalorder %s289, %s303
      %p305 = scmp.eq.s32.totalorder %s90, 0
      %p306 = por %p304, %p305
      %s308 = sadd.s32 %s307, 1
      %p311 = scmp.eq.s32.totalorder %s84, 1
      %p312 = scmp.ne.s32.totalorder %s307, %s309
      %p313 = scmp.eq.s32.totalorder %s84, 0
      %p314 = por %p312, %p313
      %p315 = scmp.ne.s32.totalorder %s307, %s309
      %p316 = scmp.eq.s32.totalorder %s89, 1
      %p317 = por %p315, %p316
      %p318 = scmp.ne.s32.totalorder %s309, %s310
      %p319 = scmp.eq.s32.totalorder %s89, 0
      %p320 = por %p318, %p319
      %p321 = scmp.ne.s32.totalorder %s309, %s310
      %p322 = scmp.eq.s32.totalorder %s90, 1
      %p323 = por %p321, %p322
      %p325 = scmp.ne.s32.totalorder %s310, %s324
      %p326 = scmp.eq.s32.totalorder %s90, 0
      %p327 = por %p325, %p326
      %s329 = sadd.s32 %s328, 1
      %p332 = scmp.eq.s32.totalorder %s84, 1
      %p333 = scmp.ne.s32.totalorder %s328, %s330
      %p334 = scmp.eq.s32.totalorder %s84, 0
      %p335 = por %p333, %p334
      %p336 = scmp.ne.s32.totalorder %s328, %s330
      %p337 = scmp.eq.s32.totalorder %s89, 1
      %p338 = por %p336, %p337
      %p339 = scmp.ne.s32.totalorder %s330, %s331
      %p340 = scmp.eq.s32.totalorder %s89, 0
      %p341 = por %p339, %p340
      %p342 = scmp.ne.s32.totalorder %s330, %s331
      %p343 = scmp.eq.s32.totalorder %s90, 1
      %p344 = por %p342, %p343
      %p346 = scmp.ne.s32.totalorder %s331, %s345
      %p347 = scmp.eq.s32.totalorder %s90, 0
      %p348 = por %p346, %p347
      %s350 = sadd.s32 %s349, 1
      %p353 = scmp.eq.s32.totalorder %s84, 1
      %p354 = scmp.ne.s32.totalorder %s349, %s351
      %p355 = scmp.eq.s32.totalorder %s84, 0
      %p356 = por %p354, %p355
      %p357 = scmp.ne.s32.totalorder %s349, %s351
      %p358 = scmp.eq.s32.totalorder %s89, 1
      %p359 = por %p357, %p358
      %p360 = scmp.ne.s32.totalorder %s351, %s352
      %p361 = scmp.eq.s32.totalorder %s89, 0
      %p362 = por %p360, %p361
      %p363 = scmp.ne.s32.totalorder %s351, %s352
      %p364 = scmp.eq.s32.totalorder %s90, 1
      %p365 = por %p363, %p364
      %p367 = scmp.ne.s32.totalorder %s352, %s366
      %p368 = scmp.eq.s32.totalorder %s90, 0
      %p369 = por %p367, %p368
      %s371 = sadd.s32 %s370, 1
      %p374 = scmp.eq.s32.totalorder %s84, 1
      %p375 = scmp.ne.s32.totalorder %s370, %s372
      %p376 = scmp.eq.s32.totalorder %s84, 0
      %p377 = por %p375, %p376
      %p378 = scmp.ne.s32.totalorder %s370, %s372
      %p379 = scmp.eq.s32.totalorder %s89, 1
      %p380 = por %p378, %p379
      %p381 = scmp.ne.s32.totalorder %s372, %s373
      %p382 = scmp.eq.s32.totalorder %s89, 0
      %p383 = por %p381, %p382
      %p384 = scmp.ne.s32.totalorder %s372, %s373
      %p385 = scmp.eq.s32.totalorder %s90, 1
      %p386 = por %p384, %p385
      %p388 = scmp.ne.s32.totalorder %s373, %s387
      %p389 = scmp.eq.s32.totalorder %s90, 0
      %p390 = por %p388, %p389
      %s392 = sadd.s32 %s391, 1
      %p395 = scmp.eq.s32.totalorder %s84, 1
      %p396 = scmp.ne.s32.totalorder %s391, %s393
      %p397 = scmp.eq.s32.totalorder %s84, 0
      %p398 = por %p396, %p397
      %p399 = scmp.ne.s32.totalorder %s391, %s393
      %p400 = scmp.eq.s32.totalorder %s89, 1
      %p401 = por %p399, %p400
      %p402 = scmp.ne.s32.totalorder %s393, %s394
      %p403 = scmp.eq.s32.totalorder %s89, 0
      %p404 = por %p402, %p403
      %p405 = scmp.ne.s32.totalorder %s393, %s394
      %p406 = scmp.eq.s32.totalorder %s90, 1
      %p407 = por %p405, %p406
      %p409 = scmp.ne.s32.totalorder %s394, %s408
      %p410 = scmp.eq.s32.totalorder %s90, 0
      %p411 = por %p409, %p410
      %s413 = sadd.s32 %s412, 1
      %p416 = scmp.eq.s32.totalorder %s84, 1
      %p417 = scmp.ne.s32.totalorder %s412, %s414
      %p418 = scmp.eq.s32.totalorder %s84, 0
      %p419 = por %p417, %p418
      %p420 = scmp.ne.s32.totalorder %s412, %s414
      %p421 = scmp.eq.s32.totalorder %s89, 1
      %p422 = por %p420, %p421
      %p423 = scmp.ne.s32.totalorder %s414, %s415
      %p424 = scmp.eq.s32.totalorder %s89, 0
      %p425 = por %p423, %p424
      %p426 = scmp.ne.s32.totalorder %s414, %s415
      %p427 = scmp.eq.s32.totalorder %s90, 1
      %p428 = por %p426, %p427
      %p430 = scmp.ne.s32.totalorder %s415, %s429
      %p431 = scmp.eq.s32.totalorder %s90, 0
      %p432 = por %p430, %p431
      %s434 = sadd.s32 %s433, 1
      %p437 = scmp.eq.s32.totalorder %s84, 1
      %p438 = scmp.ne.s32.totalorder %s433, %s435
      %p439 = scmp.eq.s32.totalorder %s84, 0
      %p440 = por %p438, %p439
      %p441 = scmp.ne.s32.totalorder %s433, %s435
      %p442 = scmp.eq.s32.totalorder %s89, 1
      %p443 = por %p441, %p442
      %p444 = scmp.ne.s32.totalorder %s435, %s436
      %p445 = scmp.eq.s32.totalorder %s89, 0
      %p446 = por %p444, %p445
      %p447 = scmp.ne.s32.totalorder %s435, %s436
      %p448 = scmp.eq.s32.totalorder %s90, 1
      %p449 = por %p447, %p448
      %p451 = scmp.ne.s32.totalorder %s436, %s450
      %p452 = scmp.eq.s32.totalorder %s90, 0
      %p453 = por %p451, %p452
      %s455 = sadd.s32 %s454, 1
      %p458 = scmp.eq.s32.totalorder %s84, 1
      %p459 = scmp.ne.s32.totalorder %s454, %s456
      %p460 = scmp.eq.s32.totalorder %s84, 0
      %p461 = por %p459, %p460
      %p462 = scmp.ne.s32.totalorder %s454, %s456
      %p463 = scmp.eq.s32.totalorder %s89, 1
      %p464 = por %p462, %p463
      %p465 = scmp.ne.s32.totalorder %s456, %s457
      %p466 = scmp.eq.s32.totalorder %s89, 0
      %p467 = por %p465, %p466
      %p468 = scmp.ne.s32.totalorder %s456, %s457
      %p469 = scmp.eq.s32.totalorder %s90, 1
      %p470 = por %p468, %p469
      %p472 = scmp.ne.s32.totalorder %s457, %s471
      %p473 = scmp.eq.s32.totalorder %s90, 0
      %p474 = por %p472, %p473
      %s476 = sadd.s32 %s475, 1
      %p479 = scmp.eq.s32.totalorder %s84, 1
      %p480 = scmp.ne.s32.totalorder %s475, %s477
      %p481 = scmp.eq.s32.totalorder %s84, 0
      %p482 = por %p480, %p481
      %p483 = scmp.ne.s32.totalorder %s475, %s477
      %p484 = scmp.eq.s32.totalorder %s89, 1
      %p485 = por %p483, %p484
      %p486 = scmp.ne.s32.totalorder %s477, %s478
      %p487 = scmp.eq.s32.totalorder %s89, 0
      %p488 = por %p486, %p487
      %p489 = scmp.ne.s32.totalorder %s477, %s478
      %p490 = scmp.eq.s32.totalorder %s90, 1
      %p491 = por %p489, %p490
      %p493 = scmp.ne.s32.totalorder %s478, %s492
      %p494 = scmp.eq.s32.totalorder %s90, 0
      %p495 = por %p493, %p494
      %s497 = sadd.s32 %s496, 1
      %p500 = scmp.eq.s32.totalorder %s84, 1
      %p501 = scmp.ne.s32.totalorder %s496, %s498
      %p502 = scmp.eq.s32.totalorder %s84, 0
      %p503 = por %p501, %p502
      %p504 = scmp.ne.s32.totalorder %s496, %s498
      %p505 = scmp.eq.s32.totalorder %s89, 1
      %p506 = por %p504, %p505
      %p507 = scmp.ne.s32.totalorder %s498, %s499
      %p508 = scmp.eq.s32.totalorder %s89, 0
      %p509 = por %p507, %p508
      %p510 = scmp.ne.s32.totalorder %s498, %s499
      %p511 = scmp.eq.s32.totalorder %s90, 1
      %p512 = por %p510, %p511
      %p514 = scmp.ne.s32.totalorder %s499, %s513
      %p515 = scmp.eq.s32.totalorder %s90, 0
      %p516 = por %p514, %p515
      %s518 = sadd.s32 %s517, 1
      %p521 = scmp.eq.s32.totalorder %s84, 1
      %p522 = scmp.ne.s32.totalorder %s517, %s519
      %p523 = scmp.eq.s32.totalorder %s84, 0
      %p524 = por %p522, %p523
      %p525 = scmp.ne.s32.totalorder %s517, %s519
      %p526 = scmp.eq.s32.totalorder %s89, 1
      %p527 = por %p525, %p526
      %p528 = scmp.ne.s32.totalorder %s519, %s520
      %p529 = scmp.eq.s32.totalorder %s89, 0
      %p530 = por %p528, %p529
      %p531 = scmp.ne.s32.totalorder %s519, %s520
      %p532 = scmp.eq.s32.totalorder %s90, 1
      %p533 = por %p531, %p532
      %p535 = scmp.ne.s32.totalorder %s520, %s534
      %p536 = scmp.eq.s32.totalorder %s90, 0
      %p537 = por %p535, %p536
      %s539 = sadd.s32 %s538, 1
      %p542 = scmp.eq.s32.totalorder %s84, 1
      %p543 = scmp.ne.s32.totalorder %s538, %s540
      %p544 = scmp.eq.s32.totalorder %s84, 0
      %p545 = por %p543, %p544
      %p546 = scmp.ne.s32.totalorder %s538, %s540
      %p547 = scmp.eq.s32.totalorder %s89, 1
      %p548 = por %p546, %p547
      %p549 = scmp.ne.s32.totalorder %s540, %s541
      %p550 = scmp.eq.s32.totalorder %s89, 0
      %p551 = por %p549, %p550
      %p552 = scmp.ne.s32.totalorder %s540, %s541
      %p553 = scmp.eq.s32.totalorder %s90, 1
      %p554 = por %p552, %p553
      %p556 = scmp.ne.s32.totalorder %s541, %s555
      %p557 = scmp.eq.s32.totalorder %s90, 0
      %p558 = por %p556, %p557
      %s560 = sadd.s32 %s559, 1
      %p563 = scmp.eq.s32.totalorder %s84, 1
      %p564 = scmp.ne.s32.totalorder %s559, %s561
      %p565 = scmp.eq.s32.totalorder %s84, 0
      %p566 = por %p564, %p565
      %p567 = scmp.ne.s32.totalorder %s559, %s561
      %p568 = scmp.eq.s32.totalorder %s89, 1
      %p569 = por %p567, %p568
      %p570 = scmp.ne.s32.totalorder %s561, %s562
      %p571 = scmp.eq.s32.totalorder %s89, 0
      %p572 = por %p570, %p571
      %p573 = scmp.ne.s32.totalorder %s561, %s562
      %p574 = scmp.eq.s32.totalorder %s90, 1
      %p575 = por %p573, %p574
      %p577 = scmp.ne.s32.totalorder %s562, %s576
      %p578 = scmp.eq.s32.totalorder %s90, 0
      %p579 = por %p577, %p578
      %s581 = sadd.s32 %s580, 1
      %p584 = scmp.eq.s32.totalorder %s84, 1
      %p585 = scmp.ne.s32.totalorder %s580, %s582
      %p586 = scmp.eq.s32.totalorder %s84, 0
      %p587 = por %p585, %p586
      %p588 = scmp.ne.s32.totalorder %s580, %s582
      %p589 = scmp.eq.s32.totalorder %s89, 1
      %p590 = por %p588, %p589
      %p591 = scmp.ne.s32.totalorder %s582, %s583
      %p592 = scmp.eq.s32.totalorder %s89, 0
      %p593 = por %p591, %p592
      %p594 = scmp.ne.s32.totalorder %s582, %s583
      %p595 = scmp.eq.s32.totalorder %s90, 1
      %p596 = por %p594, %p595
      %p598 = scmp.ne.s32.totalorder %s583, %s597
      %p599 = scmp.eq.s32.totalorder %s90, 0
      %p600 = por %p598, %p599
      %s602 = sadd.s32 %s601, 1
      %p605 = scmp.eq.s32.totalorder %s84, 1
      %p606 = scmp.ne.s32.totalorder %s601, %s603
      %p607 = scmp.eq.s32.totalorder %s84, 0
      %p608 = por %p606, %p607
      %p609 = scmp.ne.s32.totalorder %s601, %s603
      %p610 = scmp.eq.s32.totalorder %s89, 1
      %p611 = por %p609, %p610
      %p612 = scmp.ne.s32.totalorder %s603, %s604
      %p613 = scmp.eq.s32.totalorder %s89, 0
      %p614 = por %p612, %p613
      %p615 = scmp.ne.s32.totalorder %s603, %s604
      %p616 = scmp.eq.s32.totalorder %s90, 1
      %p617 = por %p615, %p616
      %p619 = scmp.ne.s32.totalorder %s604, %s618
      %p620 = scmp.eq.s32.totalorder %s90, 0
      %p621 = por %p619, %p620
      %s623 = sadd.s32 %s622, 1
      %p626 = scmp.eq.s32.totalorder %s84, 1
      %p627 = scmp.ne.s32.totalorder %s622, %s624
      %p628 = scmp.eq.s32.totalorder %s84, 0
      %p629 = por %p627, %p628
      %p630 = scmp.ne.s32.totalorder %s622, %s624
      %p631 = scmp.eq.s32.totalorder %s89, 1
      %p632 = por %p630, %p631
      %p633 = scmp.ne.s32.totalorder %s624, %s625
      %p634 = scmp.eq.s32.totalorder %s89, 0
      %p635 = por %p633, %p634
      %p636 = scmp.ne.s32.totalorder %s624, %s625
      %p637 = scmp.eq.s32.totalorder %s90, 1
      %p638 = por %p636, %p637
      %p640 = scmp.ne.s32.totalorder %s625, %s639
      %p641 = scmp.eq.s32.totalorder %s90, 0
      %p642 = por %p640, %p641
      %s644 = sadd.s32 %s643, 1
      %p647 = scmp.eq.s32.totalorder %s84, 1
      %p648 = scmp.ne.s32.totalorder %s643, %s645
      %p649 = scmp.eq.s32.totalorder %s84, 0
      %p650 = por %p648, %p649
      %p651 = scmp.ne.s32.totalorder %s643, %s645
      %p652 = scmp.eq.s32.totalorder %s89, 1
      %p653 = por %p651, %p652
      %p654 = scmp.ne.s32.totalorder %s645, %s646
      %p655 = scmp.eq.s32.totalorder %s89, 0
      %p656 = por %p654, %p655
      %p657 = scmp.ne.s32.totalorder %s645, %s646
      %p658 = scmp.eq.s32.totalorder %s90, 1
      %p659 = por %p657, %p658
      %p661 = scmp.ne.s32.totalorder %s646, %s660
      %p662 = scmp.eq.s32.totalorder %s90, 0
      %p663 = por %p661, %p662
      %s665 = sadd.s32 %s664, 1
      %p668 = scmp.eq.s32.totalorder %s84, 1
      %p669 = scmp.ne.s32.totalorder %s664, %s666
      %p670 = scmp.eq.s32.totalorder %s84, 0
      %p671 = por %p669, %p670
      %p672 = scmp.ne.s32.totalorder %s664, %s666
      %p673 = scmp.eq.s32.totalorder %s89, 1
      %p674 = por %p672, %p673
      %p675 = scmp.ne.s32.totalorder %s666, %s667
      %p676 = scmp.eq.s32.totalorder %s89, 0
      %p677 = por %p675, %p676
      %p678 = scmp.ne.s32.totalorder %s666, %s667
      %p679 = scmp.eq.s32.totalorder %s90, 1
      %p680 = por %p678, %p679
      %p682 = scmp.ne.s32.totalorder %s667, %s681
      %p683 = scmp.eq.s32.totalorder %s90, 0
      %p684 = por %p682, %p683
      %s686 = sadd.s32 %s685, 1
      %p689 = scmp.eq.s32.totalorder %s84, 1
      %p690 = scmp.ne.s32.totalorder %s685, %s687
      %p691 = scmp.eq.s32.totalorder %s84, 0
      %p692 = por %p690, %p691
      %p693 = scmp.ne.s32.totalorder %s685, %s687
      %p694 = scmp.eq.s32.totalorder %s89, 1
      %p695 = por %p693, %p694
      %p696 = scmp.ne.s32.totalorder %s687, %s688
      %p697 = scmp.eq.s32.totalorder %s89, 0
      %p698 = por %p696, %p697
      %p699 = scmp.ne.s32.totalorder %s687, %s688
      %p700 = scmp.eq.s32.totalorder %s90, 1
      %p701 = por %p699, %p700
      %p703 = scmp.ne.s32.totalorder %s688, %s702
      %p704 = scmp.eq.s32.totalorder %s90, 0
      %p705 = por %p703, %p704
      %s707 = sadd.s32 %s706, 1
      %p710 = scmp.eq.s32.totalorder %s84, 1
      %p711 = scmp.ne.s32.totalorder %s706, %s708
      %p712 = scmp.eq.s32.totalorder %s84, 0
      %p713 = por %p711, %p712
      %p714 = scmp.ne.s32.totalorder %s706, %s708
      %p715 = scmp.eq.s32.totalorder %s89, 1
      %p716 = por %p714, %p715
      %p717 = scmp.ne.s32.totalorder %s708, %s709
      %p718 = scmp.eq.s32.totalorder %s89, 0
      %p719 = por %p717, %p718
      %p720 = scmp.ne.s32.totalorder %s708, %s709
      %p721 = scmp.eq.s32.totalorder %s90, 1
      %p722 = por %p720, %p721
      %p724 = scmp.ne.s32.totalorder %s709, %s723
      %p725 = scmp.eq.s32.totalorder %s90, 0
      %p726 = por %p724, %p725
      %s727 = ssub.s32 %s84, %s91
      %p728 = scmp.eq.s32.totalorder %s727, 0
      %s730 = sadd.s32 %s729, 1
      %s731 = scalar_select %p728, %s729, %s730
      %p734 = pneg %p728
      %p735 = scmp.eq.s32.totalorder %s84, 1
      %p736 = por %p734, %p735
      %p737 = scmp.ne.s32.totalorder %s729, %s732
      %p738 = scmp.eq.s32.totalorder %s84, 0
      %p739 = por %p737, %p738
      %p740 = scmp.ne.s32.totalorder %s729, %s732
      %p741 = scmp.eq.s32.totalorder %s89, 1
      %p742 = por %p740, %p741
      %p743 = scmp.ne.s32.totalorder %s732, %s733
      %p744 = scmp.eq.s32.totalorder %s89, 0
      %p745 = por %p743, %p744
      %p746 = scmp.ne.s32.totalorder %s732, %s733
      %p747 = scmp.eq.s32.totalorder %s90, 1
      %p748 = por %p746, %p747
      %p750 = scmp.ne.s32.totalorder %s733, %s749
      %p751 = scmp.eq.s32.totalorder %s90, 0
      %p752 = por %p750, %p751
      %p753 = scmp.le.s32.totalorder 1, %s84
      %p754 = scmp.lt.s32.totalorder %s84, 3
      %p755 = pnand %p753, %p754
      %p756 = pneg %p755
      // Predicated region
      $region9: #{_lambda_.1} parent=5 // pred_check
        _
      $region10: #{_lambda_.1} parent=5 // pred_check_branch
        %758 = sbr.rel (%p755) target = $region12
      $region11: #{_lambda_.1} parent=5 // pred_region
        %s759 = ssub.s32 %s84, 1
        // Predicated region
        $region13: #{_lambda_.1} parent=11 // pred_check
          %p760 = pneg %p131
        $region14: #{_lambda_.1} parent=11 // pred_check_branch
          %762 = sbr.rel (%p760) target = $region16
        $region15: #{_lambda_.1} parent=11 // pred_region
          %764 = vsyncadd [#allocation6], 0
          %s766 = sshll.u32 %s3, 4
          %s767 = int_to_ptr.hbm [resolvable:$true] %s766
          %s768 = sshll.u32 [#allocation5], 4
          %s769 = int_to_ptr.vmem [resolvable:$true] %s768
          %771 = dma.hbm_to_vmem [thread:$0]  %s767, 128, %s769, [#allocation6]
        $region16: #{_lambda_.1} parent=11 // pred_fallthru
          _
        // Predicated region
        $region17: #{_lambda_.1} parent=11 // pred_check
          %p772 = pneg %p152
        $region18: #{_lambda_.1} parent=11 // pred_check_branch
          %774 = sbr.rel (%p772) target = $region20
        $region19: #{_lambda_.1} parent=11 // pred_region
          %776 = vsyncadd [#allocation6], 0
          %s778 = sshll.u32 %s5, 4
          %s779 = int_to_ptr.hbm [resolvable:$true] %s778
          %s780 = sshll.u32 [#allocation7], 4
          %s781 = int_to_ptr.vmem [resolvable:$true] %s780
          %783 = dma.hbm_to_vmem [thread:$0]  %s779, 128, %s781, [#allocation6]
        $region20: #{_lambda_.1} parent=11 // pred_fallthru
          _
        // Predicated region
        $region21: #{_lambda_.1} parent=11 // pred_check
          %p784 = pneg %p173
        $region22: #{_lambda_.1} parent=11 // pred_check_branch
          %786 = sbr.rel (%p784) target = $region24
        $region23: #{_lambda_.1} parent=11 // pred_region
          %788 = vsyncadd [#allocation9], 0
          %s790 = sshll.u32 %s7, 4
          %s791 = int_to_ptr.hbm [resolvable:$true] %s790
          %s792 = sshll.u32 [#allocation8], 4
          %s793 = int_to_ptr.vmem [resolvable:$true] %s792
          %795 = dma.hbm_to_vmem [thread:$0]  %s791, 128, %s793, [#allocation9]
        $region24: #{_lambda_.1} parent=11 // pred_fallthru
          _
        // Predicated region
        $region25: #{_lambda_.1} parent=11 // pred_check
          %p796 = pneg %p194
        $region26: #{_lambda_.1} parent=11 // pred_check_branch
          %798 = sbr.rel (%p796) target = $region28
        $region27: #{_lambda_.1} parent=11 // pred_region
          %800 = vsyncadd [#allocation9], 0
          %s802 = sshll.u32 %s9, 4
          %s803 = int_to_ptr.hbm [resolvable:$true] %s802
          %s804 = sshll.u32 [#allocation10], 4
          %s805 = int_to_ptr.vmem [resolvable:$true] %s804
          %807 = dma.hbm_to_vmem [thread:$0]  %s803, 128, %s805, [#allocation9]
        $region28: #{_lambda_.1} parent=11 // pred_fallthru
          _
        // Predicated region
        $region29: #{_lambda_.1} parent=11 // pred_check
          %p808 = pneg %p215
        $region30: #{_lambda_.1} parent=11 // pred_check_branch
          %810 = sbr.rel (%p808) target = $region32
        $region31: #{_lambda_.1} parent=11 // pred_region
          %812 = vsyncadd [#allocation12], 0
          %s813 = sshll.u32 %s11, 4
          %s814 = int_to_ptr.hbm [resolvable:$true] %s813
          %s815 = sshll.u32 [#allocation11], 4
          %s816 = int_to_ptr.vmem [resolvable:$true] %s815
          %821 = dma.hbm_to_vmem [thread:$0]  %s814, 512, %s816, [#allocation12], 128, 128, 8
        $region32: #{_lambda_.1} parent=11 // pred_fallthru
          _
        // Predicated region
        $region33: #{_lambda_.1} parent=11 // pred_check
          %p822 = pneg %p236
        $region34: #{_lambda_.1} parent=11 // pred_check_branch
          %824 = sbr.rel (%p822) target = $region36
        $region35: #{_lambda_.1} parent=11 // pred_region
          %826 = vsyncadd [#allocation12], 0
          %s828 = sshll.u32 %s13, 4
          %s829 = int_to_ptr.hbm [resolvable:$true] %s828
          %s830 = sshll.u32 [#allocation13], 4
          %s831 = int_to_ptr.vmem [resolvable:$true] %s830
          %833 = dma.hbm_to_vmem [thread:$0]  %s829, 128, %s831, [#allocation12]
        $region36: #{_lambda_.1} parent=11 // pred_fallthru
          _
        // Predicated region
        $region37: #{_lambda_.1} parent=11 // pred_check
          %p834 = pneg %p257
        $region38: #{_lambda_.1} parent=11 // pred_check_branch
          %836 = sbr.rel (%p834) target = $region40
        $region39: #{_lambda_.1} parent=11 // pred_region
          %838 = vsyncadd [#allocation15], 0
          %s839 = sshll.u32 %s15, 4
          %s840 = int_to_ptr.hbm [resolvable:$true] %s839
          %s841 = sshll.u32 [#allocation14], 4
          %s842 = int_to_ptr.vmem [resolvable:$true] %s841
          %847 = dma.hbm_to_vmem [thread:$0]  %s840, 512, %s842, [#allocation15], 128, 128, 8
        $region40: #{_lambda_.1} parent=11 // pred_fallthru
          _
        // Predicated region
        $region41: #{_lambda_.1} parent=11 // pred_check
          %p848 = pneg %p278
        $region42: #{_lambda_.1} parent=11 // pred_check_branch
          %850 = sbr.rel (%p848) target = $region44
        $region43: #{_lambda_.1} parent=11 // pred_region
          _
        $region44: #{_lambda_.1} parent=11 // pred_fallthru
          _
        // Predicated region
        $region45: #{_lambda_.1} parent=11 // pred_check
          %p851 = pneg %p299
        $region46: #{_lambda_.1} parent=11 // pred_check_branch
          %853 = sbr.rel (%p851) target = $region48
        $region47: #{_lambda_.1} parent=11 // pred_region
          %855 = vsyncadd [#allocation15], 0
          %s856 = sshll.u32 %s19, 4
          %s857 = int_to_ptr.hbm [resolvable:$true] %s856
          %s858 = sshll.u32 [#allocation16], 4
          %s859 = int_to_ptr.vmem [resolvable:$true] %s858
          %864 = dma.hbm_to_vmem [thread:$0]  %s857, 256, %s859, [#allocation15], 64, 64, 4
        $region48: #{_lambda_.1} parent=11 // pred_fallthru
          _
        // Predicated region
        $region49: #{_lambda_.1} parent=11 // pred_check
          %p865 = pneg %p320
        $region50: #{_lambda_.1} parent=11 // pred_check_branch
          %867 = sbr.rel (%p865) target = $region52
        $region51: #{_lambda_.1} parent=11 // pred_region
          %869 = vsyncadd [#allocation18], 0
          %s870 = sshll.u32 %s21, 4
          %s871 = int_to_ptr.hbm [resolvable:$true] %s870
          %s872 = sshll.u32 [#allocation17], 4
          %s873 = int_to_ptr.vmem [resolvable:$true] %s872
          %878 = dma.hbm_to_vmem [thread:$0]  %s871, 256, %s873, [#allocation18], 64, 64, 4
        $region52: #{_lambda_.1} parent=11 // pred_fallthru
          _
        // Predicated region
        $region53: #{_lambda_.1} parent=11 // pred_check
          %p879 = pneg %p341
        $region54: #{_lambda_.1} parent=11 // pred_check_branch
          %881 = sbr.rel (%p879) target = $region56
        $region55: #{_lambda_.1} parent=11 // pred_region
          _
        $region56: #{_lambda_.1} parent=11 // pred_fallthru
          _
        // Predicated region
        $region57: #{_lambda_.1} parent=11 // pred_check
          %p882 = pneg %p362
        $region58: #{_lambda_.1} parent=11 // pred_check_branch
          %884 = sbr.rel (%p882) target = $region60
        $region59: #{_lambda_.1} parent=11 // pred_region
          %886 = vsyncadd [#allocation18], 0
          %s887 = sshll.u32 %s25, 4
          %s888 = int_to_ptr.hbm [resolvable:$true] %s887
          %s889 = sshll.u32 [#allocation19], 4
          %s890 = int_to_ptr.vmem [resolvable:$true] %s889
          %895 = dma.hbm_to_vmem [thread:$0]  %s888, 256, %s890, [#allocation18], 64, 64, 4
        $region60: #{_lambda_.1} parent=11 // pred_fallthru
          _
        // Predicated region
        $region61: #{_lambda_.1} parent=11 // pred_check
          %p896 = pneg %p383
        $region62: #{_lambda_.1} parent=11 // pred_check_branch
          %898 = sbr.rel (%p896) target = $region64
        $region63: #{_lambda_.1} parent=11 // pred_region
          %900 = vsyncadd [#allocation21], 0
          %s901 = sshll.u32 %s27, 4
          %s902 = int_to_ptr.hbm [resolvable:$true] %s901
          %s903 = sshll.u32 [#allocation20], 4
          %s904 = int_to_ptr.vmem [resolvable:$true] %s903
          %909 = dma.hbm_to_vmem [thread:$0]  %s902, 512, %s904, [#allocation21], 64, 64, 4
        $region64: #{_lambda_.1} parent=11 // pred_fallthru
          _
        // Predicated region
        $region65: #{_lambda_.1} parent=11 // pred_check
          %p910 = pneg %p404
        $region66: #{_lambda_.1} parent=11 // pred_check_branch
          %912 = sbr.rel (%p910) target = $region68
        $region67: #{_lambda_.1} parent=11 // pred_region
          _
        $region68: #{_lambda_.1} parent=11 // pred_fallthru
          _
        // Predicated region
        $region69: #{_lambda_.1} parent=11 // pred_check
          %p913 = pneg %p425
        $region70: #{_lambda_.1} parent=11 // pred_check_branch
          %915 = sbr.rel (%p913) target = $region72
        $region71: #{_lambda_.1} parent=11 // pred_region
          %917 = vsyncadd [#allocation21], 0
          %s918 = sshll.u32 %s31, 4
          %s919 = int_to_ptr.hbm [resolvable:$true] %s918
          %s920 = sshll.u32 [#allocation22], 4
          %s921 = int_to_ptr.vmem [resolvable:$true] %s920
          %926 = dma.hbm_to_vmem [thread:$0]  %s919, 256, %s921, [#allocation21], 64, 64, 4
        $region72: #{_lambda_.1} parent=11 // pred_fallthru
          _
        // Predicated region
        $region73: #{_lambda_.1} parent=11 // pred_check
          %p927 = pneg %p446
        $region74: #{_lambda_.1} parent=11 // pred_check_branch
          %929 = sbr.rel (%p927) target = $region76
        $region75: #{_lambda_.1} parent=11 // pred_region
          %931 = vsyncadd [#allocation24], 0
          %s932 = sshll.u32 %s33, 4
          %s933 = int_to_ptr.hbm [resolvable:$true] %s932
          %s934 = sshll.u32 [#allocation23], 4
          %s935 = int_to_ptr.vmem [resolvable:$true] %s934
          %940 = dma.hbm_to_vmem [thread:$0]  %s933, 256, %s935, [#allocation24], 64, 64, 4
        $region76: #{_lambda_.1} parent=11 // pred_fallthru
          _
        // Predicated region
        $region77: #{_lambda_.1} parent=11 // pred_check
          %p941 = pneg %p467
        $region78: #{_lambda_.1} parent=11 // pred_check_branch
          %943 = sbr.rel (%p941) target = $region80
        $region79: #{_lambda_.1} parent=11 // pred_region
          %945 = vsyncadd [#allocation24], 0
          %s946 = sshll.u32 %s35, 4
          %s947 = int_to_ptr.hbm [resolvable:$true] %s946
          %s948 = sshll.u32 [#allocation25], 4
          %s949 = int_to_ptr.vmem [resolvable:$true] %s948
          %954 = dma.hbm_to_vmem [thread:$0]  %s947, 512, %s949, [#allocation24], 64, 64, 4
        $region80: #{_lambda_.1} parent=11 // pred_fallthru
          _
        // Predicated region
        $region81: #{_lambda_.1} parent=11 // pred_check
          %p955 = pneg %p488
        $region82: #{_lambda_.1} parent=11 // pred_check_branch
          %957 = sbr.rel (%p955) target = $region84
        $region83: #{_lambda_.1} parent=11 // pred_region
          _
        $region84: #{_lambda_.1} parent=11 // pred_fallthru
          _
        // Predicated region
        $region85: #{_lambda_.1} parent=11 // pred_check
          %p958 = pneg %p509
        $region86: #{_lambda_.1} parent=11 // pred_check_branch
          %960 = sbr.rel (%p958) target = $region88
        $region87: #{_lambda_.1} parent=11 // pred_region
          %962 = vsyncadd [#allocation27], 0
          %s963 = sshll.u32 %s39, 4
          %s964 = int_to_ptr.hbm [resolvable:$true] %s963
          %s965 = sshll.u32 [#allocation26], 4
          %s966 = int_to_ptr.vmem [resolvable:$true] %s965
          %971 = dma.hbm_to_vmem [thread:$0]  %s964, 256, %s966, [#allocation27], 64, 64, 4
        $region88: #{_lambda_.1} parent=11 // pred_fallthru
          _
        // Predicated region
        $region89: #{_lambda_.1} parent=11 // pred_check
          %p972 = pneg %p530
        $region90: #{_lambda_.1} parent=11 // pred_check_branch
          %974 = sbr.rel (%p972) target = $region92
        $region91: #{_lambda_.1} parent=11 // pred_region
          %976 = vsyncadd [#allocation27], 0
          %s977 = sshll.u32 %s41, 4
          %s978 = int_to_ptr.hbm [resolvable:$true] %s977
          %s979 = sshll.u32 [#allocation28], 4
          %s980 = int_to_ptr.vmem [resolvable:$true] %s979
          %985 = dma.hbm_to_vmem [thread:$0]  %s978, 256, %s980, [#allocation27], 64, 64, 4
        $region92: #{_lambda_.1} parent=11 // pred_fallthru
          _
        // Predicated region
        $region93: #{_lambda_.1} parent=11 // pred_check
          %p986 = pneg %p551
        $region94: #{_lambda_.1} parent=11 // pred_check_branch
          %988 = sbr.rel (%p986) target = $region96
        $region95: #{_lambda_.1} parent=11 // pred_region
          _
        $region96: #{_lambda_.1} parent=11 // pred_fallthru
          _
        // Predicated region
        $region97: #{_lambda_.1} parent=11 // pred_check
          %p989 = pneg %p572
        $region98: #{_lambda_.1} parent=11 // pred_check_branch
          %991 = sbr.rel (%p989) target = $region100
        $region99: #{_lambda_.1} parent=11 // pred_region
          %993 = vsyncadd [#allocation30], 0
          %s994 = sshll.u32 %s45, 4
          %s995 = int_to_ptr.hbm [resolvable:$true] %s994
          %s996 = sshll.u32 [#allocation29], 4
          %s997 = int_to_ptr.vmem [resolvable:$true] %s996
          %1002 = dma.hbm_to_vmem [thread:$0]  %s995, 256, %s997, [#allocation30], 64, 64, 4
        $region100: #{_lambda_.1} parent=11 // pred_fallthru
          _
        // Predicated region
        $region101: #{_lambda_.1} parent=11 // pred_check
          %p1003 = pneg %p593
        $region102: #{_lambda_.1} parent=11 // pred_check_branch
          %1005 = sbr.rel (%p1003) target = $region104
        $region103: #{_lambda_.1} parent=11 // pred_region
          %1007 = vsyncadd [#allocation30], 0
          %s1008 = sshll.u32 %s47, 4
          %s1009 = int_to_ptr.hbm [resolvable:$true] %s1008
          %s1010 = sshll.u32 [#allocation31], 4
          %s1011 = int_to_ptr.vmem [resolvable:$true] %s1010
          %1016 = dma.hbm_to_vmem [thread:$0]  %s1009, 512, %s1011, [#allocation30], 64, 64, 4
        $region104: #{_lambda_.1} parent=11 // pred_fallthru
          _
        // Predicated region
        $region105: #{_lambda_.1} parent=11 // pred_check
          %p1017 = pneg %p614
        $region106: #{_lambda_.1} parent=11 // pred_check_branch
          %1019 = sbr.rel (%p1017) target = $region108
        $region107: #{_lambda_.1} parent=11 // pred_region
          _
        $region108: #{_lambda_.1} parent=11 // pred_fallthru
          _
        // Predicated region
        $region109: #{_lambda_.1} parent=11 // pred_check
          %p1020 = pneg %p635
        $region110: #{_lambda_.1} parent=11 // pred_check_branch
          %1022 = sbr.rel (%p1020) target = $region112
        $region111: #{_lambda_.1} parent=11 // pred_region
          _
        $region112: #{_lambda_.1} parent=11 // pred_fallthru
          _
        // Predicated region
        $region113: #{_lambda_.1} parent=11 // pred_check
          %p1023 = pneg %p656
        $region114: #{_lambda_.1} parent=11 // pred_check_branch
          %1025 = sbr.rel (%p1023) target = $region116
        $region115: #{_lambda_.1} parent=11 // pred_region
          %1027 = vsyncadd [#allocation33], 0
          %s1028 = sshll.u32 %s53, 4
          %s1029 = int_to_ptr.hbm [resolvable:$true] %s1028
          %s1030 = sshll.u32 [#allocation32], 4
          %s1031 = int_to_ptr.vmem [resolvable:$true] %s1030
          %1036 = dma.hbm_to_vmem [thread:$0]  %s1029, 512, %s1031, [#allocation33], 128, 128, 8
        $region116: #{_lambda_.1} parent=11 // pred_fallthru
          _
        // Predicated region
        $region117: #{_lambda_.1} parent=11 // pred_check
          %p1037 = pneg %p677
        $region118: #{_lambda_.1} parent=11 // pred_check_branch
          %1039 = sbr.rel (%p1037) target = $region120
        $region119: #{_lambda_.1} parent=11 // pred_region
          %1041 = vsyncadd [#allocation33], 0
          %s1042 = sshll.u32 %s55, 4
          %s1043 = int_to_ptr.hbm [resolvable:$true] %s1042
          %s1044 = sshll.u32 [#allocation34], 4
          %s1045 = int_to_ptr.vmem [resolvable:$true] %s1044
          %1050 = dma.hbm_to_vmem [thread:$0]  %s1043, 512, %s1045, [#allocation33], 128, 128, 8
        $region120: #{_lambda_.1} parent=11 // pred_fallthru
          _
        // Predicated region
        $region121: #{_lambda_.1} parent=11 // pred_check
          %p1051 = pneg %p698
        $region122: #{_lambda_.1} parent=11 // pred_check_branch
          %1053 = sbr.rel (%p1051) target = $region124
        $region123: #{_lambda_.1} parent=11 // pred_region
          %1055 = vsyncadd [#allocation36], 0
          %s1056 = sshll.u32 %s57, 4
          %s1057 = int_to_ptr.hbm [resolvable:$true] %s1056
          %s1058 = sshll.u32 [#allocation35], 4
          %s1059 = int_to_ptr.vmem [resolvable:$true] %s1058
          %1064 = dma.hbm_to_vmem [thread:$0]  %s1057, 1280, %s1059, [#allocation36], 64, 64, 4
        $region124: #{_lambda_.1} parent=11 // pred_fallthru
          _
        // Predicated region
        $region125: #{_lambda_.1} parent=11 // pred_check
          %p1065 = pneg %p719
        $region126: #{_lambda_.1} parent=11 // pred_check_branch
          %1067 = sbr.rel (%p1065) target = $region128
        $region127: #{_lambda_.1} parent=11 // pred_region
          _
        $region128: #{_lambda_.1} parent=11 // pred_fallthru
          _
      $region12: #{_lambda_.1} parent=5 // pred_fallthru
        _
      %p1068 = scmp.lt.s32.totalorder %s84, 2
      // Predicated region
      $region129: #{_lambda_.1} parent=5 // pred_check
        %p1069 = pneg %p1068
      $region130: #{_lambda_.1} parent=5 // pred_check_branch
        %1071 = sbr.rel (%p1069) target = $region132
      $region131: #{_lambda_.1} parent=5 // pred_region
        // Predicated region
        $region133: #{_lambda_.1} parent=131 // pred_check
          %p1072 = pneg %p104
        $region134: #{_lambda_.1} parent=131 // pred_check_branch
          %1074 = sbr.rel (%p1072) target = $region136
        $region135: #{_lambda_.1} parent=131 // pred_region
          %s1075 = sand.u32 %s94, 1
          %s1076 = scalar_lea.sflag [#allocation3], %s1075
          %s1077 = sand.u32 %s94, 1
          %s1078 = smul.addr %s1077, 8
          %s1079 = scalar_lea.vmem [#allocation2], %s1078
          %1081 = vsyncadd %s1076, 0
          %s1082 = smul.addr %s84, 8
          %s1083 = scalar_lea.hbm %s1, %s1082
          %s1085 = sshll.u32 %s1083, 4
          %s1086 = int_to_ptr.hbm [resolvable:$true] %s1085
          %s1087 = sshll.u32 %s1079, 4
          %s1088 = int_to_ptr.vmem [resolvable:$true] %s1087
          %1090 = dma.hbm_to_vmem [thread:$0]  %s1086, 128, %s1088, %s1076
        $region136: #{_lambda_.1} parent=131 // pred_fallthru
          _
      $region132: #{_lambda_.1} parent=5 // pred_fallthru
        _
      %p1091 = scmp.le.s32.totalorder 1, %s84
      %p1092 = scmp.lt.s32.totalorder %s84, 3
      %p1093 = pnand %p1091, %p1092
      %p1094 = pneg %p1093
      // Predicated region
      $region137: #{_lambda_.1} parent=5 // pred_check
        _
      $region138: #{_lambda_.1} parent=5 // pred_check_branch
        %1096 = sbr.rel (%p1093) target = $region140
      $region139: #{_lambda_.1} parent=5 // pred_region
        %s1097 = ssub.s32 %s84, 1
        %s1098 = sand.u32 %s97, 1
        %s1099 = scalar_lea.sflag [#allocation3], %s1098
        %s1100 = sand.u32 %s97, 1
        %s1101 = smul.addr %s1100, 8
        %s1102 = scalar_lea.vmem [#allocation2], %s1101
        // Predicated region
        $region141: #{_lambda_.1} parent=139 // pred_check
          %p1103 = pneg %p110
        $region142: #{_lambda_.1} parent=139 // pred_check_branch
          %1105 = sbr.rel (%p1103) target = $region144
        $region143: #{_lambda_.1} parent=139 // pred_region
          %1107 = dma.done %s1099, 128
        $region144: #{_lambda_.1} parent=139 // pred_fallthru
          _
        // Predicated region
        $region145: #{_lambda_.1} parent=139 // pred_check
          %p1108 = pneg %p131
        $region146: #{_lambda_.1} parent=139 // pred_check_branch
          %1110 = sbr.rel (%p1108) target = $region148
        $region147: #{_lambda_.1} parent=139 // pred_region
          %1112 = dma.done [#allocation6], 128
        $region148: #{_lambda_.1} parent=139 // pred_fallthru
          _
        // Predicated region
        $region149: #{_lambda_.1} parent=139 // pred_check
          %p1113 = pneg %p152
        $region150: #{_lambda_.1} parent=139 // pred_check_branch
          %1115 = sbr.rel (%p1113) target = $region152
        $region151: #{_lambda_.1} parent=139 // pred_region
          %1117 = dma.done [#allocation6], 128
        $region152: #{_lambda_.1} parent=139 // pred_fallthru
          _
        // Predicated region
        $region153: #{_lambda_.1} parent=139 // pred_check
          %p1118 = pneg %p173
        $region154: #{_lambda_.1} parent=139 // pred_check_branch
          %1120 = sbr.rel (%p1118) target = $region156
        $region155: #{_lambda_.1} parent=139 // pred_region
          %1122 = dma.done [#allocation9], 128
        $region156: #{_lambda_.1} parent=139 // pred_fallthru
          _
        // Predicated region
        $region157: #{_lambda_.1} parent=139 // pred_check
          %p1123 = pneg %p194
        $region158: #{_lambda_.1} parent=139 // pred_check_branch
          %1125 = sbr.rel (%p1123) target = $region160
        $region159: #{_lambda_.1} parent=139 // pred_region
          %1127 = dma.done [#allocation9], 128
        $region160: #{_lambda_.1} parent=139 // pred_fallthru
          _
        // Predicated region
        $region161: #{_lambda_.1} parent=139 // pred_check
          %p1128 = pneg %p215
        $region162: #{_lambda_.1} parent=139 // pred_check_branch
          %1130 = sbr.rel (%p1128) target = $region164
        $region163: #{_lambda_.1} parent=139 // pred_region
          %1132 = dma.done [#allocation12], 512
        $region164: #{_lambda_.1} parent=139 // pred_fallthru
          _
        // Predicated region
        $region165: #{_lambda_.1} parent=139 // pred_check
          %p1133 = pneg %p236
        $region166: #{_lambda_.1} parent=139 // pred_check_branch
          %1135 = sbr.rel (%p1133) target = $region168
        $region167: #{_lambda_.1} parent=139 // pred_region
          %1137 = dma.done [#allocation12], 128
        $region168: #{_lambda_.1} parent=139 // pred_fallthru
          _
        // Predicated region
        $region169: #{_lambda_.1} parent=139 // pred_check
          %p1138 = pneg %p257
        $region170: #{_lambda_.1} parent=139 // pred_check_branch
          %1140 = sbr.rel (%p1138) target = $region172
        $region171: #{_lambda_.1} parent=139 // pred_region
          %1142 = dma.done [#allocation15], 512
        $region172: #{_lambda_.1} parent=139 // pred_fallthru
          _
        // Predicated region
        $region173: #{_lambda_.1} parent=139 // pred_check
          %p1143 = pneg %p299
        $region174: #{_lambda_.1} parent=139 // pred_check_branch
          %1145 = sbr.rel (%p1143) target = $region176
        $region175: #{_lambda_.1} parent=139 // pred_region
          %1147 = dma.done [#allocation15], 256
        $region176: #{_lambda_.1} parent=139 // pred_fallthru
          _
        // Predicated region
        $region177: #{_lambda_.1} parent=139 // pred_check
          %p1148 = pneg %p320
        $region178: #{_lambda_.1} parent=139 // pred_check_branch
          %1150 = sbr.rel (%p1148) target = $region180
        $region179: #{_lambda_.1} parent=139 // pred_region
          %1152 = dma.done [#allocation18], 256
        $region180: #{_lambda_.1} parent=139 // pred_fallthru
          _
        // Predicated region
        $region181: #{_lambda_.1} parent=139 // pred_check
          %p1153 = pneg %p362
        $region182: #{_lambda_.1} parent=139 // pred_check_branch
          %1155 = sbr.rel (%p1153) target = $region184
        $region183: #{_lambda_.1} parent=139 // pred_region
          %1157 = dma.done [#allocation18], 256
        $region184: #{_lambda_.1} parent=139 // pred_fallthru
          _
        // Predicated region
        $region185: #{_lambda_.1} parent=139 // pred_check
          %p1158 = pneg %p383
        $region186: #{_lambda_.1} parent=139 // pred_check_branch
          %1160 = sbr.rel (%p1158) target = $region188
        $region187: #{_lambda_.1} parent=139 // pred_region
          %1162 = dma.done [#allocation21], 512
        $region188: #{_lambda_.1} parent=139 // pred_fallthru
          _
        // Predicated region
        $region189: #{_lambda_.1} parent=139 // pred_check
          %p1163 = pneg %p425
        $region190: #{_lambda_.1} parent=139 // pred_check_branch
          %1165 = sbr.rel (%p1163) target = $region192
        $region191: #{_lambda_.1} parent=139 // pred_region
          %1167 = dma.done [#allocation21], 256
        $region192: #{_lambda_.1} parent=139 // pred_fallthru
          _
        // Predicated region
        $region193: #{_lambda_.1} parent=139 // pred_check
          %p1168 = pneg %p446
        $region194: #{_lambda_.1} parent=139 // pred_check_branch
          %1170 = sbr.rel (%p1168) target = $region196
        $region195: #{_lambda_.1} parent=139 // pred_region
          %1172 = dma.done [#allocation24], 256
        $region196: #{_lambda_.1} parent=139 // pred_fallthru
          _
        // Predicated region
        $region197: #{_lambda_.1} parent=139 // pred_check
          %p1173 = pneg %p467
        $region198: #{_lambda_.1} parent=139 // pred_check_branch
          %1175 = sbr.rel (%p1173) target = $region200
        $region199: #{_lambda_.1} parent=139 // pred_region
          %1177 = dma.done [#allocation24], 512
        $region200: #{_lambda_.1} parent=139 // pred_fallthru
          _
        // Predicated region
        $region201: #{_lambda_.1} parent=139 // pred_check
          %p1178 = pneg %p509
        $region202: #{_lambda_.1} parent=139 // pred_check_branch
          %1180 = sbr.rel (%p1178) target = $region204
        $region203: #{_lambda_.1} parent=139 // pred_region
          %1182 = dma.done [#allocation27], 256
        $region204: #{_lambda_.1} parent=139 // pred_fallthru
          _
        // Predicated region
        $region205: #{_lambda_.1} parent=139 // pred_check
          %p1183 = pneg %p530
        $region206: #{_lambda_.1} parent=139 // pred_check_branch
          %1185 = sbr.rel (%p1183) target = $region208
        $region207: #{_lambda_.1} parent=139 // pred_region
          %1187 = dma.done [#allocation27], 256
        $region208: #{_lambda_.1} parent=139 // pred_fallthru
          _
        // Predicated region
        $region209: #{_lambda_.1} parent=139 // pred_check
          %p1188 = pneg %p572
        $region210: #{_lambda_.1} parent=139 // pred_check_branch
          %1190 = sbr.rel (%p1188) target = $region212
        $region211: #{_lambda_.1} parent=139 // pred_region
          %1192 = dma.done [#allocation30], 256
        $region212: #{_lambda_.1} parent=139 // pred_fallthru
          _
        // Predicated region
        $region213: #{_lambda_.1} parent=139 // pred_check
          %p1193 = pneg %p593
        $region214: #{_lambda_.1} parent=139 // pred_check_branch
          %1195 = sbr.rel (%p1193) target = $region216
        $region215: #{_lambda_.1} parent=139 // pred_region
          %1197 = dma.done [#allocation30], 512
        $region216: #{_lambda_.1} parent=139 // pred_fallthru
          _
        // Predicated region
        $region217: #{_lambda_.1} parent=139 // pred_check
          %p1198 = pneg %p656
        $region218: #{_lambda_.1} parent=139 // pred_check_branch
          %1200 = sbr.rel (%p1198) target = $region220
        $region219: #{_lambda_.1} parent=139 // pred_region
          %1202 = dma.done [#allocation33], 512
        $region220: #{_lambda_.1} parent=139 // pred_fallthru
          _
        // Predicated region
        $region221: #{_lambda_.1} parent=139 // pred_check
          %p1203 = pneg %p677
        $region222: #{_lambda_.1} parent=139 // pred_check_branch
          %1205 = sbr.rel (%p1203) target = $region224
        $region223: #{_lambda_.1} parent=139 // pred_region
          %1207 = dma.done [#allocation33], 512
        $region224: #{_lambda_.1} parent=139 // pred_fallthru
          _
        // Predicated region
        $region225: #{_lambda_.1} parent=139 // pred_check
          %p1208 = pneg %p698
        $region226: #{_lambda_.1} parent=139 // pred_check_branch
          %1210 = sbr.rel (%p1208) target = $region228
        $region227: #{_lambda_.1} parent=139 // pred_region
          %1212 = dma.done [#allocation36], 1280
        $region228: #{_lambda_.1} parent=139 // pred_fallthru
          _
        %s1213 = sand.u32 %s97, 1
        %s1214 = scalar_lea.sflag [#allocation3], %s1213
        %s1215 = sand.u32 %s97, 1
        %s1216 = smul.addr %s1215, 8
        %s1217 = scalar_lea.vmem [#allocation2], %s1216
        %p1218 = pneg %p110
        %p1219 = pneg %p107
        %p1220 = pneg %p131
        %p1221 = pneg %p128
        %p1222 = pneg %p152
        %p1223 = pneg %p149
        %p1224 = pneg %p173
        %p1225 = pneg %p170
        %p1226 = pneg %p194
        %p1227 = pneg %p191
        %p1228 = pneg %p215
        %p1229 = pneg %p212
        %p1230 = pneg %p236
        %p1231 = pneg %p233
        %p1232 = pneg %p257
        %p1233 = pneg %p254
        %p1234 = pneg %p278
        %p1235 = pneg %p275
        %p1236 = pneg %p299
        %p1237 = pneg %p296
        %p1238 = pneg %p320
        %p1239 = pneg %p317
        %p1240 = pneg %p341
        %p1241 = pneg %p338
        %p1242 = pneg %p362
        %p1243 = pneg %p359
        %p1244 = pneg %p383
        %p1245 = pneg %p380
        %p1246 = pneg %p404
        %p1247 = pneg %p401
        %p1248 = pneg %p425
        %p1249 = pneg %p422
        %p1250 = pneg %p446
        %p1251 = pneg %p443
        %p1252 = pneg %p467
        %p1253 = pneg %p464
        %p1254 = pneg %p488
        %p1255 = pneg %p485
        %p1256 = pneg %p509
        %p1257 = pneg %p506
        %p1258 = pneg %p530
        %p1259 = pneg %p527
        %p1260 = pneg %p551
        %p1261 = pneg %p548
        %p1262 = pneg %p572
        %p1263 = pneg %p569
        %p1264 = pneg %p593
        %p1265 = pneg %p590
        %p1266 = pneg %p614
        %p1267 = pneg %p611
        %p1268 = pneg %p635
        %p1269 = pneg %p632
        %p1270 = pneg %p656
        %p1271 = pneg %p653
        %p1272 = pneg %p677
        %p1273 = pneg %p674
        %p1274 = pneg %p698
        %p1275 = pneg %p695
        %p1276 = pneg %p719
        %p1277 = pneg %p716
        %p1278 = pneg %p745
        %p1279 = pneg %p742
        %s1280 = sand.u32 %s732, 1
        %s1281 = scalar_lea.sflag [#allocation4], %s1280
        %s1282 = sand.u32 %s732, 1
        %s1283 = smul.addr %s1282, 8
        %s1284 = scalar_lea.vmem [#allocation37], %s1283
        %v1286 = vld [vmem:[%s1102] sm:$0xff]
        %v1287 = vld [vmem:[#allocation5] sm:$0xff]
        %v1288 = vld [vmem:[#allocation7] sm:$0xff]
        %v1289 = vld [vmem:[#allocation8] sm:$0xff]
        %v1290 = vld [vmem:[#allocation10] sm:$0xff]
        %v1291 = vld [vmem:[#allocation11] sm:$0xff]
        %v1292 = vld [vmem:[#allocation11 + $0x8] sm:$0xff]
        %v1293 = vld [vmem:[#allocation11 + $0x10] sm:$0xff]
        %v1294 = vld [vmem:[#allocation11 + $0x18] sm:$0xff]
        %v1295 = vld [vmem:[#allocation13] sm:$0xff]
        %v1296 = vld [vmem:[#allocation14] sm:$0xff]
        %v1297 = vld [vmem:[#allocation14 + $0x8] sm:$0xff]
        %v1298 = vld [vmem:[#allocation14 + $0x10] sm:$0xff]
        %v1299 = vld [vmem:[#allocation14 + $0x18] sm:$0xff]
        %v1300 = vld [vmem:[%s17] sm:$0x1]
        %v1301 = vld [vmem:[#allocation16] sm:$0xf]
        %v1302 = vld [vmem:[#allocation16 + $0x4] sm:$0xf]
        %v1303 = vld [vmem:[#allocation16 + $0x8] sm:$0xf]
        %v1304 = vld [vmem:[#allocation16 + $0xc] sm:$0xf]
        %v1305 = vld [vmem:[#allocation17] sm:$0xf]
        %v1306 = vld [vmem:[#allocation17 + $0x4] sm:$0xf]
        %v1307 = vld [vmem:[#allocation17 + $0x8] sm:$0xf]
        %v1308 = vld [vmem:[#allocation17 + $0xc] sm:$0xf]
        %v1309 = vld [vmem:[%s23] sm:$0x1]
        %v1310 = vld [vmem:[#allocation19] sm:$0xf]
        %v1311 = vld [vmem:[#allocation19 + $0x4] sm:$0xf]
        %v1312 = vld [vmem:[#allocation19 + $0x8] sm:$0xf]
        %v1313 = vld [vmem:[#allocation19 + $0xc] sm:$0xf]
        %v1314 = vld [vmem:[#allocation20] sm:$0xf]
        %v1315 = vld [vmem:[#allocation20 + $0x4] sm:$0xf]
        %v1316 = vld [vmem:[#allocation20 + $0x8] sm:$0xf]
        %v1317 = vld [vmem:[#allocation20 + $0xc] sm:$0xf]
        %v1318 = vld [vmem:[#allocation20 + $0x10] sm:$0xf]
        %v1319 = vld [vmem:[#allocation20 + $0x14] sm:$0xf]
        %v1320 = vld [vmem:[#allocation20 + $0x18] sm:$0xf]
        %v1321 = vld [vmem:[#allocation20 + $0x1c] sm:$0xf]
        %v1322 = vmul.f32 %v1286, %v1286
        %vm1323 = vcmask 261120
        %v1324 = vsel %vm1323, %v1322, 0.0
        %1325 = vadd.xlane.f32.xlu0 %v1324
        %v1326 = vpop.xlane.xlu0 %1325
        %v1327 = vrcp.pop 32.0
        %v1328 = vmul.f32 32.0, %v1327
        %v1329 = vsub.f32 1.0, %v1328
        %v1330 = vmul.f32 %v1327, %v1329
        %v1331 = vadd.f32 %v1327, %v1330
        %vm1332 = vweird.f32 %v1327
        %v1333 = vsel %vm1332, %v1327, %v1331
        %v1334 = vmul.f32 %v1326, %v1333
        %v1335 = vadd.f32 %v1334, 1.1920929e-07
        %v1336 = vrsqrt.pop %v1335
        %v1337 = vmul.f32 %v1336, %v1335
        %v1338 = vmul.f32 %v1337, %v1336
        %v1339 = vmul.f32 0.5, %v1338
        %v1340 = vsub.f32 1.5, %v1339
        %v1341 = vmul.f32 %v1336, %v1340
        %vm1342 = vweird.f32 %v1335
        %vm1343 = vweird.f32 %v1336
        %vm1344 = vmor %vm1342, %vm1343
        %v1345 = vsel %vm1344, %v1336, %v1341
        %v1346 = vmul.f32 %v1286, %v1345
        %v1348 = vperm.slane %v1300, 0
        %v1350 = vmul.f32 %v1346, %v1348
        %v1351 = vpack.c.bf16 %v1350, %v1350
        %v1356 = vunpack.c.l.b16 %v1301
        %v1357 = vunpack.c.l.b16 %v1302
        %v1358 = vunpack.c.l.b16 %v1303
        %v1359 = vunpack.c.l.b16 %v1304
        %v1360 = vpack.c.b16 %v1357, %v1356
        %v1361 = vpack.c.b16 %v1359, %v1358
        %v1365 = vsel %vm1323, %v1351, 0
        %1367 = vmatpush.bf16.msra.mxu0 0
        %1368 = vmatpush.bf16.msra.mxu0 0
        %1369 = vmatpush.bf16.msra.mxu0 0
        %1370 = vmatpush.bf16.msra.mxu0 0
        %1371 = vmatpush.bf16.msra.mxu0 0
        %1372 = vmatpush.bf16.msra.mxu0 0
        %1373 = vmatpush.bf16.msra.mxu0 %v1361
        %1374 = vmatpush.bf16.msra.mxu0 %v1360
        %1375 = vmatmul.bf16.gmra.mxu0 %v1365
        %v1376 = vpop.f32.mrf.mxu0
        %v1377 = vadd.f32 0.0, %v1376
        %v1378 = vpop.f32.mrf.mxu0
        %1379 = vdwg.mxu0
        %1381 = vrot.lane.b32.xlu0 %v1287, 64
        %v1382 = vpop.permute.xlu0 %1381
        %v1384 = vmul.f32 %v1377, %v1382
        %1386 = vrot.lane.b32.xlu0 %v1377, 64
        %v1387 = vpop.permute.xlu0 %1386
        %v1388 = vsel %vm1323, %v1387, 0
        %1390 = vmatpush.msra.mxu0 0.0
        %1391 = vmatpush.msra.mxu0 0.0
        %1392 = vmatpush.msra.mxu0 0.0
        %1393 = vmatpush.msra.mxu0 0.0
        %1394 = vmatpush.msra.mxu0 0.0
        %1395 = vmatpush.msra.mxu0 0.0
        %1396 = vmatpush.msra.mxu0 0.0
        %1397 = vmatpush.msra.mxu0 0.0
        %1398 = vmatpush.msra.mxu0 0.0
        %1399 = vmatpush.msra.mxu0 0.0
        %1400 = vmatpush.msra.mxu0 0.0
        %1401 = vmatpush.msra.mxu0 0.0
        %1402 = vmatpush.msra.mxu0 %v1294
        %1403 = vmatpush.msra.mxu0 %v1293
        %1404 = vmatpush.msra.mxu0 %v1292
        %1405 = vmatpush.msra.mxu0 %v1291
        %1406 = vmatmul.f32.gmra.mxu0 %v1388
        %v1407 = vpop.f32.mrf.mxu0
        %v1408 = vadd.f32 0.0, %v1407
        %1409 = vdwg.mxu0
        %v1410 = vmul.f32 %v1408, %v1288
        %1412 = vrot.lane.b32.xlu0 %v1410, 64
        %v1413 = vpop.permute.xlu0 %1412
        %v1415 = vadd.f32 %v1384, %v1413
        %v1420 = vunpack.c.l.b16 %v1305
        %v1421 = vunpack.c.l.b16 %v1306
        %v1422 = vunpack.c.l.b16 %v1307
        %v1423 = vunpack.c.l.b16 %v1308
        %v1424 = vpack.c.b16 %v1421, %v1420
        %v1425 = vpack.c.b16 %v1423, %v1422
        %1428 = vmatpush.bf16.msra.mxu0 0
        %1429 = vmatpush.bf16.msra.mxu0 0
        %1430 = vmatpush.bf16.msra.mxu0 0
        %1431 = vmatpush.bf16.msra.mxu0 0
        %1432 = vmatpush.bf16.msra.mxu0 0
        %1433 = vmatpush.bf16.msra.mxu0 0
        %1434 = vmatpush.bf16.msra.mxu0 %v1425
        %1435 = vmatpush.bf16.msra.mxu0 %v1424
        %1436 = vmatmul.bf16.gmra.mxu0 %v1365
        %v1437 = vpop.f32.mrf.mxu0
        %v1438 = vadd.f32 0.0, %v1437
        %v1439 = vpop.f32.mrf.mxu0
        %1440 = vdwg.mxu0
        %1442 = vrot.lane.b32.xlu0 %v1289, 32
        %v1443 = vpop.permute.xlu0 %1442
        %v1445 = vmul.f32 %v1438, %v1443
        %1447 = vrot.lane.b32.xlu0 %v1438, 96
        %v1448 = vpop.permute.xlu0 %1447
        %vm1449 = vcmask 64512
        %v1450 = vsel %vm1449, %v1448, 0
        %1452 = vmatpush.msra.mxu0 0.0
        %1453 = vmatpush.msra.mxu0 0.0
        %1454 = vmatpush.msra.mxu0 0.0
        %1455 = vmatpush.msra.mxu0 0.0
        %1456 = vmatpush.msra.mxu0 0.0
        %1457 = vmatpush.msra.mxu0 0.0
        %1458 = vmatpush.msra.mxu0 0.0
        %1459 = vmatpush.msra.mxu0 0.0
        %1460 = vmatpush.msra.mxu0 0.0
        %1461 = vmatpush.msra.mxu0 0.0
        %1462 = vmatpush.msra.mxu0 0.0
        %1463 = vmatpush.msra.mxu0 0.0
        %1464 = vmatpush.msra.mxu0 0.0
        %1465 = vmatpush.msra.mxu0 0.0
        %1466 = vmatpush.msra.mxu0 0.0
        %1467 = vmatpush.msra.mxu0 %v1295
        %1468 = vmatmul.f32.gmra.mxu0 %v1450
        %v1469 = vpop.f32.mrf.mxu0
        %v1470 = vadd.f32 0.0, %v1469
        %1471 = vdwg.mxu0
        %v1472 = vmul.f32 %v1470, %v1290
        %1474 = vrot.lane.b32.xlu0 %v1472, 32
        %v1475 = vpop.permute.xlu0 %1474
        %v1477 = vadd.f32 %v1445, %v1475
        %v1478 = vmul.f32 %v1438, %v1438
        %v1479 = vsel %vm1323, %v1478, 0.0
        %1480 = vadd.xlane.f32.xlu0 %v1479
        %v1481 = vpop.xlane.xlu0 %1480
        %v1482 = vmul.f32 %v1481, %v1333
        %v1483 = vadd.f32 %v1482, 1.1920929e-07
        %v1484 = vrsqrt.pop %v1483
        %v1485 = vmul.f32 %v1484, %v1483
        %v1486 = vmul.f32 %v1485, %v1484
        %v1487 = vmul.f32 0.5, %v1486
        %v1488 = vsub.f32 1.5, %v1487
        %v1489 = vmul.f32 %v1484, %v1488
        %vm1490 = vweird.f32 %v1483
        %vm1491 = vweird.f32 %v1484
        %vm1492 = vmor %vm1490, %vm1491
        %v1493 = vsel %vm1492, %v1484, %v1489
        %v1494 = vmul.f32 %v1438, %v1493
        %v1496 = vperm.slane %v1309, 0
        %v1498 = vmul.f32 %v1494, %v1496
        %v1499 = vpack.c.bf16 %v1498, %v1498
        %v1504 = vunpack.c.l.b16 %v1310
        %v1505 = vunpack.c.l.b16 %v1311
        %v1506 = vunpack.c.l.b16 %v1312
        %v1507 = vunpack.c.l.b16 %v1313
        %v1508 = vpack.c.b16 %v1505, %v1504
        %v1509 = vpack.c.b16 %v1507, %v1506
        %v1513 = vsel %vm1323, %v1499, 0
        %1515 = vmatpush.bf16.msra.mxu0 0
        %1516 = vmatpush.bf16.msra.mxu0 0
        %1517 = vmatpush.bf16.msra.mxu0 0
        %1518 = vmatpush.bf16.msra.mxu0 0
        %1519 = vmatpush.bf16.msra.mxu0 0
        %1520 = vmatpush.bf16.msra.mxu0 0
        %1521 = vmatpush.bf16.msra.mxu0 %v1509
        %1522 = vmatpush.bf16.msra.mxu0 %v1508
        %1523 = vmatmul.bf16.gmra.mxu0 %v1513
        %v1524 = vpop.f32.mrf.mxu0
        %v1525 = vadd.f32 0.0, %v1524
        %v1526 = vpop.f32.mrf.mxu0
        %1527 = vdwg.mxu0
        %1528 = vrot.lane.b32.xlu0 %v1377, 112
        %v1529 = vpop.permute.xlu0 %1528
        %1531 = vrot.lane.b32.xlu0 %v1377, 96
        %v1532 = vpop.permute.xlu0 %1531
        %1534 = vrot.lane.b32.xlu0 %v1377, 80
        %v1535 = vpop.permute.xlu0 %1534
        %1538 = vrot.lane.b32.xlu0 %v1415, 120
        %v1539 = vpop.permute.xlu0 %1538
        %1541 = vrot.lane.b32.xlu0 %v1415, 112
        %v1542 = vpop.permute.xlu0 %1541
        %1544 = vrot.lane.b32.xlu0 %v1415, 104
        %v1545 = vpop.permute.xlu0 %1544
        %1548 = vrot.lane.b32.xlu0 %v1525, 112
        %v1549 = vpop.permute.xlu0 %1548
        %1551 = vrot.lane.b32.xlu0 %v1525, 96
        %v1552 = vpop.permute.xlu0 %1551
        %1554 = vrot.lane.b32.xlu0 %v1525, 80
        %v1555 = vpop.permute.xlu0 %1554
        %v1557 = vpack.c.bf16 %v1529, %v1377
        %v1558 = vpack.c.bf16 %v1535, %v1532
        %v1559 = vpack.c.bf16 %v1549, %v1525
        %v1560 = vpack.c.bf16 %v1555, %v1552
        %v1561 = vpack.c.bf16 %v1539, %v1415
        %v1562 = vpack.c.bf16 %v1545, %v1542
        %v1563 = vpack.c.bf16 %v1477, %v1477
        %1566 = vrot.lane.b32.xlu0 %v1561, 64
        %v1567 = vpop.permute.xlu0 %1566
        %1568 = vrot.lane.b32.xlu0 %v1562, 64
        %v1569 = vpop.permute.xlu0 %1568
        %1571 = vrot.lane.b32.xlu0 %v1563, 96
        %v1572 = vpop.permute.xlu0 %1571
        %v1574 = vsel %vm1449, %v1567, 0
        %v1577 = vsel %vm1449, %v1569, 0
        %v1580 = vsel %vm1449, %v1572, 0
        %1582 = vmatpush.bf16.xpose.msra.mxu0 0
        %1583 = vmatpush.bf16.xpose.msra.mxu0 0
        %1584 = vmatpush.bf16.xpose.msra.mxu0 0
        %1585 = vmatpush.bf16.xpose.msra.mxu0 0
        %1586 = vmatpush.bf16.xpose.msra.mxu0 0
        %1587 = vmatpush.bf16.xpose.msra.mxu0 0
        %1588 = vmatpush.bf16.xpose.msra.mxu0 %v1580
        %1589 = vmatpush.bf16.xpose.msra.mxu0 %v1580
        %1590 = vmatmul.bf16.gmra.mxu0 %v1574
        %v1591 = vpop.f32.mrf.mxu0
        %v1592 = vadd.f32 0.0, %v1591
        %v1593 = vpop.f32.mrf.mxu0
        %v1594 = vadd.f32 0.0, %v1593
        %1595 = vmatmul.bf16.gmra.mxu0 %v1577
        %v1596 = vpop.f32.mrf.mxu0
        %v1597 = vadd.f32 0.0, %v1596
        %v1598 = vpop.f32.mrf.mxu0
        %v1599 = vadd.f32 0.0, %v1598
        %1600 = vdwg.mxu0
        %vm1601 = vcmask 130048
        %v1603 = vsel %vm1601, %v1557, 0
        %v1606 = vsel %vm1601, %v1558, 0
        %v1609 = vsel %vm1601, %v1559, 0
        %v1612 = vsel %vm1601, %v1560, 0
        %1614 = vmatpush.bf16.xpose.msra.mxu0 0
        %1615 = vmatpush.bf16.xpose.msra.mxu0 0
        %1616 = vmatpush.bf16.xpose.msra.mxu0 0
        %1617 = vmatpush.bf16.xpose.msra.mxu0 0
        %1618 = vmatpush.bf16.xpose.msra.mxu0 0
        %1619 = vmatpush.bf16.xpose.msra.mxu0 0
        %1620 = vmatpush.bf16.xpose.msra.mxu0 %v1612
        %1621 = vmatpush.bf16.xpose.msra.mxu0 %v1609
        %1622 = vmatmul.bf16.gmra.mxu0 %v1603
        %v1623 = vpop.f32.mrf.mxu0
        %v1624 = vadd.f32 %v1592, %v1623
        %v1625 = vpop.f32.mrf.mxu0
        %v1626 = vadd.f32 %v1594, %v1625
        %1627 = vmatmul.bf16.gmra.mxu0 %v1606
        %v1628 = vpop.f32.mrf.mxu0
        %v1629 = vadd.f32 %v1597, %v1628
        %v1630 = vpop.f32.mrf.mxu0
        %v1631 = vadd.f32 %v1599, %v1630
        %1632 = vdwg.mxu0
        %v1633 = vadd.f32 %v1624, %v1296
        %v1634 = vadd.f32 %v1626, %v1297
        %v1635 = vadd.f32 %v1629, %v1298
        %v1636 = vadd.f32 %v1631, %v1299
        %v1637 = vsel %vm1323, %v1633, -inf
        %1638 = vmax.xlane.f32.xlu0 %v1637
        %v1639 = vpop.xlane.xlu0 %1638
        %v1640 = vsel %vm1323, %v1634, -inf
        %1641 = vmax.xlane.f32.xlu0 %v1640
        %v1642 = vpop.xlane.xlu0 %1641
        %v1643 = vsel %vm1323, %v1635, -inf
        %1644 = vmax.xlane.f32.xlu0 %v1643
        %v1645 = vpop.xlane.xlu0 %1644
        %v1646 = vsel %vm1323, %v1636, -inf
        %1647 = vmax.xlane.f32.xlu0 %v1646
        %v1648 = vpop.xlane.xlu0 %1647
        %v1649 = vsub.f32 %v1633, %v1639
        %v1650 = vsub.f32 %v1634, %v1642
        %v1651 = vsub.f32 %v1635, %v1645
        %v1652 = vsub.f32 %v1636, %v1648
        %v1653 = vmul.f32 %v1649, 1.442695
        %v1654 = vpow.pop %v1653
        %v1655 = vmul.f32 %v1650, 1.442695
        %v1656 = vpow.pop %v1655
        %v1657 = vmul.f32 %v1651, 1.442695
        %v1658 = vpow.pop %v1657
        %v1659 = vmul.f32 %v1652, 1.442695
        %v1660 = vpow.pop %v1659
        %v1661 = vsel %vm1323, %v1654, 0.0
        %1662 = vadd.xlane.f32.xlu0 %v1661
        %v1663 = vpop.xlane.xlu0 %1662
        %v1664 = vsel %vm1323, %v1656, 0.0
        %1665 = vadd.xlane.f32.xlu0 %v1664
        %v1666 = vpop.xlane.xlu0 %1665
        %v1667 = vsel %vm1323, %v1658, 0.0
        %1668 = vadd.xlane.f32.xlu0 %v1667
        %v1669 = vpop.xlane.xlu0 %1668
        %v1670 = vsel %vm1323, %v1660, 0.0
        %1671 = vadd.xlane.f32.xlu0 %v1670
        %v1672 = vpop.xlane.xlu0 %1671
        %v1673 = vrcp.pop %v1663
        %v1674 = vrcp.pop %v1666
        %v1675 = vrcp.pop %v1669
        %v1676 = vrcp.pop %v1672
        %v1677 = vmul.f32 %v1654, %v1673
        %v1678 = vmul.f32 %v1656, %v1674
        %v1679 = vmul.f32 %v1658, %v1675
        %v1680 = vmul.f32 %v1660, %v1676
        %v1681 = vpack.c.bf16 %v1678, %v1677
        %v1682 = vpack.c.bf16 %v1680, %v1679
        %1685 = vrot.lane.b32.xlu0 %v1559, 64
        %v1686 = vpop.permute.xlu0 %1685
        %1687 = vrot.lane.b32.xlu0 %v1560, 64
        %v1688 = vpop.permute.xlu0 %1687
        %v1692 = vsel %vm1323, %v1681, 0
        %v1695 = vsel %vm1323, %v1682, 0
        %1697 = vmatpush.bf16.msra.mxu0 0
        %1698 = vmatpush.bf16.msra.mxu0 0
        %1699 = vmatpush.bf16.msra.mxu0 0
        %1700 = vmatpush.bf16.msra.mxu0 0
        %1701 = vmatpush.bf16.msra.mxu0 0
        %1702 = vmatpush.bf16.msra.mxu0 0
        %1703 = vmatpush.bf16.msra.mxu0 %v1688
        %1704 = vmatpush.bf16.msra.mxu0 %v1686
        %1705 = vmatmul.bf16.gmra.mxu0 %v1692
        %v1706 = vpop.f32.mrf.mxu0
        %v1707 = vadd.f32 0.0, %v1706
        %v1708 = vpop.f32.mrf.mxu0
        %v1709 = vadd.f32 0.0, %v1708
        %1710 = vmatmul.bf16.gmra.mxu0 %v1695
        %v1711 = vpop.f32.mrf.mxu0
        %v1712 = vadd.f32 0.0, %v1711
        %v1713 = vpop.f32.mrf.mxu0
        %v1714 = vadd.f32 0.0, %v1713
        %1715 = vdwg.mxu0
        %1717 = vrot.lane.b32.xlu0 %v1709, 16
        %v1718 = vpop.permute.xlu0 %1717
        %1721 = vrot.lane.b32.xlu0 %v1712, 32
        %v1722 = vpop.permute.xlu0 %1721
        %1725 = vrot.lane.b32.xlu0 %v1714, 48
        %v1726 = vpop.permute.xlu0 %1725
        %v1728 = vsel %vm1601, %v1707, %v1718
        %v1729 = vsel %vm1323, %v1728, %v1722
        %vm1730 = vcmask 392192
        %v1731 = vsel %vm1730, %v1729, %v1726
        %v1732 = vpack.c.bf16 %v1731, %v1731
        %v1741 = vunpack.c.l.b16 %v1314
        %v1742 = vunpack.c.l.b16 %v1315
        %v1743 = vunpack.c.l.b16 %v1316
        %v1744 = vunpack.c.l.b16 %v1317
        %v1745 = vunpack.c.l.b16 %v1318
        %v1746 = vunpack.c.l.b16 %v1319
        %v1747 = vunpack.c.l.b16 %v1320
        %v1748 = vunpack.c.l.b16 %v1321
        %v1749 = vpack.c.b16 %v1742, %v1741
        %v1750 = vpack.c.b16 %v1744, %v1743
        %v1751 = vpack.c.b16 %v1746, %v1745
        %v1752 = vpack.c.b16 %v1748, %v1747
        %vm1757 = vcmask 523264
        %v1759 = vsel %vm1757, %v1732, 0
        %1761 = vmatpush.bf16.msra.mxu0 0
        %1762 = vmatpush.bf16.msra.mxu0 0
        %1763 = vmatpush.bf16.msra.mxu0 0
        %1764 = vmatpush.bf16.msra.mxu0 0
        %1765 = vmatpush.bf16.msra.mxu0 %v1752
        %1766 = vmatpush.bf16.msra.mxu0 %v1751
        %1767 = vmatpush.bf16.msra.mxu0 %v1750
        %1768 = vmatpush.bf16.msra.mxu0 %v1749
        %1769 = vmatmul.bf16.gmra.mxu0 %v1759
        %v1770 = vpop.f32.mrf.mxu0
        %v1771 = vadd.f32 0.0, %v1770
        %v1772 = vpop.f32.mrf.mxu0
        %1773 = vdwg.mxu0
        %v1774 = vadd.f32 %v1286, %v1771
        %v1775 = vld [vmem:[%s29] sm:$0x1]
        %v1776 = vmul.f32 %v1774, %v1774
        %v1777 = vsel %vm1323, %v1776, 0.0
        %1778 = vadd.xlane.f32.xlu0 %v1777
        %v1779 = vpop.xlane.xlu0 %1778
        %v1780 = vmul.f32 %v1779, %v1333
        %v1781 = vadd.f32 %v1780, 1.1920929e-07
        %v1782 = vrsqrt.pop %v1781
        %v1783 = vmul.f32 %v1782, %v1781
        %v1784 = vmul.f32 %v1783, %v1782
        %v1785 = vmul.f32 0.5, %v1784
        %v1786 = vsub.f32 1.5, %v1785
        %v1787 = vmul.f32 %v1782, %v1786
        %vm1788 = vweird.f32 %v1781
        %vm1789 = vweird.f32 %v1782
        %vm1790 = vmor %vm1788, %vm1789
        %v1791 = vsel %vm1790, %v1782, %v1787
        %v1792 = vmul.f32 %v1774, %v1791
        %v1794 = vperm.slane %v1775, 0
        %v1796 = vmul.f32 %v1792, %v1794
        %v1797 = vpack.c.bf16 %v1796, %v1796
        %v1798 = vld [vmem:[#allocation22] sm:$0xf]
        %v1799 = vld [vmem:[#allocation22 + $0x4] sm:$0xf]
        %v1800 = vld [vmem:[#allocation22 + $0x8] sm:$0xf]
        %v1801 = vld [vmem:[#allocation22 + $0xc] sm:$0xf]
        %v1802 = vld [vmem:[#allocation23] sm:$0xf]
        %v1803 = vld [vmem:[#allocation23 + $0x4] sm:$0xf]
        %v1804 = vld [vmem:[#allocation23 + $0x8] sm:$0xf]
        %v1805 = vld [vmem:[#allocation23 + $0xc] sm:$0xf]
        %v1806 = vld [vmem:[#allocation25] sm:$0xf]
        %v1807 = vld [vmem:[#allocation25 + $0x4] sm:$0xf]
        %v1808 = vld [vmem:[#allocation25 + $0x8] sm:$0xf]
        %v1809 = vld [vmem:[#allocation25 + $0xc] sm:$0xf]
        %v1810 = vld [vmem:[#allocation25 + $0x10] sm:$0xf]
        %v1811 = vld [vmem:[#allocation25 + $0x14] sm:$0xf]
        %v1812 = vld [vmem:[#allocation25 + $0x18] sm:$0xf]
        %v1813 = vld [vmem:[#allocation25 + $0x1c] sm:$0xf]
        %v1818 = vunpack.c.l.b16 %v1798
        %v1819 = vunpack.c.l.b16 %v1799
        %v1820 = vunpack.c.l.b16 %v1800
        %v1821 = vunpack.c.l.b16 %v1801
        %v1822 = vpack.c.b16 %v1819, %v1818
        %v1823 = vpack.c.b16 %v1821, %v1820
        %v1827 = vsel %vm1323, %v1797, 0
        %1829 = vmatpush.bf16.msra.mxu0 0
        %1830 = vmatpush.bf16.msra.mxu0 0
        %1831 = vmatpush.bf16.msra.mxu0 0
        %1832 = vmatpush.bf16.msra.mxu0 0
        %1833 = vmatpush.bf16.msra.mxu0 0
        %1834 = vmatpush.bf16.msra.mxu0 0
        %1835 = vmatpush.bf16.msra.mxu0 %v1823
        %1836 = vmatpush.bf16.msra.mxu0 %v1822
        %1837 = vmatmul.bf16.gmra.mxu0 %v1827
        %v1838 = vpop.f32.mrf.mxu0
        %v1839 = vadd.f32 0.0, %v1838
        %v1840 = vpop.f32.mrf.mxu0
        %1841 = vdwg.mxu0
        %v1846 = vunpack.c.l.b16 %v1802
        %v1847 = vunpack.c.l.b16 %v1803
        %v1848 = vunpack.c.l.b16 %v1804
        %v1849 = vunpack.c.l.b16 %v1805
        %v1850 = vpack.c.b16 %v1847, %v1846
        %v1851 = vpack.c.b16 %v1849, %v1848
        %1854 = vmatpush.bf16.msra.mxu0 0
        %1855 = vmatpush.bf16.msra.mxu0 0
        %1856 = vmatpush.bf16.msra.mxu0 0
        %1857 = vmatpush.bf16.msra.mxu0 0
        %1858 = vmatpush.bf16.msra.mxu0 0
        %1859 = vmatpush.bf16.msra.mxu0 0
        %1860 = vmatpush.bf16.msra.mxu0 %v1851
        %1861 = vmatpush.bf16.msra.mxu0 %v1850
        %1862 = vmatmul.bf16.gmra.mxu0 %v1827
        %v1863 = vpop.f32.mrf.mxu0
        %v1864 = vadd.f32 0.0, %v1863
        %v1865 = vpop.f32.mrf.mxu0
        %1866 = vdwg.mxu0
        %v1867 = vxor.u32 %v1839, 2147483648
        %v1868 = vmul.f32 %v1867, 1.442695
        %v1869 = vpow.pop %v1868
        %v1870 = vadd.f32 %v1869, 1.0
        %v1871 = vrcp.pop %v1870
        %v1872 = vmul.f32 %v1870, %v1871
        %v1873 = vsub.f32 1.0, %v1872
        %v1874 = vmul.f32 %v1871, %v1873
        %v1875 = vadd.f32 %v1871, %v1874
        %vm1876 = vweird.f32 %v1870
        %vm1877 = vweird.f32 %v1871
        %vm1878 = vmor %vm1876, %vm1877
        %v1879 = vsel %vm1878, %v1871, %v1875
        %v1880 = vand.u32 2147483647, %v1870
        %vm1881 = vcmp.eq.f32.partialorder %v1880, 8.507059e+37
        %v1882 = vand.u32 %v1870, 2147483648
        %v1883 = vor.u32 1.1754944e-38, %v1882
        %v1884 = vsel %vm1881, %v1883, %v1879
        %v1885 = vmul.f32 1.0, %v1884
        %v1886 = vmul.f32 %v1839, %v1885
        %v1887 = vmul.f32 %v1886, %v1864
        %v1888 = vpack.c.bf16 %v1887, %v1887
        %v1897 = vunpack.c.l.b16 %v1806
        %v1898 = vunpack.c.l.b16 %v1807
        %v1899 = vunpack.c.l.b16 %v1808
        %v1900 = vunpack.c.l.b16 %v1809
        %v1901 = vunpack.c.l.b16 %v1810
        %v1902 = vunpack.c.l.b16 %v1811
        %v1903 = vunpack.c.l.b16 %v1812
        %v1904 = vunpack.c.l.b16 %v1813
        %v1905 = vpack.c.b16 %v1898, %v1897
        %v1906 = vpack.c.b16 %v1900, %v1899
        %v1907 = vpack.c.b16 %v1902, %v1901
        %v1908 = vpack.c.b16 %v1904, %v1903
        %v1914 = vsel %vm1757, %v1888, 0
        %1916 = vmatpush.bf16.msra.mxu0 0
        %1917 = vmatpush.bf16.msra.mxu0 0
        %1918 = vmatpush.bf16.msra.mxu0 0
        %1919 = vmatpush.bf16.msra.mxu0 0
        %1920 = vmatpush.bf16.msra.mxu0 %v1908
        %1921 = vmatpush.bf16.msra.mxu0 %v1907
        %1922 = vmatpush.bf16.msra.mxu0 %v1906
        %1923 = vmatpush.bf16.msra.mxu0 %v1905
        %1924 = vmatmul.bf16.gmra.mxu0 %v1914
        %v1925 = vpop.f32.mrf.mxu0
        %v1926 = vadd.f32 0.0, %v1925
        %v1927 = vpop.f32.mrf.mxu0
        %1928 = vdwg.mxu0
        %v1929 = vadd.f32 %v1774, %v1926
        %v1930 = vld [vmem:[%s37] sm:$0x1]
        %v1931 = vld [vmem:[#allocation26] sm:$0xf]
        %v1932 = vld [vmem:[#allocation26 + $0x4] sm:$0xf]
        %v1933 = vld [vmem:[#allocation26 + $0x8] sm:$0xf]
        %v1934 = vld [vmem:[#allocation26 + $0xc] sm:$0xf]
        %v1935 = vld [vmem:[#allocation28] sm:$0xf]
        %v1936 = vld [vmem:[#allocation28 + $0x4] sm:$0xf]
        %v1937 = vld [vmem:[#allocation28 + $0x8] sm:$0xf]
        %v1938 = vld [vmem:[#allocation28 + $0xc] sm:$0xf]
        %v1939 = vld [vmem:[%s43] sm:$0x1]
        %v1940 = vld [vmem:[#allocation29] sm:$0xf]
        %v1941 = vld [vmem:[#allocation29 + $0x4] sm:$0xf]
        %v1942 = vld [vmem:[#allocation29 + $0x8] sm:$0xf]
        %v1943 = vld [vmem:[#allocation29 + $0xc] sm:$0xf]
        %v1944 = vld [vmem:[#allocation31] sm:$0xf]
        %v1945 = vld [vmem:[#allocation31 + $0x4] sm:$0xf]
        %v1946 = vld [vmem:[#allocation31 + $0x8] sm:$0xf]
        %v1947 = vld [vmem:[#allocation31 + $0xc] sm:$0xf]
        %v1948 = vld [vmem:[#allocation31 + $0x10] sm:$0xf]
        %v1949 = vld [vmem:[#allocation31 + $0x14] sm:$0xf]
        %v1950 = vld [vmem:[#allocation31 + $0x18] sm:$0xf]
        %v1951 = vld [vmem:[#allocation31 + $0x1c] sm:$0xf]
        %v1952 = vmul.f32 %v1929, %v1929
        %v1953 = vsel %vm1323, %v1952, 0.0
        %1954 = vadd.xlane.f32.xlu0 %v1953
        %v1955 = vpop.xlane.xlu0 %1954
        %v1956 = vmul.f32 %v1955, %v1333
        %v1957 = vadd.f32 %v1956, 1.1920929e-07
        %v1958 = vrsqrt.pop %v1957
        %v1959 = vmul.f32 %v1958, %v1957
        %v1960 = vmul.f32 %v1959, %v1958
        %v1961 = vmul.f32 0.5, %v1960
        %v1962 = vsub.f32 1.5, %v1961
        %v1963 = vmul.f32 %v1958, %v1962
        %vm1964 = vweird.f32 %v1957
        %vm1965 = vweird.f32 %v1958
        %vm1966 = vmor %vm1964, %vm1965
        %v1967 = vsel %vm1966, %v1958, %v1963
        %v1968 = vmul.f32 %v1929, %v1967
        %v1970 = vperm.slane %v1930, 0
        %v1972 = vmul.f32 %v1968, %v1970
        %v1973 = vpack.c.bf16 %v1972, %v1972
        %v1978 = vunpack.c.l.b16 %v1931
        %v1979 = vunpack.c.l.b16 %v1932
        %v1980 = vunpack.c.l.b16 %v1933
        %v1981 = vunpack.c.l.b16 %v1934
        %v1982 = vpack.c.b16 %v1979, %v1978
        %v1983 = vpack.c.b16 %v1981, %v1980
        %v1987 = vsel %vm1323, %v1973, 0
        %1989 = vmatpush.bf16.msra.mxu0 0
        %1990 = vmatpush.bf16.msra.mxu0 0
        %1991 = vmatpush.bf16.msra.mxu0 0
        %1992 = vmatpush.bf16.msra.mxu0 0
        %1993 = vmatpush.bf16.msra.mxu0 0
        %1994 = vmatpush.bf16.msra.mxu0 0
        %1995 = vmatpush.bf16.msra.mxu0 %v1983
        %1996 = vmatpush.bf16.msra.mxu0 %v1982
        %1997 = vmatmul.bf16.gmra.mxu0 %v1987
        %v1998 = vpop.f32.mrf.mxu0
        %v1999 = vadd.f32 0.0, %v1998
        %v2000 = vpop.f32.mrf.mxu0
        %2001 = vdwg.mxu0
        %v2002 = vmul.f32 %v1999, %v1382
        %2004 = vrot.lane.b32.xlu0 %v1999, 64
        %v2005 = vpop.permute.xlu0 %2004
        %v2006 = vsel %vm1323, %v2005, 0
        %2008 = vmatpush.msra.mxu0 0.0
        %2009 = vmatpush.msra.mxu0 0.0
        %2010 = vmatpush.msra.mxu0 0.0
        %2011 = vmatpush.msra.mxu0 0.0
        %2012 = vmatpush.msra.mxu0 0.0
        %2013 = vmatpush.msra.mxu0 0.0
        %2014 = vmatpush.msra.mxu0 0.0
        %2015 = vmatpush.msra.mxu0 0.0
        %2016 = vmatpush.msra.mxu0 0.0
        %2017 = vmatpush.msra.mxu0 0.0
        %2018 = vmatpush.msra.mxu0 0.0
        %2019 = vmatpush.msra.mxu0 0.0
        %2020 = vmatpush.msra.mxu0 %v1294
        %2021 = vmatpush.msra.mxu0 %v1293
        %2022 = vmatpush.msra.mxu0 %v1292
        %2023 = vmatpush.msra.mxu0 %v1291
        %2024 = vmatmul.f32.gmra.mxu0 %v2006
        %v2025 = vpop.f32.mrf.mxu0
        %v2026 = vadd.f32 0.0, %v2025
        %2027 = vdwg.mxu0
        %v2028 = vmul.f32 %v2026, %v1288
        %2030 = vrot.lane.b32.xlu0 %v2028, 64
        %v2031 = vpop.permute.xlu0 %2030
        %v2033 = vadd.f32 %v2002, %v2031
        %v2038 = vunpack.c.l.b16 %v1935
        %v2039 = vunpack.c.l.b16 %v1936
        %v2040 = vunpack.c.l.b16 %v1937
        %v2041 = vunpack.c.l.b16 %v1938
        %v2042 = vpack.c.b16 %v2039, %v2038
        %v2043 = vpack.c.b16 %v2041, %v2040
        %2046 = vmatpush.bf16.msra.mxu0 0
        %2047 = vmatpush.bf16.msra.mxu0 0
        %2048 = vmatpush.bf16.msra.mxu0 0
        %2049 = vmatpush.bf16.msra.mxu0 0
        %2050 = vmatpush.bf16.msra.mxu0 0
        %2051 = vmatpush.bf16.msra.mxu0 0
        %2052 = vmatpush.bf16.msra.mxu0 %v2043
        %2053 = vmatpush.bf16.msra.mxu0 %v2042
        %2054 = vmatmul.bf16.gmra.mxu0 %v1987
        %v2055 = vpop.f32.mrf.mxu0
        %v2056 = vadd.f32 0.0, %v2055
        %v2057 = vpop.f32.mrf.mxu0
        %2058 = vdwg.mxu0
        %v2059 = vmul.f32 %v2056, %v1443
        %2061 = vrot.lane.b32.xlu0 %v2056, 96
        %v2062 = vpop.permute.xlu0 %2061
        %v2063 = vsel %vm1449, %v2062, 0
        %2065 = vmatpush.msra.mxu0 0.0
        %2066 = vmatpush.msra.mxu0 0.0
        %2067 = vmatpush.msra.mxu0 0.0
        %2068 = vmatpush.msra.mxu0 0.0
        %2069 = vmatpush.msra.mxu0 0.0
        %2070 = vmatpush.msra.mxu0 0.0
        %2071 = vmatpush.msra.mxu0 0.0
        %2072 = vmatpush.msra.mxu0 0.0
        %2073 = vmatpush.msra.mxu0 0.0
        %2074 = vmatpush.msra.mxu0 0.0
        %2075 = vmatpush.msra.mxu0 0.0
        %2076 = vmatpush.msra.mxu0 0.0
        %2077 = vmatpush.msra.mxu0 0.0
        %2078 = vmatpush.msra.mxu0 0.0
        %2079 = vmatpush.msra.mxu0 0.0
        %2080 = vmatpush.msra.mxu0 %v1295
        %2081 = vmatmul.f32.gmra.mxu0 %v2063
        %v2082 = vpop.f32.mrf.mxu0
        %v2083 = vadd.f32 0.0, %v2082
        %2084 = vdwg.mxu0
        %v2085 = vmul.f32 %v2083, %v1290
        %2087 = vrot.lane.b32.xlu0 %v2085, 32
        %v2088 = vpop.permute.xlu0 %2087
        %v2090 = vadd.f32 %v2059, %v2088
        %v2091 = vmul.f32 %v2056, %v2056
        %v2092 = vsel %vm1323, %v2091, 0.0
        %2093 = vadd.xlane.f32.xlu0 %v2092
        %v2094 = vpop.xlane.xlu0 %2093
        %v2095 = vmul.f32 %v2094, %v1333
        %v2096 = vadd.f32 %v2095, 1.1920929e-07
        %v2097 = vrsqrt.pop %v2096
        %v2098 = vmul.f32 %v2097, %v2096
        %v2099 = vmul.f32 %v2098, %v2097
        %v2100 = vmul.f32 0.5, %v2099
        %v2101 = vsub.f32 1.5, %v2100
        %v2102 = vmul.f32 %v2097, %v2101
        %vm2103 = vweird.f32 %v2096
        %vm2104 = vweird.f32 %v2097
        %vm2105 = vmor %vm2103, %vm2104
        %v2106 = vsel %vm2105, %v2097, %v2102
        %v2107 = vmul.f32 %v2056, %v2106
        %v2109 = vperm.slane %v1939, 0
        %v2111 = vmul.f32 %v2107, %v2109
        %v2112 = vpack.c.bf16 %v2111, %v2111
        %v2117 = vunpack.c.l.b16 %v1940
        %v2118 = vunpack.c.l.b16 %v1941
        %v2119 = vunpack.c.l.b16 %v1942
        %v2120 = vunpack.c.l.b16 %v1943
        %v2121 = vpack.c.b16 %v2118, %v2117
        %v2122 = vpack.c.b16 %v2120, %v2119
        %v2126 = vsel %vm1323, %v2112, 0
        %2128 = vmatpush.bf16.msra.mxu0 0
        %2129 = vmatpush.bf16.msra.mxu0 0
        %2130 = vmatpush.bf16.msra.mxu0 0
        %2131 = vmatpush.bf16.msra.mxu0 0
        %2132 = vmatpush.bf16.msra.mxu0 0
        %2133 = vmatpush.bf16.msra.mxu0 0
        %2134 = vmatpush.bf16.msra.mxu0 %v2122
        %2135 = vmatpush.bf16.msra.mxu0 %v2121
        %2136 = vmatmul.bf16.gmra.mxu0 %v2126
        %v2137 = vpop.f32.mrf.mxu0
        %v2138 = vadd.f32 0.0, %v2137
        %v2139 = vpop.f32.mrf.mxu0
        %2140 = vdwg.mxu0
        %2141 = vrot.lane.b32.xlu0 %v1999, 112
        %v2142 = vpop.permute.xlu0 %2141
        %2144 = vrot.lane.b32.xlu0 %v1999, 96
        %v2145 = vpop.permute.xlu0 %2144
        %2147 = vrot.lane.b32.xlu0 %v1999, 80
        %v2148 = vpop.permute.xlu0 %2147
        %2151 = vrot.lane.b32.xlu0 %v2033, 120
        %v2152 = vpop.permute.xlu0 %2151
        %2154 = vrot.lane.b32.xlu0 %v2033, 112
        %v2155 = vpop.permute.xlu0 %2154
        %2157 = vrot.lane.b32.xlu0 %v2033, 104
        %v2158 = vpop.permute.xlu0 %2157
        %2161 = vrot.lane.b32.xlu0 %v2138, 112
        %v2162 = vpop.permute.xlu0 %2161
        %2164 = vrot.lane.b32.xlu0 %v2138, 96
        %v2165 = vpop.permute.xlu0 %2164
        %2167 = vrot.lane.b32.xlu0 %v2138, 80
        %v2168 = vpop.permute.xlu0 %2167
        %v2170 = vpack.c.bf16 %v2142, %v1999
        %v2171 = vpack.c.bf16 %v2148, %v2145
        %v2172 = vpack.c.bf16 %v2162, %v2138
        %v2173 = vpack.c.bf16 %v2168, %v2165
        %v2174 = vpack.c.bf16 %v2152, %v2033
        %v2175 = vpack.c.bf16 %v2158, %v2155
        %v2176 = vpack.c.bf16 %v2090, %v2090
        %2179 = vrot.lane.b32.xlu0 %v2174, 64
        %v2180 = vpop.permute.xlu0 %2179
        %2181 = vrot.lane.b32.xlu0 %v2175, 64
        %v2182 = vpop.permute.xlu0 %2181
        %2184 = vrot.lane.b32.xlu0 %v2176, 96
        %v2185 = vpop.permute.xlu0 %2184
        %v2187 = vsel %vm1449, %v2180, 0
        %v2190 = vsel %vm1449, %v2182, 0
        %v2193 = vsel %vm1449, %v2185, 0
        %2195 = vmatpush.bf16.xpose.msra.mxu0 0
        %2196 = vmatpush.bf16.xpose.msra.mxu0 0
        %2197 = vmatpush.bf16.xpose.msra.mxu0 0
        %2198 = vmatpush.bf16.xpose.msra.mxu0 0
        %2199 = vmatpush.bf16.xpose.msra.mxu0 0
        %2200 = vmatpush.bf16.xpose.msra.mxu0 0
        %2201 = vmatpush.bf16.xpose.msra.mxu0 %v2193
        %2202 = vmatpush.bf16.xpose.msra.mxu0 %v2193
        %2203 = vmatmul.bf16.gmra.mxu0 %v2187
        %v2204 = vpop.f32.mrf.mxu0
        %v2205 = vadd.f32 0.0, %v2204
        %v2206 = vpop.f32.mrf.mxu0
        %v2207 = vadd.f32 0.0, %v2206
        %2208 = vmatmul.bf16.gmra.mxu0 %v2190
        %v2209 = vpop.f32.mrf.mxu0
        %v2210 = vadd.f32 0.0, %v2209
        %v2211 = vpop.f32.mrf.mxu0
        %v2212 = vadd.f32 0.0, %v2211
        %2213 = vdwg.mxu0
        %v2215 = vsel %vm1601, %v2170, 0
        %v2218 = vsel %vm1601, %v2171, 0
        %v2221 = vsel %vm1601, %v2172, 0
        %v2224 = vsel %vm1601, %v2173, 0
        %2226 = vmatpush.bf16.xpose.msra.mxu0 0
        %2227 = vmatpush.bf16.xpose.msra.mxu0 0
        %2228 = vmatpush.bf16.xpose.msra.mxu0 0
        %2229 = vmatpush.bf16.xpose.msra.mxu0 0
        %2230 = vmatpush.bf16.xpose.msra.mxu0 0
        %2231 = vmatpush.bf16.xpose.msra.mxu0 0
        %2232 = vmatpush.bf16.xpose.msra.mxu0 %v2224
        %2233 = vmatpush.bf16.xpose.msra.mxu0 %v2221
        %2234 = vmatmul.bf16.gmra.mxu0 %v2215
        %v2235 = vpop.f32.mrf.mxu0
        %v2236 = vadd.f32 %v2205, %v2235
        %v2237 = vpop.f32.mrf.mxu0
        %v2238 = vadd.f32 %v2207, %v2237
        %2239 = vmatmul.bf16.gmra.mxu0 %v2218
        %v2240 = vpop.f32.mrf.mxu0
        %v2241 = vadd.f32 %v2210, %v2240
        %v2242 = vpop.f32.mrf.mxu0
        %v2243 = vadd.f32 %v2212, %v2242
        %2244 = vdwg.mxu0
        %v2245 = vadd.f32 %v2236, %v1296
        %v2246 = vadd.f32 %v2238, %v1297
        %v2247 = vadd.f32 %v2241, %v1298
        %v2248 = vadd.f32 %v2243, %v1299
        %v2249 = vsel %vm1323, %v2245, -inf
        %2250 = vmax.xlane.f32.xlu0 %v2249
        %v2251 = vpop.xlane.xlu0 %2250
        %v2252 = vsel %vm1323, %v2246, -inf
        %2253 = vmax.xlane.f32.xlu0 %v2252
        %v2254 = vpop.xlane.xlu0 %2253
        %v2255 = vsel %vm1323, %v2247, -inf
        %2256 = vmax.xlane.f32.xlu0 %v2255
        %v2257 = vpop.xlane.xlu0 %2256
        %v2258 = vsel %vm1323, %v2248, -inf
        %2259 = vmax.xlane.f32.xlu0 %v2258
        %v2260 = vpop.xlane.xlu0 %2259
        %v2261 = vsub.f32 %v2245, %v2251
        %v2262 = vsub.f32 %v2246, %v2254
        %v2263 = vsub.f32 %v2247, %v2257
        %v2264 = vsub.f32 %v2248, %v2260
        %v2265 = vmul.f32 %v2261, 1.442695
        %v2266 = vpow.pop %v2265
        %v2267 = vmul.f32 %v2262, 1.442695
        %v2268 = vpow.pop %v2267
        %v2269 = vmul.f32 %v2263, 1.442695
        %v2270 = vpow.pop %v2269
        %v2271 = vmul.f32 %v2264, 1.442695
        %v2272 = vpow.pop %v2271
        %v2273 = vsel %vm1323, %v2266, 0.0
        %2274 = vadd.xlane.f32.xlu0 %v2273
        %v2275 = vpop.xlane.xlu0 %2274
        %v2276 = vsel %vm1323, %v2268, 0.0
        %2277 = vadd.xlane.f32.xlu0 %v2276
        %v2278 = vpop.xlane.xlu0 %2277
        %v2279 = vsel %vm1323, %v2270, 0.0
        %2280 = vadd.xlane.f32.xlu0 %v2279
        %v2281 = vpop.xlane.xlu0 %2280
        %v2282 = vsel %vm1323, %v2272, 0.0
        %2283 = vadd.xlane.f32.xlu0 %v2282
        %v2284 = vpop.xlane.xlu0 %2283
        %v2285 = vrcp.pop %v2275
        %v2286 = vrcp.pop %v2278
        %v2287 = vrcp.pop %v2281
        %v2288 = vrcp.pop %v2284
        %v2289 = vmul.f32 %v2266, %v2285
        %v2290 = vmul.f32 %v2268, %v2286
        %v2291 = vmul.f32 %v2270, %v2287
        %v2292 = vmul.f32 %v2272, %v2288
        %v2293 = vpack.c.bf16 %v2290, %v2289
        %v2294 = vpack.c.bf16 %v2292, %v2291
        %2297 = vrot.lane.b32.xlu0 %v2172, 64
        %v2298 = vpop.permute.xlu0 %2297
        %2299 = vrot.lane.b32.xlu0 %v2173, 64
        %v2300 = vpop.permute.xlu0 %2299
        %v2304 = vsel %vm1323, %v2293, 0
        %v2307 = vsel %vm1323, %v2294, 0
        %2309 = vmatpush.bf16.msra.mxu0 0
        %2310 = vmatpush.bf16.msra.mxu0 0
        %2311 = vmatpush.bf16.msra.mxu0 0
        %2312 = vmatpush.bf16.msra.mxu0 0
        %2313 = vmatpush.bf16.msra.mxu0 0
        %2314 = vmatpush.bf16.msra.mxu0 0
        %2315 = vmatpush.bf16.msra.mxu0 %v2300
        %2316 = vmatpush.bf16.msra.mxu0 %v2298
        %2317 = vmatmul.bf16.gmra.mxu0 %v2304
        %v2318 = vpop.f32.mrf.mxu0
        %v2319 = vadd.f32 0.0, %v2318
        %v2320 = vpop.f32.mrf.mxu0
        %v2321 = vadd.f32 0.0, %v2320
        %2322 = vmatmul.bf16.gmra.mxu0 %v2307
        %v2323 = vpop.f32.mrf.mxu0
        %v2324 = vadd.f32 0.0, %v2323
        %v2325 = vpop.f32.mrf.mxu0
        %v2326 = vadd.f32 0.0, %v2325
        %2327 = vdwg.mxu0
        %2329 = vrot.lane.b32.xlu0 %v2321, 16
        %v2330 = vpop.permute.xlu0 %2329
        %2333 = vrot.lane.b32.xlu0 %v2324, 32
        %v2334 = vpop.permute.xlu0 %2333
        %2337 = vrot.lane.b32.xlu0 %v2326, 48
        %v2338 = vpop.permute.xlu0 %2337
        %v2340 = vsel %vm1601, %v2319, %v2330
        %v2341 = vsel %vm1323, %v2340, %v2334
        %v2342 = vsel %vm1730, %v2341, %v2338
        %v2343 = vpack.c.bf16 %v2342, %v2342
        %v2352 = vunpack.c.l.b16 %v1944
        %v2353 = vunpack.c.l.b16 %v1945
        %v2354 = vunpack.c.l.b16 %v1946
        %v2355 = vunpack.c.l.b16 %v1947
        %v2356 = vunpack.c.l.b16 %v1948
        %v2357 = vunpack.c.l.b16 %v1949
        %v2358 = vunpack.c.l.b16 %v1950
        %v2359 = vunpack.c.l.b16 %v1951
        %v2360 = vpack.c.b16 %v2353, %v2352
        %v2361 = vpack.c.b16 %v2355, %v2354
        %v2362 = vpack.c.b16 %v2357, %v2356
        %v2363 = vpack.c.b16 %v2359, %v2358
        %v2369 = vsel %vm1757, %v2343, 0
        %2371 = vmatpush.bf16.msra.mxu0 0
        %2372 = vmatpush.bf16.msra.mxu0 0
        %2373 = vmatpush.bf16.msra.mxu0 0
        %2374 = vmatpush.bf16.msra.mxu0 0
        %2375 = vmatpush.bf16.msra.mxu0 %v2363
        %2376 = vmatpush.bf16.msra.mxu0 %v2362
        %2377 = vmatpush.bf16.msra.mxu0 %v2361
        %2378 = vmatpush.bf16.msra.mxu0 %v2360
        %2379 = vmatmul.bf16.gmra.mxu0 %v2369
        %v2380 = vpop.f32.mrf.mxu0
        %v2381 = vadd.f32 0.0, %v2380
        %v2382 = vpop.f32.mrf.mxu0
        %2383 = vdwg.mxu0
        %v2384 = vadd.f32 %v1929, %v2381
        %v2385 = vld [vmem:[%s49] sm:$0x1]
        %v2386 = vmul.f32 %v2384, %v2384
        %v2387 = vsel %vm1323, %v2386, 0.0
        %2388 = vadd.xlane.f32.xlu0 %v2387
        %v2389 = vpop.xlane.xlu0 %2388
        %v2390 = vmul.f32 %v2389, %v1333
        %v2391 = vadd.f32 %v2390, 1.1920929e-07
        %v2392 = vrsqrt.pop %v2391
        %v2393 = vmul.f32 %v2392, %v2391
        %v2394 = vmul.f32 %v2393, %v2392
        %v2395 = vmul.f32 0.5, %v2394
        %v2396 = vsub.f32 1.5, %v2395
        %v2397 = vmul.f32 %v2392, %v2396
        %vm2398 = vweird.f32 %v2391
        %vm2399 = vweird.f32 %v2392
        %vm2400 = vmor %vm2398, %vm2399
        %v2401 = vsel %vm2400, %v2392, %v2397
        %v2402 = vmul.f32 %v2384, %v2401
        %v2404 = vperm.slane %v2385, 0
        %v2406 = vmul.f32 %v2402, %v2404
        %v2407 = vpack.c.bf16 %v2406, %v2406
        %v2408 = vld [vmem:[%s51] sm:$0xf]
        %v2409 = vld [vmem:[%s51 + $0x4] sm:$0xf]
        %v2410 = vld [vmem:[%s51 + $0x8] sm:$0xf]
        %v2411 = vld [vmem:[%s51 + $0xc] sm:$0xf]
        %v2412 = vld [vmem:[#allocation32] sm:$0xff]
        %v2413 = vld [vmem:[#allocation32 + $0x8] sm:$0xff]
        %v2414 = vld [vmem:[#allocation32 + $0x10] sm:$0xff]
        %v2415 = vld [vmem:[#allocation32 + $0x18] sm:$0xff]
        %v2416 = vld [vmem:[#allocation34] sm:$0xff]
        %v2417 = vld [vmem:[#allocation34 + $0x8] sm:$0xff]
        %v2418 = vld [vmem:[#allocation34 + $0x10] sm:$0xff]
        %v2419 = vld [vmem:[#allocation34 + $0x18] sm:$0xff]
        %v2420 = vld [vmem:[#allocation35] sm:$0xf]
        %v2421 = vld [vmem:[#allocation35 + $0x4] sm:$0xf]
        %v2422 = vld [vmem:[#allocation35 + $0x8] sm:$0xf]
        %v2423 = vld [vmem:[#allocation35 + $0xc] sm:$0xf]
        %v2424 = vld [vmem:[#allocation35 + $0x10] sm:$0xf]
        %v2425 = vld [vmem:[#allocation35 + $0x14] sm:$0xf]
        %v2426 = vld [vmem:[#allocation35 + $0x18] sm:$0xf]
        %v2427 = vld [vmem:[#allocation35 + $0x1c] sm:$0xf]
        %v2428 = vld [vmem:[#allocation35 + $0x20] sm:$0xf]
        %v2429 = vld [vmem:[#allocation35 + $0x24] sm:$0xf]
        %v2430 = vld [vmem:[#allocation35 + $0x28] sm:$0xf]
        %v2431 = vld [vmem:[#allocation35 + $0x2c] sm:$0xf]
        %v2432 = vld [vmem:[#allocation35 + $0x30] sm:$0xf]
        %v2433 = vld [vmem:[#allocation35 + $0x34] sm:$0xf]
        %v2434 = vld [vmem:[#allocation35 + $0x38] sm:$0xf]
        %v2435 = vld [vmem:[#allocation35 + $0x3c] sm:$0xf]
        %v2436 = vld [vmem:[#allocation35 + $0x40] sm:$0xf]
        %v2437 = vld [vmem:[#allocation35 + $0x44] sm:$0xf]
        %v2438 = vld [vmem:[#allocation35 + $0x48] sm:$0xf]
        %v2439 = vld [vmem:[#allocation35 + $0x4c] sm:$0xf]
        %v2444 = vunpack.c.l.b16 %v2408
        %v2445 = vunpack.c.l.b16 %v2409
        %v2446 = vunpack.c.l.b16 %v2410
        %v2447 = vunpack.c.l.b16 %v2411
        %v2448 = vpack.c.b16 %v2445, %v2444
        %v2449 = vpack.c.b16 %v2447, %v2446
        %v2453 = vsel %vm1323, %v2407, 0
        %2455 = vmatpush.bf16.msra.mxu0 0
        %2456 = vmatpush.bf16.msra.mxu0 0
        %2457 = vmatpush.bf16.msra.mxu0 0
        %2458 = vmatpush.bf16.msra.mxu0 0
        %2459 = vmatpush.bf16.msra.mxu0 0
        %2460 = vmatpush.bf16.msra.mxu0 0
        %2461 = vmatpush.bf16.msra.mxu0 %v2449
        %2462 = vmatpush.bf16.msra.mxu0 %v2448
        %2463 = vmatmul.bf16.gmra.mxu0 %v2453
        %v2464 = vpop.f32.mrf.mxu0
        %v2465 = vadd.f32 0.0, %v2464
        %v2466 = vpop.f32.mrf.mxu0
        %2467 = vdwg.mxu0
        %vm2468 = vcmask 31744
        %v2469 = vsel %vm2468, %v2465, -inf
        %2470 = vmax.xlane.f32.xlu0 %v2469
        %v2471 = vpop.xlane.xlu0 %2470
        %v2472 = vsub.f32 %v2465, %v2471
        %v2473 = vmul.f32 %v2472, 1.442695
        %v2474 = vpow.pop %v2473
        %v2475 = vsel %vm2468, %v2474, 0.0
        %2476 = vadd.xlane.f32.xlu0 %v2475
        %v2477 = vpop.xlane.xlu0 %2476
        %v2478 = vrcp.pop %v2477
        %v2479 = vmul.f32 %v2477, %v2478
        %v2480 = vsub.f32 1.0, %v2479
        %v2481 = vmul.f32 %v2478, %v2480
        %v2482 = vadd.f32 %v2478, %v2481
        %vm2483 = vweird.f32 %v2477
        %vm2484 = vweird.f32 %v2478
        %vm2485 = vmor %vm2483, %vm2484
        %v2486 = vsel %vm2485, %v2478, %v2482
        %v2487 = vand.u32 2147483647, %v2477
        %vm2488 = vcmp.eq.f32.partialorder %v2487, 8.507059e+37
        %v2489 = vand.u32 %v2477, 2147483648
        %v2490 = vor.u32 1.1754944e-38, %v2489
        %v2491 = vsel %vm2488, %v2490, %v2486
        %v2492 = vmul.f32 %v2474, %v2491
        %v2493 = vsel %vm2468, %v2492, -inf
        %2494 = vmax.xlane.f32.xlu0 %v2493
        %v2495 = vpop.xlane.xlu0 %2494
        %vm2496 = vcmp.ge.f32.partialorder %v2492, %v2495
        %v2497 = vsel %vm2496, -inf, %v2492
        %v2498 = vsel %vm2468, %v2497, -inf
        %2499 = vmax.xlane.f32.xlu0 %v2498
        %v2500 = vpop.xlane.xlu0 %2499
        %vm2501 = vcmp.ge.f32.partialorder %v2492, %v2500
        %v2502 = vsel %vm2501, %v2492, 0.0
        %v2503 = vlaneseq
        %v2504 = vand.u32 %v2503, 127
        %v2505 = vadd.s32 %v2504, 128
        %vm2506 = vcmp.ge.s32.totalorder %v2504, 0
        %vm2507 = vcmp.ge.s32.totalorder %v2505, 0
        %vm2508 = vcmp.lt.s32.totalorder %v2504, 32
        %vm2509 = vcmp.lt.s32.totalorder %v2505, 32
        %vm2510 = vmand %vm2506, %vm2508
        %vm2511 = vmand %vm2507, %vm2509
        %2513 = vset.pattern.permute.xlu0 0
        %2514 = vperm.xlu0 %2513, %v2502
        %v2515 = vpop.permute.xlu0 %2514
        %v2517 = vsel %vm2510, %v2515, 1.0
        %v2518 = vsel %vm2511, %v2515, 1.0
        %vm2519 = vcmp.ge.s32.totalorder %v2504, 32
        %vm2520 = vcmp.ge.s32.totalorder %v2505, 32
        %vm2521 = vcmp.lt.s32.totalorder %v2504, 64
        %vm2522 = vcmp.lt.s32.totalorder %v2505, 64
        %vm2523 = vmand %vm2519, %vm2521
        %vm2524 = vmand %vm2520, %vm2522
        %2525 = vset.pattern.permute.xlu0 1
        %2526 = vperm.xlu0 %2525, %v2502
        %v2527 = vpop.permute.xlu0 %2526
        %v2529 = vsel %vm2523, %v2527, %v2517
        %v2530 = vsel %vm2524, %v2527, %v2518
        %vm2531 = vcmp.ge.s32.totalorder %v2504, 64
        %vm2532 = vcmp.ge.s32.totalorder %v2505, 64
        %vm2533 = vcmp.lt.s32.totalorder %v2504, 96
        %vm2534 = vcmp.lt.s32.totalorder %v2505, 96
        %vm2535 = vmand %vm2531, %vm2533
        %vm2536 = vmand %vm2532, %vm2534
        %2537 = vset.pattern.permute.xlu0 2
        %2538 = vperm.xlu0 %2537, %v2502
        %v2539 = vpop.permute.xlu0 %2538
        %v2541 = vsel %vm2535, %v2539, %v2529
        %v2542 = vsel %vm2536, %v2539, %v2530
        %vm2543 = vcmp.ge.s32.totalorder %v2504, 96
        %vm2544 = vcmp.ge.s32.totalorder %v2505, 96
        %vm2545 = vcmp.lt.s32.totalorder %v2504, 128
        %vm2546 = vcmp.lt.s32.totalorder %v2505, 128
        %vm2547 = vmand %vm2543, %vm2545
        %vm2548 = vmand %vm2544, %vm2546
        %2549 = vset.pattern.permute.xlu0 3
        %2550 = vperm.xlu0 %2549, %v2502
        %v2551 = vpop.permute.xlu0 %2550
        %v2553 = vsel %vm2547, %v2551, %v2541
        %v2554 = vsel %vm2548, %v2551, %v2542
        %v2559 = vunpack.c.l.b16 %v2412
        %v2560 = vunpack.c.h.b16 %v2412
        %v2561 = vunpack.c.l.b16 %v2413
        %v2562 = vunpack.c.h.b16 %v2413
        %v2563 = vunpack.c.l.b16 %v2414
        %v2564 = vunpack.c.h.b16 %v2414
        %v2565 = vunpack.c.l.b16 %v2415
        %v2566 = vunpack.c.h.b16 %v2415
        %v2567 = vpack.c.b16 %v2561, %v2559
        %v2568 = vpack.c.b16 %v2562, %v2560
        %v2569 = vpack.c.b16 %v2565, %v2563
        %v2570 = vpack.c.b16 %v2566, %v2564
        %2575 = vmatpush.bf16.msra.mxu0 0
        %2576 = vmatpush.bf16.msra.mxu0 0
        %2577 = vmatpush.bf16.msra.mxu0 0
        %2578 = vmatpush.bf16.msra.mxu0 0
        %2579 = vmatpush.bf16.msra.mxu0 0
        %2580 = vmatpush.bf16.msra.mxu0 0
        %2581 = vmatpush.bf16.msra.mxu0 %v2569
        %2582 = vmatpush.bf16.msra.mxu0 %v2567
        %2583 = vmatmul.bf16.gmra.mxu0 %v2453
        %v2584 = vpop.f32.mrf.mxu0
        %v2585 = vadd.f32 0.0, %v2584
        %v2586 = vpop.f32.mrf.mxu0
        %2587 = vdwg.mxu0
        %2588 = vmatpush.bf16.msra.mxu0 0
        %2589 = vmatpush.bf16.msra.mxu0 0
        %2590 = vmatpush.bf16.msra.mxu0 0
        %2591 = vmatpush.bf16.msra.mxu0 0
        %2592 = vmatpush.bf16.msra.mxu0 0
        %2593 = vmatpush.bf16.msra.mxu0 0
        %2594 = vmatpush.bf16.msra.mxu0 %v2570
        %2595 = vmatpush.bf16.msra.mxu0 %v2568
        %2596 = vmatmul.bf16.gmra.mxu0 %v2453
        %v2597 = vpop.f32.mrf.mxu0
        %v2598 = vadd.f32 0.0, %v2597
        %v2599 = vpop.f32.mrf.mxu0
        %2600 = vdwg.mxu0
        %v2605 = vunpack.c.l.b16 %v2416
        %v2606 = vunpack.c.h.b16 %v2416
        %v2607 = vunpack.c.l.b16 %v2417
        %v2608 = vunpack.c.h.b16 %v2417
        %v2609 = vunpack.c.l.b16 %v2418
        %v2610 = vunpack.c.h.b16 %v2418
        %v2611 = vunpack.c.l.b16 %v2419
        %v2612 = vunpack.c.h.b16 %v2419
        %v2613 = vpack.c.b16 %v2607, %v2605
        %v2614 = vpack.c.b16 %v2608, %v2606
        %v2615 = vpack.c.b16 %v2611, %v2609
        %v2616 = vpack.c.b16 %v2612, %v2610
        %2621 = vmatpush.bf16.msra.mxu0 0
        %2622 = vmatpush.bf16.msra.mxu0 0
        %2623 = vmatpush.bf16.msra.mxu0 0
        %2624 = vmatpush.bf16.msra.mxu0 0
        %2625 = vmatpush.bf16.msra.mxu0 0
        %2626 = vmatpush.bf16.msra.mxu0 0
        %2627 = vmatpush.bf16.msra.mxu0 %v2615
        %2628 = vmatpush.bf16.msra.mxu0 %v2613
        %2629 = vmatmul.bf16.gmra.mxu0 %v2453
        %v2630 = vpop.f32.mrf.mxu0
        %v2631 = vadd.f32 0.0, %v2630
        %v2632 = vpop.f32.mrf.mxu0
        %2633 = vdwg.mxu0
        %2634 = vmatpush.bf16.msra.mxu0 0
        %2635 = vmatpush.bf16.msra.mxu0 0
        %2636 = vmatpush.bf16.msra.mxu0 0
        %2637 = vmatpush.bf16.msra.mxu0 0
        %2638 = vmatpush.bf16.msra.mxu0 0
        %2639 = vmatpush.bf16.msra.mxu0 0
        %2640 = vmatpush.bf16.msra.mxu0 %v2616
        %2641 = vmatpush.bf16.msra.mxu0 %v2614
        %2642 = vmatmul.bf16.gmra.mxu0 %v2453
        %v2643 = vpop.f32.mrf.mxu0
        %v2644 = vadd.f32 0.0, %v2643
        %v2645 = vpop.f32.mrf.mxu0
        %2646 = vdwg.mxu0
        %v2647 = vxor.u32 %v2585, 2147483648
        %v2648 = vxor.u32 %v2598, 2147483648
        %v2649 = vmul.f32 %v2647, 1.442695
        %v2650 = vpow.pop %v2649
        %v2651 = vmul.f32 %v2648, 1.442695
        %v2652 = vpow.pop %v2651
        %v2653 = vadd.f32 %v2650, 1.0
        %v2654 = vadd.f32 %v2652, 1.0
        %v2655 = vrcp.pop %v2653
        %v2656 = vmul.f32 %v2653, %v2655
        %v2657 = vsub.f32 1.0, %v2656
        %v2658 = vmul.f32 %v2655, %v2657
        %v2659 = vadd.f32 %v2655, %v2658
        %vm2660 = vweird.f32 %v2653
        %vm2661 = vweird.f32 %v2655
        %vm2662 = vmor %vm2660, %vm2661
        %v2663 = vsel %vm2662, %v2655, %v2659
        %v2664 = vand.u32 2147483647, %v2653
        %vm2665 = vcmp.eq.f32.partialorder %v2664, 8.507059e+37
        %v2666 = vand.u32 %v2653, 2147483648
        %v2667 = vor.u32 1.1754944e-38, %v2666
        %v2668 = vsel %vm2665, %v2667, %v2663
        %v2669 = vmul.f32 1.0, %v2668
        %v2670 = vrcp.pop %v2654
        %v2671 = vmul.f32 %v2654, %v2670
        %v2672 = vsub.f32 1.0, %v2671
        %v2673 = vmul.f32 %v2670, %v2672
        %v2674 = vadd.f32 %v2670, %v2673
        %vm2675 = vweird.f32 %v2654
        %vm2676 = vweird.f32 %v2670
        %vm2677 = vmor %vm2675, %vm2676
        %v2678 = vsel %vm2677, %v2670, %v2674
        %v2679 = vand.u32 2147483647, %v2654
        %vm2680 = vcmp.eq.f32.partialorder %v2679, 8.507059e+37
        %v2681 = vand.u32 %v2654, 2147483648
        %v2682 = vor.u32 1.1754944e-38, %v2681
        %v2683 = vsel %vm2680, %v2682, %v2678
        %v2684 = vmul.f32 1.0, %v2683
        %v2685 = vmul.f32 %v2585, %v2669
        %v2686 = vmul.f32 %v2598, %v2684
        %v2687 = vmul.f32 %v2685, %v2631
        %v2688 = vmul.f32 %v2686, %v2644
        %v2689 = vmul.f32 %v2687, %v2553
        %v2690 = vmul.f32 %v2688, %v2554
        %v2691 = vpack.c.bf16 %v2689, %v2689
        %v2692 = vpack.c.bf16 %v2690, %v2690
        %v2713 = vunpack.c.l.b16 %v2420
        %v2714 = vunpack.c.l.b16 %v2421
        %v2715 = vunpack.c.l.b16 %v2422
        %v2716 = vunpack.c.l.b16 %v2423
        %v2717 = vunpack.c.l.b16 %v2424
        %v2718 = vunpack.c.l.b16 %v2425
        %v2719 = vunpack.c.l.b16 %v2426
        %v2720 = vunpack.c.l.b16 %v2427
        %v2721 = vunpack.c.l.b16 %v2428
        %v2722 = vunpack.c.l.b16 %v2429
        %v2723 = vunpack.c.l.b16 %v2430
        %v2724 = vunpack.c.l.b16 %v2431
        %v2725 = vunpack.c.l.b16 %v2432
        %v2726 = vunpack.c.l.b16 %v2433
        %v2727 = vunpack.c.l.b16 %v2434
        %v2728 = vunpack.c.l.b16 %v2435
        %v2729 = vunpack.c.l.b16 %v2436
        %v2730 = vunpack.c.l.b16 %v2437
        %v2731 = vunpack.c.l.b16 %v2438
        %v2732 = vunpack.c.l.b16 %v2439
        %v2733 = vpack.c.b16 %v2714, %v2713
        %v2734 = vpack.c.b16 %v2716, %v2715
        %v2735 = vpack.c.b16 %v2718, %v2717
        %v2736 = vpack.c.b16 %v2720, %v2719
        %v2737 = vpack.c.b16 %v2722, %v2721
        %v2738 = vpack.c.b16 %v2724, %v2723
        %v2739 = vpack.c.b16 %v2726, %v2725
        %v2740 = vpack.c.b16 %v2728, %v2727
        %v2741 = vpack.c.b16 %v2730, %v2729
        %v2742 = vpack.c.b16 %v2732, %v2731
        %v2754 = vsel %vm1323, %v2692, 0
        %2756 = vmatpush.bf16.msra.mxu0 %v2740
        %2757 = vmatpush.bf16.msra.mxu0 %v2739
        %2758 = vmatpush.bf16.msra.mxu0 %v2738
        %2759 = vmatpush.bf16.msra.mxu0 %v2737
        %2760 = vmatpush.bf16.msra.mxu0 %v2736
        %2761 = vmatpush.bf16.msra.mxu0 %v2735
        %2762 = vmatpush.bf16.msra.mxu0 %v2734
        %2763 = vmatpush.bf16.msra.mxu0 %v2733
        %2764 = vmatmul.bf16.gmra.mxu0 %v2691
        %v2765 = vpop.f32.mrf.mxu0
        %v2766 = vadd.f32 0.0, %v2765
        %v2767 = vpop.f32.mrf.mxu0
        %2768 = vdwg.mxu0
        %2769 = vmatpush.bf16.msra.mxu0 0
        %2770 = vmatpush.bf16.msra.mxu0 0
        %2771 = vmatpush.bf16.msra.mxu0 0
        %2772 = vmatpush.bf16.msra.mxu0 0
        %2773 = vmatpush.bf16.msra.mxu0 0
        %2774 = vmatpush.bf16.msra.mxu0 0
        %2775 = vmatpush.bf16.msra.mxu0 %v2742
        %2776 = vmatpush.bf16.msra.mxu0 %v2741
        %2777 = vmatmul.bf16.gmra.mxu0 %v2754
        %v2778 = vpop.f32.mrf.mxu0
        %v2779 = vadd.f32 %v2766, %v2778
        %v2780 = vpop.f32.mrf.mxu0
        %2781 = vdwg.mxu0
        %v2782 = vadd.f32 %v2384, %v2779
        %v2783 = vld [vmem:[%s59] sm:$0x1]
        %v2784 = vmul.f32 %v2782, %v2782
        %v2785 = vsel %vm1323, %v2784, 0.0
        %2786 = vadd.xlane.f32.xlu0 %v2785
        %v2787 = vpop.xlane.xlu0 %2786
        %v2788 = vmul.f32 %v2787, %v1333
        %v2789 = vadd.f32 %v2788, 1.1920929e-07
        %v2790 = vrsqrt.pop %v2789
        %v2791 = vmul.f32 %v2790, %v2789
        %v2792 = vmul.f32 %v2791, %v2790
        %v2793 = vmul.f32 0.5, %v2792
        %v2794 = vsub.f32 1.5, %v2793
        %v2795 = vmul.f32 %v2790, %v2794
        %vm2796 = vweird.f32 %v2789
        %vm2797 = vweird.f32 %v2790
        %vm2798 = vmor %vm2796, %vm2797
        %v2799 = vsel %vm2798, %v2790, %v2795
        %v2800 = vmul.f32 %v2782, %v2799
        %v2802 = vperm.slane %v2783, 0
        %v2804 = vmul.f32 %v2800, %v2802
        %2805 = vst.msk [vmem:[%s1284] sm:$0xff] %vm1323, %v2804
        %s2806 = sand.u32 %s732, 1
        %s2807 = scalar_lea.sflag [#allocation4], %s2806
        %s2808 = sand.u32 %s732, 1
        %s2809 = smul.addr %s2808, 8
        %s2810 = scalar_lea.vmem [#allocation37], %s2809
        // Predicated region
        $region229: #{_lambda_.1} parent=139 // pred_check
          %p2811 = pneg %p742
        $region230: #{_lambda_.1} parent=139 // pred_check_branch
          %2813 = sbr.rel (%p2811) target = $region232
        $region231: #{_lambda_.1} parent=139 // pred_region
          %2815 = vsyncadd %s2807, 0
          %s2816 = smul.addr %s89, 8
          %s2817 = scalar_lea.hbm %s61, %s2816
          %s2819 = sshll.u32 %s2810, 4
          %s2820 = int_to_ptr.vmem [resolvable:$true] %s2819
          %s2821 = sshll.u32 %s2817, 4
          %s2822 = int_to_ptr.hbm [resolvable:$true] %s2821
          %2824 = dma.vmem_to_hbm [thread:$0]  %s2820, 128, %s2822, %s2807
        $region232: #{_lambda_.1} parent=139 // pred_fallthru
          _
      $region140: #{_lambda_.1} parent=5 // pred_fallthru
        _
      %p2825 = scmp.le.s32.totalorder 2, %s84
      // Predicated region
      $region233: #{_lambda_.1} parent=5 // pred_check
        %p2826 = pneg %p2825
      $region234: #{_lambda_.1} parent=5 // pred_check_branch
        %2828 = sbr.rel (%p2826) target = $region236
      $region235: #{_lambda_.1} parent=5 // pred_region
        %s2829 = ssub.s32 %s84, 2
        // Predicated region
        $region237: #{_lambda_.1} parent=235 // pred_check
          %p2830 = pneg %p748
        $region238: #{_lambda_.1} parent=235 // pred_check_branch
          %2832 = sbr.rel (%p2830) target = $region240
        $region239: #{_lambda_.1} parent=235 // pred_region
          %s2833 = sand.u32 %s733, 1
          %s2834 = scalar_lea.sflag [#allocation4], %s2833
          %s2835 = sand.u32 %s733, 1
          %s2836 = smul.addr %s2835, 8
          %s2837 = scalar_lea.vmem [#allocation37], %s2836
          %2839 = dma.done %s2834, 128
        $region240: #{_lambda_.1} parent=235 // pred_fallthru
          _
      $region236: #{_lambda_.1} parent=5 // pred_fallthru
        _
    $region6: #{_lambda_.1} parent=1 // loop_footer
      %s88 = sadd.s32 1, %s84
    $region7: #{_lambda_.1} parent=1 // loop_footer_branch
      %83 = sbr.rel target = $region3
    $region8: #{_lambda_.1} parent=1 // loop_exit
      _
    %2840 = vsyncpa [#allocation3], 1
    %s2841 = scalar_lea.sflag [#allocation3], 1
    %2842 = vsyncpa %s2841, 1
    %2843 = vsyncpa [#allocation6], 1
    %2844 = vsyncpa [#allocation9], 1
    %2845 = vsyncpa [#allocation12], 1
    %2846 = vsyncpa [#allocation15], 1
    %2847 = vsyncpa [#allocation18], 1
    %2848 = vsyncpa [#allocation21], 1
    %2849 = vsyncpa [#allocation24], 1
    %2850 = vsyncpa [#allocation27], 1
    %2851 = vsyncpa [#allocation30], 1
    %2852 = vsyncpa [#allocation33], 1
    %2853 = vsyncpa [#allocation36], 1
    %2854 = vsyncpa [#allocation4], 1
    %s2855 = scalar_lea.sflag [#allocation4], 1
    %2856 = vsyncpa %s2855, 1

</llo_original>
